<compile_context>
chip_gen: v7x
topology: tpu7x:2x2x1
jax: 0.10.0
libtpu: 0.0.40
codegen_flags: <defaults>
</compile_context>

<pallas_src>
import functools
import math

import jax
import jax.numpy as jnp
from jax.experimental import pallas as pl
from jax.experimental.pallas import tpu as pltpu


# ----------------------------------------------------------------------------
# Fully fused forward kernel: single grid step, static loop over layers.
# ----------------------------------------------------------------------------
def _fused_transformer_kernel(
    # inputs
    x0_ref, wqkv_ref, wo_ref, w1_ref, w2_ref, rows_ref, head_w_ref,
    # outputs
    attn_ref, head_out_ref,
    *, num_layers, num_heads,
):
    S, D = x0_ref.shape
    H = num_heads
    dk = D // H
    F = w1_ref.shape[2]
    eps = 1e-5

    x = x0_ref[...]                                   # (S, D) f32, loop-carried

    for l in range(num_layers):                       # static unroll over layers
        wqkv = wqkv_ref[l]                            # (D, 3D)  (scale pre-folded)
        wo = wo_ref[l]                                # (D, D)
        w1 = w1_ref[l]                                # (D, F)
        w2 = w2_ref[l]                                # (F, D)

        rows = rows_ref[l]                            # (8, 128) packed row params
        bqkv = rows[0:1, 0:3 * D]
        bo = rows[1:2, 0:D]
        ln1g = rows[2:3, 0:D]
        ln1b = rows[3:4, 0:D]
        b1 = rows[4:5, 0:F]
        b2 = rows[5:6, 0:D]
        ln2g = rows[6:7, 0:D]
        ln2b = rows[7:8, 0:D]

        # ---- fused Q|K|V projection: (S,D) @ (D,3D) + (1,3D) ---------------
        qkv = jnp.dot(x, wqkv, preferred_element_type=jnp.float32) + bqkv

        # ---- multi-head self attention (softmax scale folded into Wq) ------
        ctxs = []
        for h in range(H):                            # static unroll over heads
            qh = qkv[:, h * dk:(h + 1) * dk]                       # (S, dk)
            kh = qkv[:, D + h * dk:D + (h + 1) * dk]               # (S, dk)
            vh = qkv[:, 2 * D + h * dk:2 * D + (h + 1) * dk]       # (S, dk)

            s = jnp.dot(qh, kh.T, preferred_element_type=jnp.float32)   # (S, S)
            s = s - jnp.max(s, axis=-1, keepdims=True)
            e = jnp.exp(s)
            p = e * pl.reciprocal(jnp.sum(e, axis=-1, keepdims=True),
                                  approx=False)
            # padded lane-dense output block; wrapper slices back to (S, S)
            attn_ref[l, h, 0:S, 0:S] = p
            ctxs.append(jnp.dot(p, vh, preferred_element_type=jnp.float32))

        # merge heads -> one K=D matmul with the output projection
        ctx = jnp.concatenate(ctxs, axis=-1)                        # (S, D)
        attn_out = jnp.dot(ctx, wo, preferred_element_type=jnp.float32) + bo

        # ---- residual + LayerNorm 1 ----------------------------------------
        z = x + attn_out
        mu = jnp.mean(z, axis=-1, keepdims=True)
        var = jnp.mean(jnp.square(z - mu), axis=-1, keepdims=True)
        x1 = (z - mu) * jax.lax.rsqrt(var + eps) * ln1g + ln1b

        # ---- position-wise FFN ----------------------------------------------
        hdn = jnp.maximum(
            jnp.dot(x1, w1, preferred_element_type=jnp.float32) + b1, 0.0)
        ffn = jnp.dot(hdn, w2, preferred_element_type=jnp.float32) + b2

        # ---- residual + LayerNorm 2 ------------------------------------------
        z2 = x1 + ffn
        mu2 = jnp.mean(z2, axis=-1, keepdims=True)
        var2 = jnp.mean(jnp.square(z2 - mu2), axis=-1, keepdims=True)
        x = (z2 - mu2) * jax.lax.rsqrt(var2 + eps) * ln2g + ln2b

    # ---- final head (linear D->5 composed with output_linear 5->1, no bias),
    #      applied to the CLS token row; written unconditionally. -------------
    cls = x[0:1, :]                                                 # (1, D)
    head_out_ref[...] = jnp.sum(cls * head_w_ref[...], axis=-1,
                                keepdims=True)                       # (1, 1)


# ----------------------------------------------------------------------------
# Parameters (deterministic synthetic init, kernel-ready packed layout)
# ----------------------------------------------------------------------------
def init_params(key, num_layers, model_dim, num_heads, ffn_dim):
    D, F, L, H = model_dim, ffn_dim, num_layers, num_heads
    dk = D // H
    assert D % H == 0 and 3 * D <= 128 and F <= 128

    def nrm(k, shape, s=0.02):
        return s * jax.random.normal(k, shape, jnp.float32)

    ks = jax.random.split(key, 12)

    wqkv = nrm(ks[0], (L, D, 3 * D))
    bqkv = nrm(ks[1], (L, 3 * D))
    # Fold the 1/sqrt(dk) softmax scale into the Q projection (one-time,
    # weights-only transform -> no per-layer scale multiply inside the kernel).
    scale = 1.0 / math.sqrt(dk)
    wqkv = wqkv.at[:, :, :D].multiply(scale)
    bqkv = bqkv.at[:, :D].multiply(scale)

    wo = nrm(ks[2], (L, D, D))
    bo = nrm(ks[3], (L, D))
    w1 = nrm(ks[4], (L, D, F))
    b1 = nrm(ks[5], (L, F))
    w2 = nrm(ks[6], (L, F, D))
    b2 = nrm(ks[7], (L, D))
    ln1_g = jnp.ones((L, D), jnp.float32)
    ln1_b = jnp.zeros((L, D), jnp.float32)
    ln2_g = jnp.ones((L, D), jnp.float32)
    ln2_b = jnp.zeros((L, D), jnp.float32)

    # Pack the 8 tiny per-layer row params into one (L, 8, 128) tile -> 1 DMA.
    rows = jnp.zeros((L, 8, 128), jnp.float32)
    rows = rows.at[:, 0, :3 * D].set(bqkv)
    rows = rows.at[:, 1, :D].set(bo)
    rows = rows.at[:, 2, :D].set(ln1_g)
    rows = rows.at[:, 3, :D].set(ln1_b)
    rows = rows.at[:, 4, :F].set(b1)
    rows = rows.at[:, 5, :D].set(b2)
    rows = rows.at[:, 6, :D].set(ln2_g)
    rows = rows.at[:, 7, :D].set(ln2_b)

    # Compose the two bias-free output linears once at init: (D,5)@(5,1)->(1,D).
    linear_w = nrm(ks[8], (D, 5))            # Linear(D, 5, bias=False)
    output_linear_w = nrm(ks[9], (5, 1))     # Linear(5, 1, bias=False)
    head_w = (linear_w @ output_linear_w).T  # (1, D)

    return {
        "CLS": nrm(ks[10], (6, D)),
        "SEP": nrm(ks[11], (1, D)),
        "wqkv": wqkv, "wo": wo, "w1": w1, "w2": w2,
        "rows": rows, "head_w": head_w,
    }


# ----------------------------------------------------------------------------
# Forward pass
# ----------------------------------------------------------------------------
def transformer_forward(params, audio, text, vision, *, num_heads):
    # token-axis concat: [CLS(6) | Audio | SEP | Text | SEP | Vision | SEP]
    x0 = jnp.concatenate(
        [params["CLS"], audio, params["SEP"], text, params["SEP"], vision,
         params["SEP"]], axis=0).astype(jnp.float32)             # (S, D)
    S, D = x0.shape
    L, _, threeD = params["wqkv"].shape
    F = params["w1"].shape[2]
    H = num_heads

    # lane-dense padded attention output (sliced back below)
    S_sub = -(-S // 8) * 8          # pad sublanes to multiple of 8   (25 -> 32)
    S_lane = -(-S // 128) * 128     # pad lanes to multiple of 128    (25 -> 128)

    kern = functools.partial(_fused_transformer_kernel,
                             num_layers=L, num_heads=H)

    attn_padded, head_out = pl.pallas_call(
        kern,
        out_shape=(
            jax.ShapeDtypeStruct((L, H, S_sub, S_lane), jnp.float32),
            jax.ShapeDtypeStruct((1, 1), jnp.float32),
        ),
        grid=(1,),
        in_specs=[
            pl.BlockSpec((S, D), lambda i: (0, 0)),                 # x0
            pl.BlockSpec((L, D, threeD), lambda i: (0, 0, 0)),      # wqkv (all L)
            pl.BlockSpec((L, D, D), lambda i: (0, 0, 0)),           # wo
            pl.BlockSpec((L, D, F), lambda i: (0, 0, 0)),           # w1
            pl.BlockSpec((L, F, D), lambda i: (0, 0, 0)),           # w2
            pl.BlockSpec((L, 8, 128), lambda i: (0, 0, 0)),         # packed rows
            pl.BlockSpec((1, D), lambda i: (0, 0)),                 # head_w
        ],
        out_specs=(
            pl.BlockSpec((L, H, S_sub, S_lane), lambda i: (0, 0, 0, 0)),
            pl.BlockSpec((1, 1), lambda i: (0, 0)),
        ),
        compiler_params=pltpu.CompilerParams(
            dimension_semantics=("arbitrary",)),
    )(x0, params["wqkv"], params["wo"], params["w1"], params["w2"],
      params["rows"], params["head_w"])

    attn = attn_padded[:, :, :S, :S]                   # strip lane/sublane pad
    enc_self_attn = [attn[l][None] for l in range(L)]  # list of (1, H, S, S)
    # TODO(synk): dropout (p=0.0) and the in-forward print(output.shape) are
    # identity / side-effect only and are intentionally omitted.
    return head_out, enc_self_attn


# ----------------------------------------------------------------------------
if __name__ == "__main__":
    model_dim, num_heads, ffn_dim, num_layers = 32, 4, 64, 2
    key = jax.random.PRNGKey(0)
    kp, ka, kt, kv = jax.random.split(key, 4)

    params = init_params(kp, num_layers, model_dim, num_heads, ffn_dim)
    audio = jax.random.normal(ka, (5, model_dim), jnp.float32)
    text = jax.random.normal(kt, (7, model_dim), jnp.float32)
    vision = jax.random.normal(kv, (4, model_dim), jnp.float32)

    fwd = jax.jit(functools.partial(transformer_forward, num_heads=num_heads))
    out, attns = fwd(params, audio, text, vision)
    out, attns = jax.block_until_ready((out, attns))

    S = 6 + 5 + 1 + 7 + 1 + 4 + 1  # 25 tokens
    assert out.shape == (1, 1), out.shape
    assert len(attns) == num_layers
    assert all(a.shape == (1, num_heads, S, S) for a in attns)
    assert bool(jnp.all(jnp.isfinite(out)))
    assert all(bool(jnp.all(jnp.isfinite(a))) for a in attns)
    # attention rows must sum to ~1 (exact reciprocal used)
    assert all(bool(jnp.allclose(jnp.sum(a, axis=-1), 1.0, atol=1e-5))
               for a in attns)
    print("KERNEL_OK")
</pallas_src>

<mosaic_0001>
module attributes {stable_mosaic.version = 11 : i64} {
  func.func @_fused_transformer_kernel(%arg0: i32, %arg1: memref<25x32xf32, #tpu.memory_space<vmem>>, %arg2: memref<2x32x96xf32, #tpu.memory_space<vmem>>, %arg3: memref<2x32x32xf32, #tpu.memory_space<vmem>>, %arg4: memref<2x32x64xf32, #tpu.memory_space<vmem>>, %arg5: memref<2x64x32xf32, #tpu.memory_space<vmem>>, %arg6: memref<2x8x128xf32, #tpu.memory_space<vmem>>, %arg7: memref<1x32xf32, #tpu.memory_space<vmem>>, %arg8: memref<2x4x32x128xf32, #tpu.memory_space<vmem>>, %arg9: memref<1x1xf32, #tpu.memory_space<vmem>>) attributes {dimension_semantics = [#tpu.dimension_semantics<arbitrary>], iteration_bounds = array<i64: 1>, scalar_prefetch = 0 : i64, scratch_operands = 0 : i64, tpu.core_type = #tpu.core_type<tc>, window_params = [{pipeline_mode = #tpu.pipeline_mode<synchronous>, transform_indices = @transform_0, window_bounds = array<i64: 25, 32>}, {pipeline_mode = #tpu.pipeline_mode<synchronous>, transform_indices = @transform_1, window_bounds = array<i64: 2, 32, 96>}, {pipeline_mode = #tpu.pipeline_mode<synchronous>, transform_indices = @transform_2, window_bounds = array<i64: 2, 32, 32>}, {pipeline_mode = #tpu.pipeline_mode<synchronous>, transform_indices = @transform_3, window_bounds = array<i64: 2, 32, 64>}, {pipeline_mode = #tpu.pipeline_mode<synchronous>, transform_indices = @transform_4, window_bounds = array<i64: 2, 64, 32>}, {pipeline_mode = #tpu.pipeline_mode<synchronous>, transform_indices = @transform_5, window_bounds = array<i64: 2, 8, 128>}, {pipeline_mode = #tpu.pipeline_mode<synchronous>, transform_indices = @transform_6, window_bounds = array<i64: 1, 32>}, {pipeline_mode = #tpu.pipeline_mode<synchronous>, transform_indices = @transform_7, window_bounds = array<i64: 2, 4, 32, 128>}, {pipeline_mode = #tpu.pipeline_mode<synchronous>, transform_indices = @transform_8, window_bounds = array<i64: 1, 1>}]} {
    %c0 = arith.constant 0 : index
    %c0_0 = arith.constant 0 : index
    %0 = vector.load %arg1[%c0, %c0_0] : memref<25x32xf32, #tpu.memory_space<vmem>>, vector<25x32xf32>
    %c0_1 = arith.constant 0 : index
    %c0_2 = arith.constant 0 : index
    %c0_3 = arith.constant 0 : index
    %1 = vector.load %arg2[%c0_1, %c0_2, %c0_3] : memref<2x32x96xf32, #tpu.memory_space<vmem>>, vector<1x32x96xf32>
    %2 = vector.shape_cast %1 : vector<1x32x96xf32> to vector<32x96xf32>
    %c0_4 = arith.constant 0 : index
    %c0_5 = arith.constant 0 : index
    %c0_6 = arith.constant 0 : index
    %3 = vector.load %arg3[%c0_4, %c0_5, %c0_6] : memref<2x32x32xf32, #tpu.memory_space<vmem>>, vector<1x32x32xf32>
    %4 = vector.shape_cast %3 : vector<1x32x32xf32> to vector<32x32xf32>
    %c0_7 = arith.constant 0 : index
    %c0_8 = arith.constant 0 : index
    %c0_9 = arith.constant 0 : index
    %5 = vector.load %arg4[%c0_7, %c0_8, %c0_9] : memref<2x32x64xf32, #tpu.memory_space<vmem>>, vector<1x32x64xf32>
    %6 = vector.shape_cast %5 : vector<1x32x64xf32> to vector<32x64xf32>
    %c0_10 = arith.constant 0 : index
    %c0_11 = arith.constant 0 : index
    %c0_12 = arith.constant 0 : index
    %7 = vector.load %arg5[%c0_10, %c0_11, %c0_12] : memref<2x64x32xf32, #tpu.memory_space<vmem>>, vector<1x64x32xf32>
    %8 = vector.shape_cast %7 : vector<1x64x32xf32> to vector<64x32xf32>
    %c0_13 = arith.constant 0 : index
    %c0_14 = arith.constant 0 : index
    %c0_15 = arith.constant 0 : index
    %9 = vector.load %arg6[%c0_13, %c0_14, %c0_15] : memref<2x8x128xf32, #tpu.memory_space<vmem>>, vector<1x8x128xf32>
    %10 = vector.shape_cast %9 : vector<1x8x128xf32> to vector<8x128xf32>
    %11 = vector.extract_strided_slice %10 {offsets = [0, 0], sizes = [1, 96], strides = [1, 1]} : vector<8x128xf32> to vector<1x96xf32>
    %12 = vector.extract_strided_slice %10 {offsets = [1, 0], sizes = [1, 32], strides = [1, 1]} : vector<8x128xf32> to vector<1x32xf32>
    %13 = vector.extract_strided_slice %10 {offsets = [2, 0], sizes = [1, 32], strides = [1, 1]} : vector<8x128xf32> to vector<1x32xf32>
    %14 = vector.extract_strided_slice %10 {offsets = [3, 0], sizes = [1, 32], strides = [1, 1]} : vector<8x128xf32> to vector<1x32xf32>
    %15 = vector.extract_strided_slice %10 {offsets = [4, 0], sizes = [1, 64], strides = [1, 1]} : vector<8x128xf32> to vector<1x64xf32>
    %16 = vector.extract_strided_slice %10 {offsets = [5, 0], sizes = [1, 32], strides = [1, 1]} : vector<8x128xf32> to vector<1x32xf32>
    %17 = vector.extract_strided_slice %10 {offsets = [6, 0], sizes = [1, 32], strides = [1, 1]} : vector<8x128xf32> to vector<1x32xf32>
    %18 = vector.extract_strided_slice %10 {offsets = [7, 0], sizes = [1, 32], strides = [1, 1]} : vector<8x128xf32> to vector<1x32xf32>
    %cst = arith.constant dense<0.000000e+00> : vector<25x96xf32>
    %19 = tpu.matmul %0, %2, %cst {dimension_numbers = #tpu.dot_dimension_numbers<[1], [0], [0], [1], [0, 0, 1, 1], [], []>} : vector<25x32xf32>, vector<32x96xf32>, vector<25x96xf32> -> vector<25x96xf32>
    %20 = vector.broadcast %11 : vector<1x96xf32> to vector<25x96xf32>
    %21 = arith.addf %19, %20 : vector<25x96xf32>
    %22 = vector.extract_strided_slice %21 {offsets = [0, 0], sizes = [25, 8], strides = [1, 1]} : vector<25x96xf32> to vector<25x8xf32>
    %23 = vector.extract_strided_slice %21 {offsets = [0, 32], sizes = [25, 8], strides = [1, 1]} : vector<25x96xf32> to vector<25x8xf32>
    %24 = vector.extract_strided_slice %21 {offsets = [0, 64], sizes = [25, 8], strides = [1, 1]} : vector<25x96xf32> to vector<25x8xf32>
    %25 = tpu.transpose %23, [1, 0] : vector<25x8xf32> -> vector<8x25xf32>
    %cst_16 = arith.constant dense<0.000000e+00> : vector<25x25xf32>
    %26 = tpu.matmul %22, %25, %cst_16 {dimension_numbers = #tpu.dot_dimension_numbers<[1], [0], [0], [1], [0, 0, 1, 1], [], []>} : vector<25x8xf32>, vector<8x25xf32>, vector<25x25xf32> -> vector<25x25xf32>
    %cst_17 = arith.constant dense<0xFF800000> : vector<25xf32>
    %27 = vector.multi_reduction <maximumf>, %26, %cst_17 [1] : vector<25x25xf32> to vector<25xf32>
    %28 = vector.shape_cast %27 : vector<25xf32> to vector<25x1xf32>
    %29 = vector.broadcast %28 : vector<25x1xf32> to vector<25x25xf32>
    %30 = arith.subf %26, %29 : vector<25x25xf32>
    %31 = math.exp %30 : vector<25x25xf32>
    %cst_18 = arith.constant dense<0.000000e+00> : vector<25xf32>
    %32 = vector.multi_reduction <add>, %31, %cst_18 [1] : vector<25x25xf32> to vector<25xf32>
    %33 = vector.shape_cast %32 : vector<25xf32> to vector<25x1xf32>
    %34 = tpu.reciprocal %33 : vector<25x1xf32> -> vector<25x1xf32>
    %35 = vector.broadcast %34 : vector<25x1xf32> to vector<25x25xf32>
    %36 = arith.mulf %31, %35 : vector<25x25xf32>
    %c0_19 = arith.constant 0 : index
    %c0_20 = arith.constant 0 : index
    %c0_21 = arith.constant 0 : index
    %c0_22 = arith.constant 0 : index
    %37 = vector.load %arg8[%c0_19, %c0_20, %c0_21, %c0_22] : memref<2x4x32x128xf32, #tpu.memory_space<vmem>>, vector<1x1x25x25xf32>
    %38 = vector.shape_cast %37 : vector<1x1x25x25xf32> to vector<25x25xf32>
    %39 = vector.shape_cast %36 : vector<25x25xf32> to vector<1x1x25x25xf32>
    tpu.vector_store %arg8[%c0_19, %c0_20, %c0_21, %c0_22], %39 {strides = array<i32>} : memref<2x4x32x128xf32, #tpu.memory_space<vmem>>, vector<1x1x25x25xf32>,
    %cst_23 = arith.constant dense<0.000000e+00> : vector<25x8xf32>
    %40 = tpu.matmul %36, %24, %cst_23 {dimension_numbers = #tpu.dot_dimension_numbers<[1], [0], [0], [1], [0, 0, 1, 1], [], []>} : vector<25x25xf32>, vector<25x8xf32>, vector<25x8xf32> -> vector<25x8xf32>
    %41 = vector.extract_strided_slice %21 {offsets = [0, 8], sizes = [25, 8], strides = [1, 1]} : vector<25x96xf32> to vector<25x8xf32>
    %42 = vector.extract_strided_slice %21 {offsets = [0, 40], sizes = [25, 8], strides = [1, 1]} : vector<25x96xf32> to vector<25x8xf32>
    %43 = vector.extract_strided_slice %21 {offsets = [0, 72], sizes = [25, 8], strides = [1, 1]} : vector<25x96xf32> to vector<25x8xf32>
    %44 = tpu.transpose %42, [1, 0] : vector<25x8xf32> -> vector<8x25xf32>
    %cst_24 = arith.constant dense<0.000000e+00> : vector<25x25xf32>
    %45 = tpu.matmul %41, %44, %cst_24 {dimension_numbers = #tpu.dot_dimension_numbers<[1], [0], [0], [1], [0, 0, 1, 1], [], []>} : vector<25x8xf32>, vector<8x25xf32>, vector<25x25xf32> -> vector<25x25xf32>
    %cst_25 = arith.constant dense<0xFF800000> : vector<25xf32>
    %46 = vector.multi_reduction <maximumf>, %45, %cst_25 [1] : vector<25x25xf32> to vector<25xf32>
    %47 = vector.shape_cast %46 : vector<25xf32> to vector<25x1xf32>
    %48 = vector.broadcast %47 : vector<25x1xf32> to vector<25x25xf32>
    %49 = arith.subf %45, %48 : vector<25x25xf32>
    %50 = math.exp %49 : vector<25x25xf32>
    %cst_26 = arith.constant dense<0.000000e+00> : vector<25xf32>
    %51 = vector.multi_reduction <add>, %50, %cst_26 [1] : vector<25x25xf32> to vector<25xf32>
    %52 = vector.shape_cast %51 : vector<25xf32> to vector<25x1xf32>
    %53 = tpu.reciprocal %52 : vector<25x1xf32> -> vector<25x1xf32>
    %54 = vector.broadcast %53 : vector<25x1xf32> to vector<25x25xf32>
    %55 = arith.mulf %50, %54 : vector<25x25xf32>
    %c0_27 = arith.constant 0 : index
    %c1 = arith.constant 1 : index
    %c0_28 = arith.constant 0 : index
    %c0_29 = arith.constant 0 : index
    %56 = vector.load %arg8[%c0_27, %c1, %c0_28, %c0_29] : memref<2x4x32x128xf32, #tpu.memory_space<vmem>>, vector<1x1x25x25xf32>
    %57 = vector.shape_cast %56 : vector<1x1x25x25xf32> to vector<25x25xf32>
    %58 = vector.shape_cast %55 : vector<25x25xf32> to vector<1x1x25x25xf32>
    tpu.vector_store %arg8[%c0_27, %c1, %c0_28, %c0_29], %58 {strides = array<i32>} : memref<2x4x32x128xf32, #tpu.memory_space<vmem>>, vector<1x1x25x25xf32>,
    %cst_30 = arith.constant dense<0.000000e+00> : vector<25x8xf32>
    %59 = tpu.matmul %55, %43, %cst_30 {dimension_numbers = #tpu.dot_dimension_numbers<[1], [0], [0], [1], [0, 0, 1, 1], [], []>} : vector<25x25xf32>, vector<25x8xf32>, vector<25x8xf32> -> vector<25x8xf32>
    %60 = vector.extract_strided_slice %21 {offsets = [0, 16], sizes = [25, 8], strides = [1, 1]} : vector<25x96xf32> to vector<25x8xf32>
    %61 = vector.extract_strided_slice %21 {offsets = [0, 48], sizes = [25, 8], strides = [1, 1]} : vector<25x96xf32> to vector<25x8xf32>
    %62 = vector.extract_strided_slice %21 {offsets = [0, 80], sizes = [25, 8], strides = [1, 1]} : vector<25x96xf32> to vector<25x8xf32>
    %63 = tpu.transpose %61, [1, 0] : vector<25x8xf32> -> vector<8x25xf32>
    %cst_31 = arith.constant dense<0.000000e+00> : vector<25x25xf32>
    %64 = tpu.matmul %60, %63, %cst_31 {dimension_numbers = #tpu.dot_dimension_numbers<[1], [0], [0], [1], [0, 0, 1, 1], [], []>} : vector<25x8xf32>, vector<8x25xf32>, vector<25x25xf32> -> vector<25x25xf32>
    %cst_32 = arith.constant dense<0xFF800000> : vector<25xf32>
    %65 = vector.multi_reduction <maximumf>, %64, %cst_32 [1] : vector<25x25xf32> to vector<25xf32>
    %66 = vector.shape_cast %65 : vector<25xf32> to vector<25x1xf32>
    %67 = vector.broadcast %66 : vector<25x1xf32> to vector<25x25xf32>
    %68 = arith.subf %64, %67 : vector<25x25xf32>
    %69 = math.exp %68 : vector<25x25xf32>
    %cst_33 = arith.constant dense<0.000000e+00> : vector<25xf32>
    %70 = vector.multi_reduction <add>, %69, %cst_33 [1] : vector<25x25xf32> to vector<25xf32>
    %71 = vector.shape_cast %70 : vector<25xf32> to vector<25x1xf32>
    %72 = tpu.reciprocal %71 : vector<25x1xf32> -> vector<25x1xf32>
    %73 = vector.broadcast %72 : vector<25x1xf32> to vector<25x25xf32>
    %74 = arith.mulf %69, %73 : vector<25x25xf32>
    %c0_34 = arith.constant 0 : index
    %c2 = arith.constant 2 : index
    %c0_35 = arith.constant 0 : index
    %c0_36 = arith.constant 0 : index
    %75 = vector.load %arg8[%c0_34, %c2, %c0_35, %c0_36] : memref<2x4x32x128xf32, #tpu.memory_space<vmem>>, vector<1x1x25x25xf32>
    %76 = vector.shape_cast %75 : vector<1x1x25x25xf32> to vector<25x25xf32>
    %77 = vector.shape_cast %74 : vector<25x25xf32> to vector<1x1x25x25xf32>
    tpu.vector_store %arg8[%c0_34, %c2, %c0_35, %c0_36], %77 {strides = array<i32>} : memref<2x4x32x128xf32, #tpu.memory_space<vmem>>, vector<1x1x25x25xf32>,
    %cst_37 = arith.constant dense<0.000000e+00> : vector<25x8xf32>
    %78 = tpu.matmul %74, %62, %cst_37 {dimension_numbers = #tpu.dot_dimension_numbers<[1], [0], [0], [1], [0, 0, 1, 1], [], []>} : vector<25x25xf32>, vector<25x8xf32>, vector<25x8xf32> -> vector<25x8xf32>
    %79 = vector.extract_strided_slice %21 {offsets = [0, 24], sizes = [25, 8], strides = [1, 1]} : vector<25x96xf32> to vector<25x8xf32>
    %80 = vector.extract_strided_slice %21 {offsets = [0, 56], sizes = [25, 8], strides = [1, 1]} : vector<25x96xf32> to vector<25x8xf32>
    %81 = vector.extract_strided_slice %21 {offsets = [0, 88], sizes = [25, 8], strides = [1, 1]} : vector<25x96xf32> to vector<25x8xf32>
    %82 = tpu.transpose %80, [1, 0] : vector<25x8xf32> -> vector<8x25xf32>
    %cst_38 = arith.constant dense<0.000000e+00> : vector<25x25xf32>
    %83 = tpu.matmul %79, %82, %cst_38 {dimension_numbers = #tpu.dot_dimension_numbers<[1], [0], [0], [1], [0, 0, 1, 1], [], []>} : vector<25x8xf32>, vector<8x25xf32>, vector<25x25xf32> -> vector<25x25xf32>
    %cst_39 = arith.constant dense<0xFF800000> : vector<25xf32>
    %84 = vector.multi_reduction <maximumf>, %83, %cst_39 [1] : vector<25x25xf32> to vector<25xf32>
    %85 = vector.shape_cast %84 : vector<25xf32> to vector<25x1xf32>
    %86 = vector.broadcast %85 : vector<25x1xf32> to vector<25x25xf32>
    %87 = arith.subf %83, %86 : vector<25x25xf32>
    %88 = math.exp %87 : vector<25x25xf32>
    %cst_40 = arith.constant dense<0.000000e+00> : vector<25xf32>
    %89 = vector.multi_reduction <add>, %88, %cst_40 [1] : vector<25x25xf32> to vector<25xf32>
    %90 = vector.shape_cast %89 : vector<25xf32> to vector<25x1xf32>
    %91 = tpu.reciprocal %90 : vector<25x1xf32> -> vector<25x1xf32>
    %92 = vector.broadcast %91 : vector<25x1xf32> to vector<25x25xf32>
    %93 = arith.mulf %88, %92 : vector<25x25xf32>
    %c0_41 = arith.constant 0 : index
    %c3 = arith.constant 3 : index
    %c0_42 = arith.constant 0 : index
    %c0_43 = arith.constant 0 : index
    %94 = vector.load %arg8[%c0_41, %c3, %c0_42, %c0_43] : memref<2x4x32x128xf32, #tpu.memory_space<vmem>>, vector<1x1x25x25xf32>
    %95 = vector.shape_cast %94 : vector<1x1x25x25xf32> to vector<25x25xf32>
    %96 = vector.shape_cast %93 : vector<25x25xf32> to vector<1x1x25x25xf32>
    tpu.vector_store %arg8[%c0_41, %c3, %c0_42, %c0_43], %96 {strides = array<i32>} : memref<2x4x32x128xf32, #tpu.memory_space<vmem>>, vector<1x1x25x25xf32>,
    %cst_44 = arith.constant dense<0.000000e+00> : vector<25x8xf32>
    %97 = tpu.matmul %93, %81, %cst_44 {dimension_numbers = #tpu.dot_dimension_numbers<[1], [0], [0], [1], [0, 0, 1, 1], [], []>} : vector<25x25xf32>, vector<25x8xf32>, vector<25x8xf32> -> vector<25x8xf32>
    %98 = tpu.concatenate %40, %59, %78, %97 in 1 : vector<25x8xf32>, vector<25x8xf32>, vector<25x8xf32>, vector<25x8xf32> -> vector<25x32xf32>
    %cst_45 = arith.constant dense<0.000000e+00> : vector<25x32xf32>
    %99 = tpu.matmul %98, %4, %cst_45 {dimension_numbers = #tpu.dot_dimension_numbers<[1], [0], [0], [1], [0, 0, 1, 1], [], []>} : vector<25x32xf32>, vector<32x32xf32>, vector<25x32xf32> -> vector<25x32xf32>
    %100 = vector.broadcast %12 : vector<1x32xf32> to vector<25x32xf32>
    %101 = arith.addf %99, %100 : vector<25x32xf32>
    %102 = arith.addf %0, %101 : vector<25x32xf32>
    %cst_46 = arith.constant dense<0.000000e+00> : vector<25xf32>
    %103 = vector.multi_reduction <add>, %102, %cst_46 [1] : vector<25x32xf32> to vector<25xf32>
    %104 = vector.shape_cast %103 : vector<25xf32> to vector<25x1xf32>
    %cst_47 = arith.constant 3.200000e+01 : f32
    %105 = vector.broadcast %cst_47 : f32 to vector<25x1xf32>
    %106 = arith.divf %104, %105 : vector<25x1xf32>
    %107 = vector.broadcast %106 : vector<25x1xf32> to vector<25x32xf32>
    %108 = arith.subf %102, %107 : vector<25x32xf32>
    %109 = arith.mulf %108, %108 : vector<25x32xf32>
    %cst_48 = arith.constant dense<0.000000e+00> : vector<25xf32>
    %110 = vector.multi_reduction <add>, %109, %cst_48 [1] : vector<25x32xf32> to vector<25xf32>
    %111 = vector.shape_cast %110 : vector<25xf32> to vector<25x1xf32>
    %cst_49 = arith.constant 3.200000e+01 : f32
    %112 = vector.broadcast %cst_49 : f32 to vector<25x1xf32>
    %113 = arith.divf %111, %112 : vector<25x1xf32>
    %114 = vector.broadcast %106 : vector<25x1xf32> to vector<25x32xf32>
    %115 = arith.subf %102, %114 : vector<25x32xf32>
    %cst_50 = arith.constant 9.99999974E-6 : f32
    %116 = vector.broadcast %cst_50 : f32 to vector<25x1xf32>
    %117 = arith.addf %113, %116 : vector<25x1xf32>
    %118 = math.rsqrt %117 : vector<25x1xf32>
    %119 = vector.broadcast %118 : vector<25x1xf32> to vector<25x32xf32>
    %120 = arith.mulf %115, %119 : vector<25x32xf32>
    %121 = vector.broadcast %13 : vector<1x32xf32> to vector<25x32xf32>
    %122 = arith.mulf %120, %121 : vector<25x32xf32>
    %123 = vector.broadcast %14 : vector<1x32xf32> to vector<25x32xf32>
    %124 = arith.addf %122, %123 : vector<25x32xf32>
    %cst_51 = arith.constant dense<0.000000e+00> : vector<25x64xf32>
    %125 = tpu.matmul %124, %6, %cst_51 {dimension_numbers = #tpu.dot_dimension_numbers<[1], [0], [0], [1], [0, 0, 1, 1], [], []>} : vector<25x32xf32>, vector<32x64xf32>, vector<25x64xf32> -> vector<25x64xf32>
    %126 = vector.broadcast %15 : vector<1x64xf32> to vector<25x64xf32>
    %127 = arith.addf %125, %126 : vector<25x64xf32>
    %cst_52 = arith.constant 0.000000e+00 : f32
    %128 = vector.broadcast %cst_52 : f32 to vector<25x64xf32>
    %129 = arith.maximumf %127, %128 : vector<25x64xf32>
    %cst_53 = arith.constant dense<0.000000e+00> : vector<25x32xf32>
    %130 = tpu.matmul %129, %8, %cst_53 {dimension_numbers = #tpu.dot_dimension_numbers<[1], [0], [0], [1], [0, 0, 1, 1], [], []>} : vector<25x64xf32>, vector<64x32xf32>, vector<25x32xf32> -> vector<25x32xf32>
    %131 = vector.broadcast %16 : vector<1x32xf32> to vector<25x32xf32>
    %132 = arith.addf %130, %131 : vector<25x32xf32>
    %133 = arith.addf %124, %132 : vector<25x32xf32>
    %cst_54 = arith.constant dense<0.000000e+00> : vector<25xf32>
    %134 = vector.multi_reduction <add>, %133, %cst_54 [1] : vector<25x32xf32> to vector<25xf32>
    %135 = vector.shape_cast %134 : vector<25xf32> to vector<25x1xf32>
    %cst_55 = arith.constant 3.200000e+01 : f32
    %136 = vector.broadcast %cst_55 : f32 to vector<25x1xf32>
    %137 = arith.divf %135, %136 : vector<25x1xf32>
    %138 = vector.broadcast %137 : vector<25x1xf32> to vector<25x32xf32>
    %139 = arith.subf %133, %138 : vector<25x32xf32>
    %140 = arith.mulf %139, %139 : vector<25x32xf32>
    %cst_56 = arith.constant dense<0.000000e+00> : vector<25xf32>
    %141 = vector.multi_reduction <add>, %140, %cst_56 [1] : vector<25x32xf32> to vector<25xf32>
    %142 = vector.shape_cast %141 : vector<25xf32> to vector<25x1xf32>
    %cst_57 = arith.constant 3.200000e+01 : f32
    %143 = vector.broadcast %cst_57 : f32 to vector<25x1xf32>
    %144 = arith.divf %142, %143 : vector<25x1xf32>
    %145 = vector.broadcast %137 : vector<25x1xf32> to vector<25x32xf32>
    %146 = arith.subf %133, %145 : vector<25x32xf32>
    %cst_58 = arith.constant 9.99999974E-6 : f32
    %147 = vector.broadcast %cst_58 : f32 to vector<25x1xf32>
    %148 = arith.addf %144, %147 : vector<25x1xf32>
    %149 = math.rsqrt %148 : vector<25x1xf32>
    %150 = vector.broadcast %149 : vector<25x1xf32> to vector<25x32xf32>
    %151 = arith.mulf %146, %150 : vector<25x32xf32>
    %152 = vector.broadcast %17 : vector<1x32xf32> to vector<25x32xf32>
    %153 = arith.mulf %151, %152 : vector<25x32xf32>
    %154 = vector.broadcast %18 : vector<1x32xf32> to vector<25x32xf32>
    %155 = arith.addf %153, %154 : vector<25x32xf32>
    %c1_59 = arith.constant 1 : index
    %c0_60 = arith.constant 0 : index
    %c0_61 = arith.constant 0 : index
    %156 = vector.load %arg2[%c1_59, %c0_60, %c0_61] : memref<2x32x96xf32, #tpu.memory_space<vmem>>, vector<1x32x96xf32>
    %157 = vector.shape_cast %156 : vector<1x32x96xf32> to vector<32x96xf32>
    %c1_62 = arith.constant 1 : index
    %c0_63 = arith.constant 0 : index
    %c0_64 = arith.constant 0 : index
    %158 = vector.load %arg3[%c1_62, %c0_63, %c0_64] : memref<2x32x32xf32, #tpu.memory_space<vmem>>, vector<1x32x32xf32>
    %159 = vector.shape_cast %158 : vector<1x32x32xf32> to vector<32x32xf32>
    %c1_65 = arith.constant 1 : index
    %c0_66 = arith.constant 0 : index
    %c0_67 = arith.constant 0 : index
    %160 = vector.load %arg4[%c1_65, %c0_66, %c0_67] : memref<2x32x64xf32, #tpu.memory_space<vmem>>, vector<1x32x64xf32>
    %161 = vector.shape_cast %160 : vector<1x32x64xf32> to vector<32x64xf32>
    %c1_68 = arith.constant 1 : index
    %c0_69 = arith.constant 0 : index
    %c0_70 = arith.constant 0 : index
    %162 = vector.load %arg5[%c1_68, %c0_69, %c0_70] : memref<2x64x32xf32, #tpu.memory_space<vmem>>, vector<1x64x32xf32>
    %163 = vector.shape_cast %162 : vector<1x64x32xf32> to vector<64x32xf32>
    %c1_71 = arith.constant 1 : index
    %c0_72 = arith.constant 0 : index
    %c0_73 = arith.constant 0 : index
    %164 = vector.load %arg6[%c1_71, %c0_72, %c0_73] : memref<2x8x128xf32, #tpu.memory_space<vmem>>, vector<1x8x128xf32>
    %165 = vector.shape_cast %164 : vector<1x8x128xf32> to vector<8x128xf32>
    %166 = vector.extract_strided_slice %165 {offsets = [0, 0], sizes = [1, 96], strides = [1, 1]} : vector<8x128xf32> to vector<1x96xf32>
    %167 = vector.extract_strided_slice %165 {offsets = [1, 0], sizes = [1, 32], strides = [1, 1]} : vector<8x128xf32> to vector<1x32xf32>
    %168 = vector.extract_strided_slice %165 {offsets = [2, 0], sizes = [1, 32], strides = [1, 1]} : vector<8x128xf32> to vector<1x32xf32>
    %169 = vector.extract_strided_slice %165 {offsets = [3, 0], sizes = [1, 32], strides = [1, 1]} : vector<8x128xf32> to vector<1x32xf32>
    %170 = vector.extract_strided_slice %165 {offsets = [4, 0], sizes = [1, 64], strides = [1, 1]} : vector<8x128xf32> to vector<1x64xf32>
    %171 = vector.extract_strided_slice %165 {offsets = [5, 0], sizes = [1, 32], strides = [1, 1]} : vector<8x128xf32> to vector<1x32xf32>
    %172 = vector.extract_strided_slice %165 {offsets = [6, 0], sizes = [1, 32], strides = [1, 1]} : vector<8x128xf32> to vector<1x32xf32>
    %173 = vector.extract_strided_slice %165 {offsets = [7, 0], sizes = [1, 32], strides = [1, 1]} : vector<8x128xf32> to vector<1x32xf32>
    %cst_74 = arith.constant dense<0.000000e+00> : vector<25x96xf32>
    %174 = tpu.matmul %155, %157, %cst_74 {dimension_numbers = #tpu.dot_dimension_numbers<[1], [0], [0], [1], [0, 0, 1, 1], [], []>} : vector<25x32xf32>, vector<32x96xf32>, vector<25x96xf32> -> vector<25x96xf32>
    %175 = vector.broadcast %166 : vector<1x96xf32> to vector<25x96xf32>
    %176 = arith.addf %174, %175 : vector<25x96xf32>
    %177 = vector.extract_strided_slice %176 {offsets = [0, 0], sizes = [25, 8], strides = [1, 1]} : vector<25x96xf32> to vector<25x8xf32>
    %178 = vector.extract_strided_slice %176 {offsets = [0, 32], sizes = [25, 8], strides = [1, 1]} : vector<25x96xf32> to vector<25x8xf32>
    %179 = vector.extract_strided_slice %176 {offsets = [0, 64], sizes = [25, 8], strides = [1, 1]} : vector<25x96xf32> to vector<25x8xf32>
    %180 = tpu.transpose %178, [1, 0] : vector<25x8xf32> -> vector<8x25xf32>
    %cst_75 = arith.constant dense<0.000000e+00> : vector<25x25xf32>
    %181 = tpu.matmul %177, %180, %cst_75 {dimension_numbers = #tpu.dot_dimension_numbers<[1], [0], [0], [1], [0, 0, 1, 1], [], []>} : vector<25x8xf32>, vector<8x25xf32>, vector<25x25xf32> -> vector<25x25xf32>
    %cst_76 = arith.constant dense<0xFF800000> : vector<25xf32>
    %182 = vector.multi_reduction <maximumf>, %181, %cst_76 [1] : vector<25x25xf32> to vector<25xf32>
    %183 = vector.shape_cast %182 : vector<25xf32> to vector<25x1xf32>
    %184 = vector.broadcast %183 : vector<25x1xf32> to vector<25x25xf32>
    %185 = arith.subf %181, %184 : vector<25x25xf32>
    %186 = math.exp %185 : vector<25x25xf32>
    %cst_77 = arith.constant dense<0.000000e+00> : vector<25xf32>
    %187 = vector.multi_reduction <add>, %186, %cst_77 [1] : vector<25x25xf32> to vector<25xf32>
    %188 = vector.shape_cast %187 : vector<25xf32> to vector<25x1xf32>
    %189 = tpu.reciprocal %188 : vector<25x1xf32> -> vector<25x1xf32>
    %190 = vector.broadcast %189 : vector<25x1xf32> to vector<25x25xf32>
    %191 = arith.mulf %186, %190 : vector<25x25xf32>
    %c1_78 = arith.constant 1 : index
    %c0_79 = arith.constant 0 : index
    %c0_80 = arith.constant 0 : index
    %c0_81 = arith.constant 0 : index
    %192 = vector.load %arg8[%c1_78, %c0_79, %c0_80, %c0_81] : memref<2x4x32x128xf32, #tpu.memory_space<vmem>>, vector<1x1x25x25xf32>
    %193 = vector.shape_cast %192 : vector<1x1x25x25xf32> to vector<25x25xf32>
    %194 = vector.shape_cast %191 : vector<25x25xf32> to vector<1x1x25x25xf32>
    tpu.vector_store %arg8[%c1_78, %c0_79, %c0_80, %c0_81], %194 {strides = array<i32>} : memref<2x4x32x128xf32, #tpu.memory_space<vmem>>, vector<1x1x25x25xf32>,
    %cst_82 = arith.constant dense<0.000000e+00> : vector<25x8xf32>
    %195 = tpu.matmul %191, %179, %cst_82 {dimension_numbers = #tpu.dot_dimension_numbers<[1], [0], [0], [1], [0, 0, 1, 1], [], []>} : vector<25x25xf32>, vector<25x8xf32>, vector<25x8xf32> -> vector<25x8xf32>
    %196 = vector.extract_strided_slice %176 {offsets = [0, 8], sizes = [25, 8], strides = [1, 1]} : vector<25x96xf32> to vector<25x8xf32>
    %197 = vector.extract_strided_slice %176 {offsets = [0, 40], sizes = [25, 8], strides = [1, 1]} : vector<25x96xf32> to vector<25x8xf32>
    %198 = vector.extract_strided_slice %176 {offsets = [0, 72], sizes = [25, 8], strides = [1, 1]} : vector<25x96xf32> to vector<25x8xf32>
    %199 = tpu.transpose %197, [1, 0] : vector<25x8xf32> -> vector<8x25xf32>
    %cst_83 = arith.constant dense<0.000000e+00> : vector<25x25xf32>
    %200 = tpu.matmul %196, %199, %cst_83 {dimension_numbers = #tpu.dot_dimension_numbers<[1], [0], [0], [1], [0, 0, 1, 1], [], []>} : vector<25x8xf32>, vector<8x25xf32>, vector<25x25xf32> -> vector<25x25xf32>
    %cst_84 = arith.constant dense<0xFF800000> : vector<25xf32>
    %201 = vector.multi_reduction <maximumf>, %200, %cst_84 [1] : vector<25x25xf32> to vector<25xf32>
    %202 = vector.shape_cast %201 : vector<25xf32> to vector<25x1xf32>
    %203 = vector.broadcast %202 : vector<25x1xf32> to vector<25x25xf32>
    %204 = arith.subf %200, %203 : vector<25x25xf32>
    %205 = math.exp %204 : vector<25x25xf32>
    %cst_85 = arith.constant dense<0.000000e+00> : vector<25xf32>
    %206 = vector.multi_reduction <add>, %205, %cst_85 [1] : vector<25x25xf32> to vector<25xf32>
    %207 = vector.shape_cast %206 : vector<25xf32> to vector<25x1xf32>
    %208 = tpu.reciprocal %207 : vector<25x1xf32> -> vector<25x1xf32>
    %209 = vector.broadcast %208 : vector<25x1xf32> to vector<25x25xf32>
    %210 = arith.mulf %205, %209 : vector<25x25xf32>
    %c1_86 = arith.constant 1 : index
    %c1_87 = arith.constant 1 : index
    %c0_88 = arith.constant 0 : index
    %c0_89 = arith.constant 0 : index
    %211 = vector.load %arg8[%c1_86, %c1_87, %c0_88, %c0_89] : memref<2x4x32x128xf32, #tpu.memory_space<vmem>>, vector<1x1x25x25xf32>
    %212 = vector.shape_cast %211 : vector<1x1x25x25xf32> to vector<25x25xf32>
    %213 = vector.shape_cast %210 : vector<25x25xf32> to vector<1x1x25x25xf32>
    tpu.vector_store %arg8[%c1_86, %c1_87, %c0_88, %c0_89], %213 {strides = array<i32>} : memref<2x4x32x128xf32, #tpu.memory_space<vmem>>, vector<1x1x25x25xf32>,
    %cst_90 = arith.constant dense<0.000000e+00> : vector<25x8xf32>
    %214 = tpu.matmul %210, %198, %cst_90 {dimension_numbers = #tpu.dot_dimension_numbers<[1], [0], [0], [1], [0, 0, 1, 1], [], []>} : vector<25x25xf32>, vector<25x8xf32>, vector<25x8xf32> -> vector<25x8xf32>
    %215 = vector.extract_strided_slice %176 {offsets = [0, 16], sizes = [25, 8], strides = [1, 1]} : vector<25x96xf32> to vector<25x8xf32>
    %216 = vector.extract_strided_slice %176 {offsets = [0, 48], sizes = [25, 8], strides = [1, 1]} : vector<25x96xf32> to vector<25x8xf32>
    %217 = vector.extract_strided_slice %176 {offsets = [0, 80], sizes = [25, 8], strides = [1, 1]} : vector<25x96xf32> to vector<25x8xf32>
    %218 = tpu.transpose %216, [1, 0] : vector<25x8xf32> -> vector<8x25xf32>
    %cst_91 = arith.constant dense<0.000000e+00> : vector<25x25xf32>
    %219 = tpu.matmul %215, %218, %cst_91 {dimension_numbers = #tpu.dot_dimension_numbers<[1], [0], [0], [1], [0, 0, 1, 1], [], []>} : vector<25x8xf32>, vector<8x25xf32>, vector<25x25xf32> -> vector<25x25xf32>
    %cst_92 = arith.constant dense<0xFF800000> : vector<25xf32>
    %220 = vector.multi_reduction <maximumf>, %219, %cst_92 [1] : vector<25x25xf32> to vector<25xf32>
    %221 = vector.shape_cast %220 : vector<25xf32> to vector<25x1xf32>
    %222 = vector.broadcast %221 : vector<25x1xf32> to vector<25x25xf32>
    %223 = arith.subf %219, %222 : vector<25x25xf32>
    %224 = math.exp %223 : vector<25x25xf32>
    %cst_93 = arith.constant dense<0.000000e+00> : vector<25xf32>
    %225 = vector.multi_reduction <add>, %224, %cst_93 [1] : vector<25x25xf32> to vector<25xf32>
    %226 = vector.shape_cast %225 : vector<25xf32> to vector<25x1xf32>
    %227 = tpu.reciprocal %226 : vector<25x1xf32> -> vector<25x1xf32>
    %228 = vector.broadcast %227 : vector<25x1xf32> to vector<25x25xf32>
    %229 = arith.mulf %224, %228 : vector<25x25xf32>
    %c1_94 = arith.constant 1 : index
    %c2_95 = arith.constant 2 : index
    %c0_96 = arith.constant 0 : index
    %c0_97 = arith.constant 0 : index
    %230 = vector.load %arg8[%c1_94, %c2_95, %c0_96, %c0_97] : memref<2x4x32x128xf32, #tpu.memory_space<vmem>>, vector<1x1x25x25xf32>
    %231 = vector.shape_cast %230 : vector<1x1x25x25xf32> to vector<25x25xf32>
    %232 = vector.shape_cast %229 : vector<25x25xf32> to vector<1x1x25x25xf32>
    tpu.vector_store %arg8[%c1_94, %c2_95, %c0_96, %c0_97], %232 {strides = array<i32>} : memref<2x4x32x128xf32, #tpu.memory_space<vmem>>, vector<1x1x25x25xf32>,
    %cst_98 = arith.constant dense<0.000000e+00> : vector<25x8xf32>
    %233 = tpu.matmul %229, %217, %cst_98 {dimension_numbers = #tpu.dot_dimension_numbers<[1], [0], [0], [1], [0, 0, 1, 1], [], []>} : vector<25x25xf32>, vector<25x8xf32>, vector<25x8xf32> -> vector<25x8xf32>
    %234 = vector.extract_strided_slice %176 {offsets = [0, 24], sizes = [25, 8], strides = [1, 1]} : vector<25x96xf32> to vector<25x8xf32>
    %235 = vector.extract_strided_slice %176 {offsets = [0, 56], sizes = [25, 8], strides = [1, 1]} : vector<25x96xf32> to vector<25x8xf32>
    %236 = vector.extract_strided_slice %176 {offsets = [0, 88], sizes = [25, 8], strides = [1, 1]} : vector<25x96xf32> to vector<25x8xf32>
    %237 = tpu.transpose %235, [1, 0] : vector<25x8xf32> -> vector<8x25xf32>
    %cst_99 = arith.constant dense<0.000000e+00> : vector<25x25xf32>
    %238 = tpu.matmul %234, %237, %cst_99 {dimension_numbers = #tpu.dot_dimension_numbers<[1], [0], [0], [1], [0, 0, 1, 1], [], []>} : vector<25x8xf32>, vector<8x25xf32>, vector<25x25xf32> -> vector<25x25xf32>
    %cst_100 = arith.constant dense<0xFF800000> : vector<25xf32>
    %239 = vector.multi_reduction <maximumf>, %238, %cst_100 [1] : vector<25x25xf32> to vector<25xf32>
    %240 = vector.shape_cast %239 : vector<25xf32> to vector<25x1xf32>
    %241 = vector.broadcast %240 : vector<25x1xf32> to vector<25x25xf32>
    %242 = arith.subf %238, %241 : vector<25x25xf32>
    %243 = math.exp %242 : vector<25x25xf32>
    %cst_101 = arith.constant dense<0.000000e+00> : vector<25xf32>
    %244 = vector.multi_reduction <add>, %243, %cst_101 [1] : vector<25x25xf32> to vector<25xf32>
    %245 = vector.shape_cast %244 : vector<25xf32> to vector<25x1xf32>
    %246 = tpu.reciprocal %245 : vector<25x1xf32> -> vector<25x1xf32>
    %247 = vector.broadcast %246 : vector<25x1xf32> to vector<25x25xf32>
    %248 = arith.mulf %243, %247 : vector<25x25xf32>
    %c1_102 = arith.constant 1 : index
    %c3_103 = arith.constant 3 : index
    %c0_104 = arith.constant 0 : index
    %c0_105 = arith.constant 0 : index
    %249 = vector.load %arg8[%c1_102, %c3_103, %c0_104, %c0_105] : memref<2x4x32x128xf32, #tpu.memory_space<vmem>>, vector<1x1x25x25xf32>
    %250 = vector.shape_cast %249 : vector<1x1x25x25xf32> to vector<25x25xf32>
    %251 = vector.shape_cast %248 : vector<25x25xf32> to vector<1x1x25x25xf32>
    tpu.vector_store %arg8[%c1_102, %c3_103, %c0_104, %c0_105], %251 {strides = array<i32>} : memref<2x4x32x128xf32, #tpu.memory_space<vmem>>, vector<1x1x25x25xf32>,
    %cst_106 = arith.constant dense<0.000000e+00> : vector<25x8xf32>
    %252 = tpu.matmul %248, %236, %cst_106 {dimension_numbers = #tpu.dot_dimension_numbers<[1], [0], [0], [1], [0, 0, 1, 1], [], []>} : vector<25x25xf32>, vector<25x8xf32>, vector<25x8xf32> -> vector<25x8xf32>
    %253 = tpu.concatenate %195, %214, %233, %252 in 1 : vector<25x8xf32>, vector<25x8xf32>, vector<25x8xf32>, vector<25x8xf32> -> vector<25x32xf32>
    %cst_107 = arith.constant dense<0.000000e+00> : vector<25x32xf32>
    %254 = tpu.matmul %253, %159, %cst_107 {dimension_numbers = #tpu.dot_dimension_numbers<[1], [0], [0], [1], [0, 0, 1, 1], [], []>} : vector<25x32xf32>, vector<32x32xf32>, vector<25x32xf32> -> vector<25x32xf32>
    %255 = vector.broadcast %167 : vector<1x32xf32> to vector<25x32xf32>
    %256 = arith.addf %254, %255 : vector<25x32xf32>
    %257 = arith.addf %155, %256 : vector<25x32xf32>
    %cst_108 = arith.constant dense<0.000000e+00> : vector<25xf32>
    %258 = vector.multi_reduction <add>, %257, %cst_108 [1] : vector<25x32xf32> to vector<25xf32>
    %259 = vector.shape_cast %258 : vector<25xf32> to vector<25x1xf32>
    %cst_109 = arith.constant 3.200000e+01 : f32
    %260 = vector.broadcast %cst_109 : f32 to vector<25x1xf32>
    %261 = arith.divf %259, %260 : vector<25x1xf32>
    %262 = vector.broadcast %261 : vector<25x1xf32> to vector<25x32xf32>
    %263 = arith.subf %257, %262 : vector<25x32xf32>
    %264 = arith.mulf %263, %263 : vector<25x32xf32>
    %cst_110 = arith.constant dense<0.000000e+00> : vector<25xf32>
    %265 = vector.multi_reduction <add>, %264, %cst_110 [1] : vector<25x32xf32> to vector<25xf32>
    %266 = vector.shape_cast %265 : vector<25xf32> to vector<25x1xf32>
    %cst_111 = arith.constant 3.200000e+01 : f32
    %267 = vector.broadcast %cst_111 : f32 to vector<25x1xf32>
    %268 = arith.divf %266, %267 : vector<25x1xf32>
    %269 = vector.broadcast %261 : vector<25x1xf32> to vector<25x32xf32>
    %270 = arith.subf %257, %269 : vector<25x32xf32>
    %cst_112 = arith.constant 9.99999974E-6 : f32
    %271 = vector.broadcast %cst_112 : f32 to vector<25x1xf32>
    %272 = arith.addf %268, %271 : vector<25x1xf32>
    %273 = math.rsqrt %272 : vector<25x1xf32>
    %274 = vector.broadcast %273 : vector<25x1xf32> to vector<25x32xf32>
    %275 = arith.mulf %270, %274 : vector<25x32xf32>
    %276 = vector.broadcast %168 : vector<1x32xf32> to vector<25x32xf32>
    %277 = arith.mulf %275, %276 : vector<25x32xf32>
    %278 = vector.broadcast %169 : vector<1x32xf32> to vector<25x32xf32>
    %279 = arith.addf %277, %278 : vector<25x32xf32>
    %cst_113 = arith.constant dense<0.000000e+00> : vector<25x64xf32>
    %280 = tpu.matmul %279, %161, %cst_113 {dimension_numbers = #tpu.dot_dimension_numbers<[1], [0], [0], [1], [0, 0, 1, 1], [], []>} : vector<25x32xf32>, vector<32x64xf32>, vector<25x64xf32> -> vector<25x64xf32>
    %281 = vector.broadcast %170 : vector<1x64xf32> to vector<25x64xf32>
    %282 = arith.addf %280, %281 : vector<25x64xf32>
    %cst_114 = arith.constant 0.000000e+00 : f32
    %283 = vector.broadcast %cst_114 : f32 to vector<25x64xf32>
    %284 = arith.maximumf %282, %283 : vector<25x64xf32>
    %cst_115 = arith.constant dense<0.000000e+00> : vector<25x32xf32>
    %285 = tpu.matmul %284, %163, %cst_115 {dimension_numbers = #tpu.dot_dimension_numbers<[1], [0], [0], [1], [0, 0, 1, 1], [], []>} : vector<25x64xf32>, vector<64x32xf32>, vector<25x32xf32> -> vector<25x32xf32>
    %286 = vector.broadcast %171 : vector<1x32xf32> to vector<25x32xf32>
    %287 = arith.addf %285, %286 : vector<25x32xf32>
    %288 = arith.addf %279, %287 : vector<25x32xf32>
    %cst_116 = arith.constant dense<0.000000e+00> : vector<25xf32>
    %289 = vector.multi_reduction <add>, %288, %cst_116 [1] : vector<25x32xf32> to vector<25xf32>
    %290 = vector.shape_cast %289 : vector<25xf32> to vector<25x1xf32>
    %cst_117 = arith.constant 3.200000e+01 : f32
    %291 = vector.broadcast %cst_117 : f32 to vector<25x1xf32>
    %292 = arith.divf %290, %291 : vector<25x1xf32>
    %293 = vector.broadcast %292 : vector<25x1xf32> to vector<25x32xf32>
    %294 = arith.subf %288, %293 : vector<25x32xf32>
    %295 = arith.mulf %294, %294 : vector<25x32xf32>
    %cst_118 = arith.constant dense<0.000000e+00> : vector<25xf32>
    %296 = vector.multi_reduction <add>, %295, %cst_118 [1] : vector<25x32xf32> to vector<25xf32>
    %297 = vector.shape_cast %296 : vector<25xf32> to vector<25x1xf32>
    %cst_119 = arith.constant 3.200000e+01 : f32
    %298 = vector.broadcast %cst_119 : f32 to vector<25x1xf32>
    %299 = arith.divf %297, %298 : vector<25x1xf32>
    %300 = vector.broadcast %292 : vector<25x1xf32> to vector<25x32xf32>
    %301 = arith.subf %288, %300 : vector<25x32xf32>
    %cst_120 = arith.constant 9.99999974E-6 : f32
    %302 = vector.broadcast %cst_120 : f32 to vector<25x1xf32>
    %303 = arith.addf %299, %302 : vector<25x1xf32>
    %304 = math.rsqrt %303 : vector<25x1xf32>
    %305 = vector.broadcast %304 : vector<25x1xf32> to vector<25x32xf32>
    %306 = arith.mulf %301, %305 : vector<25x32xf32>
    %307 = vector.broadcast %172 : vector<1x32xf32> to vector<25x32xf32>
    %308 = arith.mulf %306, %307 : vector<25x32xf32>
    %309 = vector.broadcast %173 : vector<1x32xf32> to vector<25x32xf32>
    %310 = arith.addf %308, %309 : vector<25x32xf32>
    %311 = vector.extract_strided_slice %310 {offsets = [0, 0], sizes = [1, 32], strides = [1, 1]} : vector<25x32xf32> to vector<1x32xf32>
    %c0_121 = arith.constant 0 : index
    %c0_122 = arith.constant 0 : index
    %312 = vector.load %arg7[%c0_121, %c0_122] : memref<1x32xf32, #tpu.memory_space<vmem>>, vector<1x32xf32>
    %313 = arith.mulf %311, %312 : vector<1x32xf32>
    %cst_123 = arith.constant dense<0.000000e+00> : vector<1xf32>
    %314 = vector.multi_reduction <add>, %313, %cst_123 [1] : vector<1x32xf32> to vector<1xf32>
    %315 = vector.shape_cast %314 : vector<1xf32> to vector<1x1xf32>
    %c0_124 = arith.constant 0 : index
    %c0_125 = arith.constant 0 : index
    %316 = vector.load %arg9[%c0_124, %c0_125] : memref<1x1xf32, #tpu.memory_space<vmem>>, vector<1x1xf32>
    tpu.vector_store %arg9[%c0_124, %c0_125], %315 {strides = array<i32>} : memref<1x1xf32, #tpu.memory_space<vmem>>, vector<1x1xf32>,
    return
  }
  func.func @transform_0(%arg0: i32) -> (i32, i32) {
    %c0_i32 = arith.constant 0 : i32
    %c0_i32_0 = arith.constant 0 : i32
    %c0_i32_1 = arith.constant 0 : i32
    return %c0_i32, %c0_i32_0 : i32, i32
  }
  func.func @transform_1(%arg0: i32) -> (i32, i32, i32) {
    %c0_i32 = arith.constant 0 : i32
    %c0_i32_0 = arith.constant 0 : i32
    %c0_i32_1 = arith.constant 0 : i32
    %c0_i32_2 = arith.constant 0 : i32
    return %c0_i32, %c0_i32_0, %c0_i32_1 : i32, i32, i32
  }
  func.func @transform_2(%arg0: i32) -> (i32, i32, i32) {
    %c0_i32 = arith.constant 0 : i32
    %c0_i32_0 = arith.constant 0 : i32
    %c0_i32_1 = arith.constant 0 : i32
    %c0_i32_2 = arith.constant 0 : i32
    return %c0_i32, %c0_i32_0, %c0_i32_1 : i32, i32, i32
  }
  func.func @transform_3(%arg0: i32) -> (i32, i32, i32) {
    %c0_i32 = arith.constant 0 : i32
    %c0_i32_0 = arith.constant 0 : i32
    %c0_i32_1 = arith.constant 0 : i32
    %c0_i32_2 = arith.constant 0 : i32
    return %c0_i32, %c0_i32_0, %c0_i32_1 : i32, i32, i32
  }
  func.func @transform_4(%arg0: i32) -> (i32, i32, i32) {
    %c0_i32 = arith.constant 0 : i32
    %c0_i32_0 = arith.constant 0 : i32
    %c0_i32_1 = arith.constant 0 : i32
    %c0_i32_2 = arith.constant 0 : i32
    return %c0_i32, %c0_i32_0, %c0_i32_1 : i32, i32, i32
  }
  func.func @transform_5(%arg0: i32) -> (i32, i32, i32) {
    %c0_i32 = arith.constant 0 : i32
    %c0_i32_0 = arith.constant 0 : i32
    %c0_i32_1 = arith.constant 0 : i32
    %c0_i32_2 = arith.constant 0 : i32
    return %c0_i32, %c0_i32_0, %c0_i32_1 : i32, i32, i32
  }
  func.func @transform_6(%arg0: i32) -> (i32, i32) {
    %c0_i32 = arith.constant 0 : i32
    %c0_i32_0 = arith.constant 0 : i32
    %c0_i32_1 = arith.constant 0 : i32
    return %c0_i32, %c0_i32_0 : i32, i32
  }
  func.func @transform_7(%arg0: i32) -> (i32, i32, i32, i32) {
    %c0_i32 = arith.constant 0 : i32
    %c0_i32_0 = arith.constant 0 : i32
    %c0_i32_1 = arith.constant 0 : i32
    %c0_i32_2 = arith.constant 0 : i32
    %c0_i32_3 = arith.constant 0 : i32
    return %c0_i32, %c0_i32_0, %c0_i32_1, %c0_i32_2 : i32, i32, i32, i32
  }
  func.func @transform_8(%arg0: i32) -> (i32, i32) {
    %c0_i32 = arith.constant 0 : i32
    %c0_i32_0 = arith.constant 0 : i32
    %c0_i32_1 = arith.constant 0 : i32
    return %c0_i32, %c0_i32_0 : i32, i32
  }
}

</mosaic_0001>

<llo_original>
// kernel: transformer_forward.1
$region0: #{transformer_forward.1}
  #allocation0 [shape = 'u32[]', space=smem, size = 0x4, offset = 0x4, fixed_abs, tag = 'smem constant byte address 0x4 - core index']
  #allocation1 [shape = 'u32[144,128]{1,0:T(1,128)}', space=vmem, size = 0x12000, scoped, tag = 'internal scratch']
  %s0 = inlined_call_operand.vmem [shape: f32[25,32], index: 0, kind: input, shape index: {}]
  %s1 = inlined_call_operand.vmem [shape: f32[2,32,96], index: 1, kind: input, shape index: {}]
  %s2 = inlined_call_operand.vmem [shape: f32[2,32,32], index: 2, kind: input, shape index: {}]
  %s3 = inlined_call_operand.vmem [shape: f32[2,32,64], index: 3, kind: input, shape index: {}]
  %s4 = inlined_call_operand.vmem [shape: f32[2,64,32], index: 4, kind: input, shape index: {}]
  %s5 = inlined_call_operand.vmem [shape: f32[2,8,128], index: 5, kind: input, shape index: {}]
  %s6 = inlined_call_operand.hbm [shape: f32[1,32], index: 6, kind: input, shape index: {}]
  %s7 = inlined_call_operand.vmem [shape: f32[2,4,32,128], index: 7, kind: output, shape index: {0}]
  %s8 = inlined_call_operand.hbm [shape: f32[1,1], index: 8, kind: output, shape index: {1}]
  %9 = xla_tuple %s7, %s8
  %s10 = sld [smem:[#allocation0]]
  $region50: #{transformer_forward.1} parent=0
    _
  %s12 = ssub.s32 1, %s10
  %s13 = scalar_select 0, %s12, %s10
  $region1: #{transformer_forward.1} parent=0
    #allocation2 [shape = 'u8[512]{0}', space=vmem, size = 0x400, scoped, tag = 'input window, operand 6, single buffered']
    #allocation3 [shape = 's32[1]{0}', space=sflag, size = 0x4, scoped, tag = 'scoped memory for transformer_forward.1']
    #allocation4 [shape = 's32[1]{0}', space=sflag, size = 0x4, scoped, tag = 'scoped memory for transformer_forward.1']
    #allocation5 [shape = 'u8[512]{0}', space=vmem, size = 0x400, scoped, tag = 'output window, operand 1, single buffered']
    %14 = vsyncpa [#allocation3], 0
    %15 = vsyncpa [#allocation4], 0
    // Predicated region
    $region2: #{transformer_forward.1} parent=1 // pred_check
      _
    $region3: #{transformer_forward.1} parent=1 // pred_check_branch
      %17 = sbr.rel (0) target = $region5
    $region4: #{transformer_forward.1} parent=1 // pred_region
      _
    $region5: #{transformer_forward.1} parent=1 // pred_fallthru
      _
    // Predicated region
    $region6: #{transformer_forward.1} parent=1 // pred_check
      _
    $region7: #{transformer_forward.1} parent=1 // pred_check_branch
      %19 = sbr.rel (0) target = $region9
    $region8: #{transformer_forward.1} parent=1 // pred_region
      _
    $region9: #{transformer_forward.1} parent=1 // pred_fallthru
      _
    // Predicated region
    $region10: #{transformer_forward.1} parent=1 // pred_check
      _
    $region11: #{transformer_forward.1} parent=1 // pred_check_branch
      %21 = sbr.rel (0) target = $region13
    $region12: #{transformer_forward.1} parent=1 // pred_region
      _
    $region13: #{transformer_forward.1} parent=1 // pred_fallthru
      _
    // Predicated region
    $region14: #{transformer_forward.1} parent=1 // pred_check
      _
    $region15: #{transformer_forward.1} parent=1 // pred_check_branch
      %23 = sbr.rel (0) target = $region17
    $region16: #{transformer_forward.1} parent=1 // pred_region
      _
    $region17: #{transformer_forward.1} parent=1 // pred_fallthru
      _
    // Predicated region
    $region18: #{transformer_forward.1} parent=1 // pred_check
      _
    $region19: #{transformer_forward.1} parent=1 // pred_check_branch
      %25 = sbr.rel (0) target = $region21
    $region20: #{transformer_forward.1} parent=1 // pred_region
      _
    $region21: #{transformer_forward.1} parent=1 // pred_fallthru
      _
    // Predicated region
    $region22: #{transformer_forward.1} parent=1 // pred_check
      _
    $region23: #{transformer_forward.1} parent=1 // pred_check_branch
      %27 = sbr.rel (0) target = $region25
    $region24: #{transformer_forward.1} parent=1 // pred_region
      _
    $region25: #{transformer_forward.1} parent=1 // pred_fallthru
      _
    // Predicated region
    $region26: #{transformer_forward.1} parent=1 // pred_check
      _
    $region27: #{transformer_forward.1} parent=1 // pred_check_branch
      %29 = sbr.rel (0) target = $region29
    $region28: #{transformer_forward.1} parent=1 // pred_region
      %s31 = ssub.s32 16, 16
      %32 = vsyncadd [#allocation3], %s31
      %s34 = sshll.u32 [#allocation2], 4
      %s35 = int_to_ptr.vmem [resolvable:$true] %s34
      %37 = dma.hbm_to_vmem [thread:$0]  %s6, 16, %s35, [#allocation3]
    $region29: #{transformer_forward.1} parent=1 // pred_fallthru
      _
    // Predicated region
    $region30: #{transformer_forward.1} parent=1 // pred_check
      _
    $region31: #{transformer_forward.1} parent=1 // pred_check_branch
      %39 = sbr.rel (0) target = $region33
    $region32: #{transformer_forward.1} parent=1 // pred_region
      %40 = dma.done [#allocation3], 16
    $region33: #{transformer_forward.1} parent=1 // pred_fallthru
      _
    %v41 = vld [vmem:[%s0] sm:$0xff]
    %v42 = vld [vmem:[%s0 + $0x8] sm:$0xff]
    %v43 = vld [vmem:[%s0 + $0x10] sm:$0xff]
    %v44 = vld [vmem:[%s0 + $0x18] sm:$0x1]
    %v45 = vld [vmem:[%s1] sm:$0xff]
    %v46 = vld [vmem:[%s1 + $0x8] sm:$0xff]
    %v47 = vld [vmem:[%s1 + $0x10] sm:$0xff]
    %v48 = vld [vmem:[%s1 + $0x18] sm:$0xff]
    %v49 = vld [vmem:[%s2] sm:$0xff]
    %v50 = vld [vmem:[%s2 + $0x8] sm:$0xff]
    %v51 = vld [vmem:[%s2 + $0x10] sm:$0xff]
    %v52 = vld [vmem:[%s2 + $0x18] sm:$0xff]
    %v53 = vld [vmem:[%s3] sm:$0xff]
    %v54 = vld [vmem:[%s3 + $0x8] sm:$0xff]
    %v55 = vld [vmem:[%s3 + $0x10] sm:$0xff]
    %v56 = vld [vmem:[%s3 + $0x18] sm:$0xff]
    %v57 = vld [vmem:[%s4] sm:$0xff]
    %v58 = vld [vmem:[%s4 + $0x8] sm:$0xff]
    %v59 = vld [vmem:[%s4 + $0x10] sm:$0xff]
    %v60 = vld [vmem:[%s4 + $0x18] sm:$0xff]
    %v61 = vld [vmem:[%s4 + $0x20] sm:$0xff]
    %v62 = vld [vmem:[%s4 + $0x28] sm:$0xff]
    %v63 = vld [vmem:[%s4 + $0x30] sm:$0xff]
    %v64 = vld [vmem:[%s4 + $0x38] sm:$0xff]
    %v65 = vld [vmem:[%s5] sm:$0xff]
    %v66 = vlaneseq
    %v67 = vshrl.u32 %v66, 7
    %v68 = vsub.s32 0, %v67
    %v69 = vrot.slane %v65, %v68
    %vm70 = vcmask 261120
    %v72 = vsel %vm70, %v41, 0
    %v75 = vsel %vm70, %v42, 0
    %v78 = vsel %vm70, %v43, 0
    %v81 = vsel %vm70, %v44, 0
    %83 = vmatprep.subr.mxu0 0.0
    %84 = vmatpush1.msra.mxu0 %v45
    %85 = vmatprep.subr.mxu0 0.0
    %86 = vmatpush1.msra.mxu0 %v46
    %87 = vmatprep.subr.mxu0 0.0
    %88 = vmatpush1.msra.mxu0 %v47
    %89 = vmatprep.subr.mxu0 0.0
    %90 = vmatpush1.msra.mxu0 %v48
    %91 = vmatprep.subr.mxu0 0.0
    %92 = vmatpush1.msra.mxu0 0.0
    %93 = vmatprep.subr.mxu0 0.0
    %94 = vmatpush1.msra.mxu0 0.0
    %95 = vmatprep.subr.mxu0 0.0
    %96 = vmatpush1.msra.mxu0 0.0
    %97 = vmatprep.subr.mxu0 0.0
    %98 = vmatpush1.msra.mxu0 0.0
    %99 = vmatprep.subr.mxu0 0.0
    %100 = vmatpush1.msra.mxu0 0.0
    %101 = vmatprep.subr.mxu0 0.0
    %102 = vmatpush1.msra.mxu0 0.0
    %103 = vmatprep.subr.mxu0 0.0
    %104 = vmatpush1.msra.mxu0 0.0
    %105 = vmatprep.subr.mxu0 0.0
    %106 = vmatpush1.msra.mxu0 0.0
    %107 = vmatprep.subr.mxu0 0.0
    %108 = vmatpush1.msra.mxu0 0.0
    %109 = vmatprep.subr.mxu0 0.0
    %110 = vmatpush1.msra.mxu0 0.0
    %111 = vmatprep.subr.mxu0 0.0
    %112 = vmatpush1.msra.mxu0 0.0
    %113 = vmatprep.subr.mxu0 0.0
    %114 = vmatpush1.msra.mxu0 0.0
    %115 = vmatprep.subr.mxu0 0.0
    %116 = vmatpush1.msra.mxu0 0.0
    %117 = vmatprep.subr.mxu0 0.0
    %118 = vmatpush1.msra.mxu0 0.0
    %119 = vmatprep.subr.mxu0 0.0
    %120 = vmatpush1.msra.mxu0 0.0
    %121 = vmatprep.subr.mxu0 0.0
    %122 = vmatpush1.msra.mxu0 0.0
    %123 = vmatprep.subr.mxu0 0.0
    %124 = vmatpush1.msra.mxu0 0.0
    %125 = vmatprep.subr.mxu0 0.0
    %126 = vmatpush1.msra.mxu0 0.0
    %127 = vmatprep.subr.mxu0 0.0
    %128 = vmatpush1.msra.mxu0 0.0
    %129 = vmatprep.subr.mxu0 0.0
    %130 = vmatpush1.msra.mxu0 0.0
    %131 = vmatprep.subr.mxu0 0.0
    %132 = vmatpush1.msra.mxu0 0.0
    %133 = vmatprep.subr.mxu0 0.0
    %134 = vmatpush1.msra.mxu0 0.0
    %135 = vmatprep.subr.mxu0 0.0
    %136 = vmatpush1.msra.mxu0 0.0
    %137 = vmatprep.subr.mxu0 0.0
    %138 = vmatpush1.msra.mxu0 0.0
    %139 = vmatprep.subr.mxu0 0.0
    %140 = vmatpush1.msra.mxu0 0.0
    %141 = vmatprep.subr.mxu0 0.0
    %142 = vmatpush1.msra.mxu0 0.0
    %143 = vmatprep.subr.mxu0 0.0
    %144 = vmatpush1.msra.mxu0 0.0
    %145 = vmatprep.subr.mxu0 0.0
    %146 = vmatpush1.msra.mxu0 0.0
    %147 = vmatprep.mubr.f32.mxu0 0.0
    %148 = vmatmul.mubr.f32.gmra.mrb[0].mxu0 %v72
    %v149 = vpop.f32.mrb[0].mxu0
    %v150 = vadd.f32 %v69, %v149
    %v151 = vpop.f32.mrb[0].mxu0
    %152 = vmatprep.mubr.f32.mxu0 0.0
    %153 = vmatmul.mubr.f32.gmra.mrb[0].mxu0 %v75
    %v154 = vpop.f32.mrb[0].mxu0
    %v155 = vadd.f32 %v69, %v154
    %v156 = vpop.f32.mrb[0].mxu0
    %157 = vmatprep.mubr.f32.mxu0 0.0
    %158 = vmatmul.mubr.f32.gmra.mrb[0].mxu0 %v78
    %v159 = vpop.f32.mrb[0].mxu0
    %v160 = vadd.f32 %v69, %v159
    %v161 = vpop.f32.mrb[0].mxu0
    %162 = vmatprep.mubr.f32.mxu0 0.0
    %163 = vmatmul.mubr.f32.gmra.mrb[0].mxu0 %v81
    %v164 = vpop.f32.mrb[0].mxu0
    %v165 = vadd.f32 %v69, %v164
    %v166 = vpop.f32.mrb[0].mxu0
    %167 = vdwg.mxu0
    %172 = vrot.lane.b32.xlu0 %v150, 96
    %v173 = vpop.permute.xlu0 %172
    %174 = vrot.lane.b32.xlu0 %v155, 96
    %v175 = vpop.permute.xlu0 %174
    %176 = vrot.lane.b32.xlu0 %v160, 96
    %v177 = vpop.permute.xlu0 %176
    %178 = vrot.lane.b32.xlu0 %v165, 96
    %v179 = vpop.permute.xlu0 %178
    %vm180 = vcmask 64512
    %v181 = vsel %vm180, %v150, 0
    %v183 = vsel %vm180, %v155, 0
    %v185 = vsel %vm180, %v160, 0
    %v187 = vsel %vm180, %v165, 0
    %v189 = vsel %vm180, %v173, 0
    %v191 = vsel %vm180, %v175, 0
    %v193 = vsel %vm180, %v177, 0
    %v195 = vsel %vm180, %v179, 0
    %197 = vmatprep.subr.mxu0 0.0
    %198 = vmatpush1.xpose.msra.mxu0 %v189
    %199 = vmatprep.subr.mxu0 0.0
    %200 = vmatpush1.xpose.msra.mxu0 %v191
    %201 = vmatprep.subr.mxu0 0.0
    %202 = vmatpush1.xpose.msra.mxu0 %v193
    %203 = vmatprep.subr.mxu0 0.0
    %204 = vmatpush1.xpose.msra.mxu0 %v195
    %205 = vmatprep.subr.mxu0 0.0
    %206 = vmatpush1.xpose.msra.mxu0 0.0
    %207 = vmatprep.subr.mxu0 0.0
    %208 = vmatpush1.xpose.msra.mxu0 0.0
    %209 = vmatprep.subr.mxu0 0.0
    %210 = vmatpush1.xpose.msra.mxu0 0.0
    %211 = vmatprep.subr.mxu0 0.0
    %212 = vmatpush1.xpose.msra.mxu0 0.0
    %213 = vmatprep.subr.mxu0 0.0
    %214 = vmatpush1.xpose.msra.mxu0 0.0
    %215 = vmatprep.subr.mxu0 0.0
    %216 = vmatpush1.xpose.msra.mxu0 0.0
    %217 = vmatprep.subr.mxu0 0.0
    %218 = vmatpush1.xpose.msra.mxu0 0.0
    %219 = vmatprep.subr.mxu0 0.0
    %220 = vmatpush1.xpose.msra.mxu0 0.0
    %221 = vmatprep.subr.mxu0 0.0
    %222 = vmatpush1.xpose.msra.mxu0 0.0
    %223 = vmatprep.subr.mxu0 0.0
    %224 = vmatpush1.xpose.msra.mxu0 0.0
    %225 = vmatprep.subr.mxu0 0.0
    %226 = vmatpush1.xpose.msra.mxu0 0.0
    %227 = vmatprep.subr.mxu0 0.0
    %228 = vmatpush1.xpose.msra.mxu0 0.0
    %229 = vmatprep.subr.mxu0 0.0
    %230 = vmatpush1.xpose.msra.mxu0 0.0
    %231 = vmatprep.subr.mxu0 0.0
    %232 = vmatpush1.xpose.msra.mxu0 0.0
    %233 = vmatprep.subr.mxu0 0.0
    %234 = vmatpush1.xpose.msra.mxu0 0.0
    %235 = vmatprep.subr.mxu0 0.0
    %236 = vmatpush1.xpose.msra.mxu0 0.0
    %237 = vmatprep.subr.mxu0 0.0
    %238 = vmatpush1.xpose.msra.mxu0 0.0
    %239 = vmatprep.subr.mxu0 0.0
    %240 = vmatpush1.xpose.msra.mxu0 0.0
    %241 = vmatprep.subr.mxu0 0.0
    %242 = vmatpush1.xpose.msra.mxu0 0.0
    %243 = vmatprep.subr.mxu0 0.0
    %244 = vmatpush1.xpose.msra.mxu0 0.0
    %245 = vmatprep.subr.mxu0 0.0
    %246 = vmatpush1.xpose.msra.mxu0 0.0
    %247 = vmatprep.subr.mxu0 0.0
    %248 = vmatpush1.xpose.msra.mxu0 0.0
    %249 = vmatprep.subr.mxu0 0.0
    %250 = vmatpush1.xpose.msra.mxu0 0.0
    %251 = vmatprep.subr.mxu0 0.0
    %252 = vmatpush1.xpose.msra.mxu0 0.0
    %253 = vmatprep.subr.mxu0 0.0
    %254 = vmatpush1.xpose.msra.mxu0 0.0
    %255 = vmatprep.subr.mxu0 0.0
    %256 = vmatpush1.xpose.msra.mxu0 0.0
    %257 = vmatprep.subr.mxu0 0.0
    %258 = vmatpush1.xpose.msra.mxu0 0.0
    %259 = vmatprep.subr.mxu0 0.0
    %260 = vmatpush1.xpose.msra.mxu0 0.0
    %261 = vmatprep.mubr.f32.mxu0 0.0
    %262 = vmatmul.mubr.f32.gmra.mrb[0].mxu0 %v181
    %v263 = vpop.f32.mrb[0].mxu0
    %v264 = vadd.f32 0.0, %v263
    %v265 = vpop.f32.mrb[0].mxu0
    %266 = vmatprep.mubr.f32.mxu0 0.0
    %267 = vmatmul.mubr.f32.gmra.mrb[0].mxu0 %v183
    %v268 = vpop.f32.mrb[0].mxu0
    %v269 = vadd.f32 0.0, %v268
    %v270 = vpop.f32.mrb[0].mxu0
    %271 = vmatprep.mubr.f32.mxu0 0.0
    %272 = vmatmul.mubr.f32.gmra.mrb[0].mxu0 %v185
    %v273 = vpop.f32.mrb[0].mxu0
    %v274 = vadd.f32 0.0, %v273
    %v275 = vpop.f32.mrb[0].mxu0
    %276 = vmatprep.mubr.f32.mxu0 0.0
    %277 = vmatmul.mubr.f32.gmra.mrb[0].mxu0 %v187
    %v278 = vpop.f32.mrb[0].mxu0
    %v279 = vadd.f32 0.0, %v278
    %v280 = vpop.f32.mrb[0].mxu0
    %281 = vdwg.mxu0
    %vm282 = vcmask 203776
    %v283 = vsel %vm282, %v264, -inf
    %284 = vmax.xlane.f32.xlu0 %v283
    %v285 = vpop.xlane.xlu0 %284
    %v286 = vsel %vm282, %v269, -inf
    %287 = vmax.xlane.f32.xlu0 %v286
    %v288 = vpop.xlane.xlu0 %287
    %v289 = vsel %vm282, %v274, -inf
    %290 = vmax.xlane.f32.xlu0 %v289
    %v291 = vpop.xlane.xlu0 %290
    %vm292 = vcmask 196608
    %v293 = vsel %vm292, %v279, -inf
    %294 = vmax.xlane.f32.xlu0 %v293
    %v295 = vpop.xlane.xlu0 %294
    %v296 = vsub.f32 %v264, %v285
    %v297 = vsub.f32 %v269, %v288
    %v298 = vsub.f32 %v274, %v291
    %v299 = vsub.f32 %v279, %v295
    %v300 = vmul.f32 %v296, 1.442695
    %v301 = vpow.pop %v300
    %v302 = vmul.f32 %v297, 1.442695
    %v303 = vpow.pop %v302
    %v304 = vmul.f32 %v298, 1.442695
    %v305 = vpow.pop %v304
    %v306 = vmul.f32 %v299, 1.442695
    %v307 = vpow.pop %v306
    %v308 = vsel %vm282, %v301, 0.0
    %309 = vadd.xlane.f32.xlu0 %v308
    %v310 = vpop.xlane.xlu0 %309
    %v311 = vsel %vm282, %v303, 0.0
    %312 = vadd.xlane.f32.xlu0 %v311
    %v313 = vpop.xlane.xlu0 %312
    %v314 = vsel %vm282, %v305, 0.0
    %315 = vadd.xlane.f32.xlu0 %v314
    %v316 = vpop.xlane.xlu0 %315
    %v317 = vsel %vm292, %v307, 0.0
    %318 = vadd.xlane.f32.xlu0 %v317
    %v319 = vpop.xlane.xlu0 %318
    %v320 = vrcp.pop %v310
    %v321 = vrcp.pop %v313
    %v322 = vrcp.pop %v316
    %v323 = vrcp.pop %v319
    %v324 = vmul.f32 %v301, %v320
    %v325 = vmul.f32 %v303, %v321
    %v326 = vmul.f32 %v305, %v322
    %v327 = vmul.f32 %v307, %v323
    %328 = vst.msk [vmem:[%s7] sm:$0xff] %vm282, %v324
    %329 = vst.msk [vmem:[%s7 + $0x8] sm:$0xff] %vm282, %v325
    %330 = vst.msk [vmem:[%s7 + $0x10] sm:$0xff] %vm282, %v326
    %331 = vst.msk [vmem:[%s7 + $0x18] sm:$0x1] %vm292, %v327
    %332 = vrot.lane.b32.xlu0 %v150, 64
    %v333 = vpop.permute.xlu0 %332
    %334 = vrot.lane.b32.xlu0 %v155, 64
    %v335 = vpop.permute.xlu0 %334
    %336 = vrot.lane.b32.xlu0 %v160, 64
    %v337 = vpop.permute.xlu0 %336
    %338 = vrot.lane.b32.xlu0 %v165, 64
    %v339 = vpop.permute.xlu0 %338
    %v344 = vsel %vm282, %v324, 0
    %v347 = vsel %vm282, %v325, 0
    %v350 = vsel %vm282, %v326, 0
    %v353 = vsel %vm282, %v327, 0
    %vm355 = vcmask 1040384
    %v356 = vsel %vm355, %v339, 0
    %358 = vmatprep.subr.mxu0 0.0
    %359 = vmatpush1.msra.mxu0 %v333
    %360 = vmatprep.subr.mxu0 0.0
    %361 = vmatpush1.msra.mxu0 %v335
    %362 = vmatprep.subr.mxu0 0.0
    %363 = vmatpush1.msra.mxu0 %v337
    %364 = vmatprep.subr.mxu0 0.0
    %365 = vmatpush1.msra.mxu0 %v356
    %366 = vmatprep.subr.mxu0 0.0
    %367 = vmatpush1.msra.mxu0 0.0
    %368 = vmatprep.subr.mxu0 0.0
    %369 = vmatpush1.msra.mxu0 0.0
    %370 = vmatprep.subr.mxu0 0.0
    %371 = vmatpush1.msra.mxu0 0.0
    %372 = vmatprep.subr.mxu0 0.0
    %373 = vmatpush1.msra.mxu0 0.0
    %374 = vmatprep.subr.mxu0 0.0
    %375 = vmatpush1.msra.mxu0 0.0
    %376 = vmatprep.subr.mxu0 0.0
    %377 = vmatpush1.msra.mxu0 0.0
    %378 = vmatprep.subr.mxu0 0.0
    %379 = vmatpush1.msra.mxu0 0.0
    %380 = vmatprep.subr.mxu0 0.0
    %381 = vmatpush1.msra.mxu0 0.0
    %382 = vmatprep.subr.mxu0 0.0
    %383 = vmatpush1.msra.mxu0 0.0
    %384 = vmatprep.subr.mxu0 0.0
    %385 = vmatpush1.msra.mxu0 0.0
    %386 = vmatprep.subr.mxu0 0.0
    %387 = vmatpush1.msra.mxu0 0.0
    %388 = vmatprep.subr.mxu0 0.0
    %389 = vmatpush1.msra.mxu0 0.0
    %390 = vmatprep.subr.mxu0 0.0
    %391 = vmatpush1.msra.mxu0 0.0
    %392 = vmatprep.subr.mxu0 0.0
    %393 = vmatpush1.msra.mxu0 0.0
    %394 = vmatprep.subr.mxu0 0.0
    %395 = vmatpush1.msra.mxu0 0.0
    %396 = vmatprep.subr.mxu0 0.0
    %397 = vmatpush1.msra.mxu0 0.0
    %398 = vmatprep.subr.mxu0 0.0
    %399 = vmatpush1.msra.mxu0 0.0
    %400 = vmatprep.subr.mxu0 0.0
    %401 = vmatpush1.msra.mxu0 0.0
    %402 = vmatprep.subr.mxu0 0.0
    %403 = vmatpush1.msra.mxu0 0.0
    %404 = vmatprep.subr.mxu0 0.0
    %405 = vmatpush1.msra.mxu0 0.0
    %406 = vmatprep.subr.mxu0 0.0
    %407 = vmatpush1.msra.mxu0 0.0
    %408 = vmatprep.subr.mxu0 0.0
    %409 = vmatpush1.msra.mxu0 0.0
    %410 = vmatprep.subr.mxu0 0.0
    %411 = vmatpush1.msra.mxu0 0.0
    %412 = vmatprep.subr.mxu0 0.0
    %413 = vmatpush1.msra.mxu0 0.0
    %414 = vmatprep.subr.mxu0 0.0
    %415 = vmatpush1.msra.mxu0 0.0
    %416 = vmatprep.subr.mxu0 0.0
    %417 = vmatpush1.msra.mxu0 0.0
    %418 = vmatprep.subr.mxu0 0.0
    %419 = vmatpush1.msra.mxu0 0.0
    %420 = vmatprep.subr.mxu0 0.0
    %421 = vmatpush1.msra.mxu0 0.0
    %422 = vmatprep.mubr.f32.mxu0 0.0
    %423 = vmatmul.mubr.f32.gmra.mrb[0].mxu0 %v344
    %v424 = vpop.f32.mrb[0].mxu0
    %v425 = vadd.f32 0.0, %v424
    %v426 = vpop.f32.mrb[0].mxu0
    %427 = vmatprep.mubr.f32.mxu0 0.0
    %428 = vmatmul.mubr.f32.gmra.mrb[0].mxu0 %v347
    %v429 = vpop.f32.mrb[0].mxu0
    %v430 = vadd.f32 0.0, %v429
    %v431 = vpop.f32.mrb[0].mxu0
    %432 = vmatprep.mubr.f32.mxu0 0.0
    %433 = vmatmul.mubr.f32.gmra.mrb[0].mxu0 %v350
    %v434 = vpop.f32.mrb[0].mxu0
    %v435 = vadd.f32 0.0, %v434
    %v436 = vpop.f32.mrb[0].mxu0
    %437 = vmatprep.mubr.f32.mxu0 0.0
    %438 = vmatmul.mubr.f32.gmra.mrb[0].mxu0 %v353
    %v439 = vpop.f32.mrb[0].mxu0
    %v440 = vadd.f32 0.0, %v439
    %v441 = vpop.f32.mrb[0].mxu0
    %442 = vdwg.mxu0
    %443 = vrot.lane.b32.xlu0 %v150, 120
    %v444 = vpop.permute.xlu0 %443
    %445 = vrot.lane.b32.xlu0 %v155, 120
    %v446 = vpop.permute.xlu0 %445
    %447 = vrot.lane.b32.xlu0 %v160, 120
    %v448 = vpop.permute.xlu0 %447
    %449 = vrot.lane.b32.xlu0 %v165, 120
    %v450 = vpop.permute.xlu0 %449
    %451 = vrot.lane.b32.xlu0 %v150, 88
    %v452 = vpop.permute.xlu0 %451
    %453 = vrot.lane.b32.xlu0 %v155, 88
    %v454 = vpop.permute.xlu0 %453
    %455 = vrot.lane.b32.xlu0 %v160, 88
    %v456 = vpop.permute.xlu0 %455
    %457 = vrot.lane.b32.xlu0 %v165, 88
    %v458 = vpop.permute.xlu0 %457
    %v459 = vsel %vm180, %v444, 0
    %v461 = vsel %vm180, %v446, 0
    %v463 = vsel %vm180, %v448, 0
    %v465 = vsel %vm180, %v450, 0
    %v467 = vsel %vm180, %v452, 0
    %v469 = vsel %vm180, %v454, 0
    %v471 = vsel %vm180, %v456, 0
    %v473 = vsel %vm180, %v458, 0
    %475 = vmatprep.subr.mxu0 0.0
    %476 = vmatpush1.xpose.msra.mxu0 %v467
    %477 = vmatprep.subr.mxu0 0.0
    %478 = vmatpush1.xpose.msra.mxu0 %v469
    %479 = vmatprep.subr.mxu0 0.0
    %480 = vmatpush1.xpose.msra.mxu0 %v471
    %481 = vmatprep.subr.mxu0 0.0
    %482 = vmatpush1.xpose.msra.mxu0 %v473
    %483 = vmatprep.subr.mxu0 0.0
    %484 = vmatpush1.xpose.msra.mxu0 0.0
    %485 = vmatprep.subr.mxu0 0.0
    %486 = vmatpush1.xpose.msra.mxu0 0.0
    %487 = vmatprep.subr.mxu0 0.0
    %488 = vmatpush1.xpose.msra.mxu0 0.0
    %489 = vmatprep.subr.mxu0 0.0
    %490 = vmatpush1.xpose.msra.mxu0 0.0
    %491 = vmatprep.subr.mxu0 0.0
    %492 = vmatpush1.xpose.msra.mxu0 0.0
    %493 = vmatprep.subr.mxu0 0.0
    %494 = vmatpush1.xpose.msra.mxu0 0.0
    %495 = vmatprep.subr.mxu0 0.0
    %496 = vmatpush1.xpose.msra.mxu0 0.0
    %497 = vmatprep.subr.mxu0 0.0
    %498 = vmatpush1.xpose.msra.mxu0 0.0
    %499 = vmatprep.subr.mxu0 0.0
    %500 = vmatpush1.xpose.msra.mxu0 0.0
    %501 = vmatprep.subr.mxu0 0.0
    %502 = vmatpush1.xpose.msra.mxu0 0.0
    %503 = vmatprep.subr.mxu0 0.0
    %504 = vmatpush1.xpose.msra.mxu0 0.0
    %505 = vmatprep.subr.mxu0 0.0
    %506 = vmatpush1.xpose.msra.mxu0 0.0
    %507 = vmatprep.subr.mxu0 0.0
    %508 = vmatpush1.xpose.msra.mxu0 0.0
    %509 = vmatprep.subr.mxu0 0.0
    %510 = vmatpush1.xpose.msra.mxu0 0.0
    %511 = vmatprep.subr.mxu0 0.0
    %512 = vmatpush1.xpose.msra.mxu0 0.0
    %513 = vmatprep.subr.mxu0 0.0
    %514 = vmatpush1.xpose.msra.mxu0 0.0
    %515 = vmatprep.subr.mxu0 0.0
    %516 = vmatpush1.xpose.msra.mxu0 0.0
    %517 = vmatprep.subr.mxu0 0.0
    %518 = vmatpush1.xpose.msra.mxu0 0.0
    %519 = vmatprep.subr.mxu0 0.0
    %520 = vmatpush1.xpose.msra.mxu0 0.0
    %521 = vmatprep.subr.mxu0 0.0
    %522 = vmatpush1.xpose.msra.mxu0 0.0
    %523 = vmatprep.subr.mxu0 0.0
    %524 = vmatpush1.xpose.msra.mxu0 0.0
    %525 = vmatprep.subr.mxu0 0.0
    %526 = vmatpush1.xpose.msra.mxu0 0.0
    %527 = vmatprep.subr.mxu0 0.0
    %528 = vmatpush1.xpose.msra.mxu0 0.0
    %529 = vmatprep.subr.mxu0 0.0
    %530 = vmatpush1.xpose.msra.mxu0 0.0
    %531 = vmatprep.subr.mxu0 0.0
    %532 = vmatpush1.xpose.msra.mxu0 0.0
    %533 = vmatprep.subr.mxu0 0.0
    %534 = vmatpush1.xpose.msra.mxu0 0.0
    %535 = vmatprep.subr.mxu0 0.0
    %536 = vmatpush1.xpose.msra.mxu0 0.0
    %537 = vmatprep.subr.mxu0 0.0
    %538 = vmatpush1.xpose.msra.mxu0 0.0
    %539 = vmatprep.mubr.f32.mxu0 0.0
    %540 = vmatmul.mubr.f32.gmra.mrb[0].mxu0 %v459
    %v541 = vpop.f32.mrb[0].mxu0
    %v542 = vadd.f32 0.0, %v541
    %v543 = vpop.f32.mrb[0].mxu0
    %544 = vmatprep.mubr.f32.mxu0 0.0
    %545 = vmatmul.mubr.f32.gmra.mrb[0].mxu0 %v461
    %v546 = vpop.f32.mrb[0].mxu0
    %v547 = vadd.f32 0.0, %v546
    %v548 = vpop.f32.mrb[0].mxu0
    %549 = vmatprep.mubr.f32.mxu0 0.0
    %550 = vmatmul.mubr.f32.gmra.mrb[0].mxu0 %v463
    %v551 = vpop.f32.mrb[0].mxu0
    %v552 = vadd.f32 0.0, %v551
    %v553 = vpop.f32.mrb[0].mxu0
    %554 = vmatprep.mubr.f32.mxu0 0.0
    %555 = vmatmul.mubr.f32.gmra.mrb[0].mxu0 %v465
    %v556 = vpop.f32.mrb[0].mxu0
    %v557 = vadd.f32 0.0, %v556
    %v558 = vpop.f32.mrb[0].mxu0
    %559 = vdwg.mxu0
    %v560 = vsel %vm282, %v542, -inf
    %561 = vmax.xlane.f32.xlu0 %v560
    %v562 = vpop.xlane.xlu0 %561
    %v563 = vsel %vm282, %v547, -inf
    %564 = vmax.xlane.f32.xlu0 %v563
    %v565 = vpop.xlane.xlu0 %564
    %v566 = vsel %vm282, %v552, -inf
    %567 = vmax.xlane.f32.xlu0 %v566
    %v568 = vpop.xlane.xlu0 %567
    %v569 = vsel %vm292, %v557, -inf
    %570 = vmax.xlane.f32.xlu0 %v569
    %v571 = vpop.xlane.xlu0 %570
    %v572 = vsub.f32 %v542, %v562
    %v573 = vsub.f32 %v547, %v565
    %v574 = vsub.f32 %v552, %v568
    %v575 = vsub.f32 %v557, %v571
    %v576 = vmul.f32 %v572, 1.442695
    %v577 = vpow.pop %v576
    %v578 = vmul.f32 %v573, 1.442695
    %v579 = vpow.pop %v578
    %v580 = vmul.f32 %v574, 1.442695
    %v581 = vpow.pop %v580
    %v582 = vmul.f32 %v575, 1.442695
    %v583 = vpow.pop %v582
    %v584 = vsel %vm282, %v577, 0.0
    %585 = vadd.xlane.f32.xlu0 %v584
    %v586 = vpop.xlane.xlu0 %585
    %v587 = vsel %vm282, %v579, 0.0
    %588 = vadd.xlane.f32.xlu0 %v587
    %v589 = vpop.xlane.xlu0 %588
    %v590 = vsel %vm282, %v581, 0.0
    %591 = vadd.xlane.f32.xlu0 %v590
    %v592 = vpop.xlane.xlu0 %591
    %v593 = vsel %vm292, %v583, 0.0
    %594 = vadd.xlane.f32.xlu0 %v593
    %v595 = vpop.xlane.xlu0 %594
    %v596 = vrcp.pop %v586
    %v597 = vrcp.pop %v589
    %v598 = vrcp.pop %v592
    %v599 = vrcp.pop %v595
    %v600 = vmul.f32 %v577, %v596
    %v601 = vmul.f32 %v579, %v597
    %v602 = vmul.f32 %v581, %v598
    %v603 = vmul.f32 %v583, %v599
    %s604 = scalar_lea.vmem %s7, 32
    %605 = vst.msk [vmem:[%s604] sm:$0xff] %vm282, %v600
    %606 = vst.msk [vmem:[%s604 + $0x8] sm:$0xff] %vm282, %v601
    %607 = vst.msk [vmem:[%s604 + $0x10] sm:$0xff] %vm282, %v602
    %608 = vst.msk [vmem:[%s604 + $0x18] sm:$0x1] %vm292, %v603
    %609 = vrot.lane.b32.xlu0 %v150, 56
    %v610 = vpop.permute.xlu0 %609
    %611 = vrot.lane.b32.xlu0 %v155, 56
    %v612 = vpop.permute.xlu0 %611
    %613 = vrot.lane.b32.xlu0 %v160, 56
    %v614 = vpop.permute.xlu0 %613
    %615 = vrot.lane.b32.xlu0 %v165, 56
    %v616 = vpop.permute.xlu0 %615
    %v621 = vsel %vm282, %v600, 0
    %v624 = vsel %vm282, %v601, 0
    %v627 = vsel %vm282, %v602, 0
    %v630 = vsel %vm282, %v603, 0
    %v632 = vsel %vm355, %v616, 0
    %634 = vmatprep.subr.mxu0 0.0
    %635 = vmatpush1.msra.mxu0 %v610
    %636 = vmatprep.subr.mxu0 0.0
    %637 = vmatpush1.msra.mxu0 %v612
    %638 = vmatprep.subr.mxu0 0.0
    %639 = vmatpush1.msra.mxu0 %v614
    %640 = vmatprep.subr.mxu0 0.0
    %641 = vmatpush1.msra.mxu0 %v632
    %642 = vmatprep.subr.mxu0 0.0
    %643 = vmatpush1.msra.mxu0 0.0
    %644 = vmatprep.subr.mxu0 0.0
    %645 = vmatpush1.msra.mxu0 0.0
    %646 = vmatprep.subr.mxu0 0.0
    %647 = vmatpush1.msra.mxu0 0.0
    %648 = vmatprep.subr.mxu0 0.0
    %649 = vmatpush1.msra.mxu0 0.0
    %650 = vmatprep.subr.mxu0 0.0
    %651 = vmatpush1.msra.mxu0 0.0
    %652 = vmatprep.subr.mxu0 0.0
    %653 = vmatpush1.msra.mxu0 0.0
    %654 = vmatprep.subr.mxu0 0.0
    %655 = vmatpush1.msra.mxu0 0.0
    %656 = vmatprep.subr.mxu0 0.0
    %657 = vmatpush1.msra.mxu0 0.0
    %658 = vmatprep.subr.mxu0 0.0
    %659 = vmatpush1.msra.mxu0 0.0
    %660 = vmatprep.subr.mxu0 0.0
    %661 = vmatpush1.msra.mxu0 0.0
    %662 = vmatprep.subr.mxu0 0.0
    %663 = vmatpush1.msra.mxu0 0.0
    %664 = vmatprep.subr.mxu0 0.0
    %665 = vmatpush1.msra.mxu0 0.0
    %666 = vmatprep.subr.mxu0 0.0
    %667 = vmatpush1.msra.mxu0 0.0
    %668 = vmatprep.subr.mxu0 0.0
    %669 = vmatpush1.msra.mxu0 0.0
    %670 = vmatprep.subr.mxu0 0.0
    %671 = vmatpush1.msra.mxu0 0.0
    %672 = vmatprep.subr.mxu0 0.0
    %673 = vmatpush1.msra.mxu0 0.0
    %674 = vmatprep.subr.mxu0 0.0
    %675 = vmatpush1.msra.mxu0 0.0
    %676 = vmatprep.subr.mxu0 0.0
    %677 = vmatpush1.msra.mxu0 0.0
    %678 = vmatprep.subr.mxu0 0.0
    %679 = vmatpush1.msra.mxu0 0.0
    %680 = vmatprep.subr.mxu0 0.0
    %681 = vmatpush1.msra.mxu0 0.0
    %682 = vmatprep.subr.mxu0 0.0
    %683 = vmatpush1.msra.mxu0 0.0
    %684 = vmatprep.subr.mxu0 0.0
    %685 = vmatpush1.msra.mxu0 0.0
    %686 = vmatprep.subr.mxu0 0.0
    %687 = vmatpush1.msra.mxu0 0.0
    %688 = vmatprep.subr.mxu0 0.0
    %689 = vmatpush1.msra.mxu0 0.0
    %690 = vmatprep.subr.mxu0 0.0
    %691 = vmatpush1.msra.mxu0 0.0
    %692 = vmatprep.subr.mxu0 0.0
    %693 = vmatpush1.msra.mxu0 0.0
    %694 = vmatprep.subr.mxu0 0.0
    %695 = vmatpush1.msra.mxu0 0.0
    %696 = vmatprep.subr.mxu0 0.0
    %697 = vmatpush1.msra.mxu0 0.0
    %698 = vmatprep.mubr.f32.mxu0 0.0
    %699 = vmatmul.mubr.f32.gmra.mrb[0].mxu0 %v621
    %v700 = vpop.f32.mrb[0].mxu0
    %v701 = vadd.f32 0.0, %v700
    %v702 = vpop.f32.mrb[0].mxu0
    %703 = vmatprep.mubr.f32.mxu0 0.0
    %704 = vmatmul.mubr.f32.gmra.mrb[0].mxu0 %v624
    %v705 = vpop.f32.mrb[0].mxu0
    %v706 = vadd.f32 0.0, %v705
    %v707 = vpop.f32.mrb[0].mxu0
    %708 = vmatprep.mubr.f32.mxu0 0.0
    %709 = vmatmul.mubr.f32.gmra.mrb[0].mxu0 %v627
    %v710 = vpop.f32.mrb[0].mxu0
    %v711 = vadd.f32 0.0, %v710
    %v712 = vpop.f32.mrb[0].mxu0
    %713 = vmatprep.mubr.f32.mxu0 0.0
    %714 = vmatmul.mubr.f32.gmra.mrb[0].mxu0 %v630
    %v715 = vpop.f32.mrb[0].mxu0
    %v716 = vadd.f32 0.0, %v715
    %v717 = vpop.f32.mrb[0].mxu0
    %718 = vdwg.mxu0
    %719 = vrot.lane.b32.xlu0 %v150, 112
    %v720 = vpop.permute.xlu0 %719
    %721 = vrot.lane.b32.xlu0 %v155, 112
    %v722 = vpop.permute.xlu0 %721
    %723 = vrot.lane.b32.xlu0 %v160, 112
    %v724 = vpop.permute.xlu0 %723
    %725 = vrot.lane.b32.xlu0 %v165, 112
    %v726 = vpop.permute.xlu0 %725
    %727 = vrot.lane.b32.xlu0 %v150, 80
    %v728 = vpop.permute.xlu0 %727
    %729 = vrot.lane.b32.xlu0 %v155, 80
    %v730 = vpop.permute.xlu0 %729
    %731 = vrot.lane.b32.xlu0 %v160, 80
    %v732 = vpop.permute.xlu0 %731
    %733 = vrot.lane.b32.xlu0 %v165, 80
    %v734 = vpop.permute.xlu0 %733
    %v735 = vsel %vm180, %v720, 0
    %v737 = vsel %vm180, %v722, 0
    %v739 = vsel %vm180, %v724, 0
    %v741 = vsel %vm180, %v726, 0
    %v743 = vsel %vm180, %v728, 0
    %v745 = vsel %vm180, %v730, 0
    %v747 = vsel %vm180, %v732, 0
    %v749 = vsel %vm180, %v734, 0
    %751 = vmatprep.subr.mxu0 0.0
    %752 = vmatpush1.xpose.msra.mxu0 %v743
    %753 = vmatprep.subr.mxu0 0.0
    %754 = vmatpush1.xpose.msra.mxu0 %v745
    %755 = vmatprep.subr.mxu0 0.0
    %756 = vmatpush1.xpose.msra.mxu0 %v747
    %757 = vmatprep.subr.mxu0 0.0
    %758 = vmatpush1.xpose.msra.mxu0 %v749
    %759 = vmatprep.subr.mxu0 0.0
    %760 = vmatpush1.xpose.msra.mxu0 0.0
    %761 = vmatprep.subr.mxu0 0.0
    %762 = vmatpush1.xpose.msra.mxu0 0.0
    %763 = vmatprep.subr.mxu0 0.0
    %764 = vmatpush1.xpose.msra.mxu0 0.0
    %765 = vmatprep.subr.mxu0 0.0
    %766 = vmatpush1.xpose.msra.mxu0 0.0
    %767 = vmatprep.subr.mxu0 0.0
    %768 = vmatpush1.xpose.msra.mxu0 0.0
    %769 = vmatprep.subr.mxu0 0.0
    %770 = vmatpush1.xpose.msra.mxu0 0.0
    %771 = vmatprep.subr.mxu0 0.0
    %772 = vmatpush1.xpose.msra.mxu0 0.0
    %773 = vmatprep.subr.mxu0 0.0
    %774 = vmatpush1.xpose.msra.mxu0 0.0
    %775 = vmatprep.subr.mxu0 0.0
    %776 = vmatpush1.xpose.msra.mxu0 0.0
    %777 = vmatprep.subr.mxu0 0.0
    %778 = vmatpush1.xpose.msra.mxu0 0.0
    %779 = vmatprep.subr.mxu0 0.0
    %780 = vmatpush1.xpose.msra.mxu0 0.0
    %781 = vmatprep.subr.mxu0 0.0
    %782 = vmatpush1.xpose.msra.mxu0 0.0
    %783 = vmatprep.subr.mxu0 0.0
    %784 = vmatpush1.xpose.msra.mxu0 0.0
    %785 = vmatprep.subr.mxu0 0.0
    %786 = vmatpush1.xpose.msra.mxu0 0.0
    %787 = vmatprep.subr.mxu0 0.0
    %788 = vmatpush1.xpose.msra.mxu0 0.0
    %789 = vmatprep.subr.mxu0 0.0
    %790 = vmatpush1.xpose.msra.mxu0 0.0
    %791 = vmatprep.subr.mxu0 0.0
    %792 = vmatpush1.xpose.msra.mxu0 0.0
    %793 = vmatprep.subr.mxu0 0.0
    %794 = vmatpush1.xpose.msra.mxu0 0.0
    %795 = vmatprep.subr.mxu0 0.0
    %796 = vmatpush1.xpose.msra.mxu0 0.0
    %797 = vmatprep.subr.mxu0 0.0
    %798 = vmatpush1.xpose.msra.mxu0 0.0
    %799 = vmatprep.subr.mxu0 0.0
    %800 = vmatpush1.xpose.msra.mxu0 0.0
    %801 = vmatprep.subr.mxu0 0.0
    %802 = vmatpush1.xpose.msra.mxu0 0.0
    %803 = vmatprep.subr.mxu0 0.0
    %804 = vmatpush1.xpose.msra.mxu0 0.0
    %805 = vmatprep.subr.mxu0 0.0
    %806 = vmatpush1.xpose.msra.mxu0 0.0
    %807 = vmatprep.subr.mxu0 0.0
    %808 = vmatpush1.xpose.msra.mxu0 0.0
    %809 = vmatprep.subr.mxu0 0.0
    %810 = vmatpush1.xpose.msra.mxu0 0.0
    %811 = vmatprep.subr.mxu0 0.0
    %812 = vmatpush1.xpose.msra.mxu0 0.0
    %813 = vmatprep.subr.mxu0 0.0
    %814 = vmatpush1.xpose.msra.mxu0 0.0
    %815 = vmatprep.mubr.f32.mxu0 0.0
    %816 = vmatmul.mubr.f32.gmra.mrb[0].mxu0 %v735
    %v817 = vpop.f32.mrb[0].mxu0
    %v818 = vadd.f32 0.0, %v817
    %v819 = vpop.f32.mrb[0].mxu0
    %820 = vmatprep.mubr.f32.mxu0 0.0
    %821 = vmatmul.mubr.f32.gmra.mrb[0].mxu0 %v737
    %v822 = vpop.f32.mrb[0].mxu0
    %v823 = vadd.f32 0.0, %v822
    %v824 = vpop.f32.mrb[0].mxu0
    %825 = vmatprep.mubr.f32.mxu0 0.0
    %826 = vmatmul.mubr.f32.gmra.mrb[0].mxu0 %v739
    %v827 = vpop.f32.mrb[0].mxu0
    %v828 = vadd.f32 0.0, %v827
    %v829 = vpop.f32.mrb[0].mxu0
    %830 = vmatprep.mubr.f32.mxu0 0.0
    %831 = vmatmul.mubr.f32.gmra.mrb[0].mxu0 %v741
    %v832 = vpop.f32.mrb[0].mxu0
    %v833 = vadd.f32 0.0, %v832
    %v834 = vpop.f32.mrb[0].mxu0
    %835 = vdwg.mxu0
    %v836 = vsel %vm282, %v818, -inf
    %837 = vmax.xlane.f32.xlu0 %v836
    %v838 = vpop.xlane.xlu0 %837
    %v839 = vsel %vm282, %v823, -inf
    %840 = vmax.xlane.f32.xlu0 %v839
    %v841 = vpop.xlane.xlu0 %840
    %v842 = vsel %vm282, %v828, -inf
    %843 = vmax.xlane.f32.xlu0 %v842
    %v844 = vpop.xlane.xlu0 %843
    %v845 = vsel %vm292, %v833, -inf
    %846 = vmax.xlane.f32.xlu0 %v845
    %v847 = vpop.xlane.xlu0 %846
    %v848 = vsub.f32 %v818, %v838
    %v849 = vsub.f32 %v823, %v841
    %v850 = vsub.f32 %v828, %v844
    %v851 = vsub.f32 %v833, %v847
    %v852 = vmul.f32 %v848, 1.442695
    %v853 = vpow.pop %v852
    %v854 = vmul.f32 %v849, 1.442695
    %v855 = vpow.pop %v854
    %v856 = vmul.f32 %v850, 1.442695
    %v857 = vpow.pop %v856
    %v858 = vmul.f32 %v851, 1.442695
    %v859 = vpow.pop %v858
    %v860 = vsel %vm282, %v853, 0.0
    %861 = vadd.xlane.f32.xlu0 %v860
    %v862 = vpop.xlane.xlu0 %861
    %v863 = vsel %vm282, %v855, 0.0
    %864 = vadd.xlane.f32.xlu0 %v863
    %v865 = vpop.xlane.xlu0 %864
    %v866 = vsel %vm282, %v857, 0.0
    %867 = vadd.xlane.f32.xlu0 %v866
    %v868 = vpop.xlane.xlu0 %867
    %v869 = vsel %vm292, %v859, 0.0
    %870 = vadd.xlane.f32.xlu0 %v869
    %v871 = vpop.xlane.xlu0 %870
    %v872 = vrcp.pop %v862
    %v873 = vrcp.pop %v865
    %v874 = vrcp.pop %v868
    %v875 = vrcp.pop %v871
    %v876 = vmul.f32 %v853, %v872
    %v877 = vmul.f32 %v855, %v873
    %v878 = vmul.f32 %v857, %v874
    %v879 = vmul.f32 %v859, %v875
    %s880 = scalar_lea.vmem %s7, 64
    %881 = vst.msk [vmem:[%s880] sm:$0xff] %vm282, %v876
    %882 = vst.msk [vmem:[%s880 + $0x8] sm:$0xff] %vm282, %v877
    %883 = vst.msk [vmem:[%s880 + $0x10] sm:$0xff] %vm282, %v878
    %884 = vst.msk [vmem:[%s880 + $0x18] sm:$0x1] %vm292, %v879
    %885 = vrot.lane.b32.xlu0 %v150, 48
    %v886 = vpop.permute.xlu0 %885
    %887 = vrot.lane.b32.xlu0 %v155, 48
    %v888 = vpop.permute.xlu0 %887
    %889 = vrot.lane.b32.xlu0 %v160, 48
    %v890 = vpop.permute.xlu0 %889
    %891 = vrot.lane.b32.xlu0 %v165, 48
    %v892 = vpop.permute.xlu0 %891
    %v897 = vsel %vm282, %v876, 0
    %v900 = vsel %vm282, %v877, 0
    %v903 = vsel %vm282, %v878, 0
    %v906 = vsel %vm282, %v879, 0
    %v908 = vsel %vm355, %v892, 0
    %910 = vmatprep.subr.mxu0 0.0
    %911 = vmatpush1.msra.mxu0 %v886
    %912 = vmatprep.subr.mxu0 0.0
    %913 = vmatpush1.msra.mxu0 %v888
    %914 = vmatprep.subr.mxu0 0.0
    %915 = vmatpush1.msra.mxu0 %v890
    %916 = vmatprep.subr.mxu0 0.0
    %917 = vmatpush1.msra.mxu0 %v908
    %918 = vmatprep.subr.mxu0 0.0
    %919 = vmatpush1.msra.mxu0 0.0
    %920 = vmatprep.subr.mxu0 0.0
    %921 = vmatpush1.msra.mxu0 0.0
    %922 = vmatprep.subr.mxu0 0.0
    %923 = vmatpush1.msra.mxu0 0.0
    %924 = vmatprep.subr.mxu0 0.0
    %925 = vmatpush1.msra.mxu0 0.0
    %926 = vmatprep.subr.mxu0 0.0
    %927 = vmatpush1.msra.mxu0 0.0
    %928 = vmatprep.subr.mxu0 0.0
    %929 = vmatpush1.msra.mxu0 0.0
    %930 = vmatprep.subr.mxu0 0.0
    %931 = vmatpush1.msra.mxu0 0.0
    %932 = vmatprep.subr.mxu0 0.0
    %933 = vmatpush1.msra.mxu0 0.0
    %934 = vmatprep.subr.mxu0 0.0
    %935 = vmatpush1.msra.mxu0 0.0
    %936 = vmatprep.subr.mxu0 0.0
    %937 = vmatpush1.msra.mxu0 0.0
    %938 = vmatprep.subr.mxu0 0.0
    %939 = vmatpush1.msra.mxu0 0.0
    %940 = vmatprep.subr.mxu0 0.0
    %941 = vmatpush1.msra.mxu0 0.0
    %942 = vmatprep.subr.mxu0 0.0
    %943 = vmatpush1.msra.mxu0 0.0
    %944 = vmatprep.subr.mxu0 0.0
    %945 = vmatpush1.msra.mxu0 0.0
    %946 = vmatprep.subr.mxu0 0.0
    %947 = vmatpush1.msra.mxu0 0.0
    %948 = vmatprep.subr.mxu0 0.0
    %949 = vmatpush1.msra.mxu0 0.0
    %950 = vmatprep.subr.mxu0 0.0
    %951 = vmatpush1.msra.mxu0 0.0
    %952 = vmatprep.subr.mxu0 0.0
    %953 = vmatpush1.msra.mxu0 0.0
    %954 = vmatprep.subr.mxu0 0.0
    %955 = vmatpush1.msra.mxu0 0.0
    %956 = vmatprep.subr.mxu0 0.0
    %957 = vmatpush1.msra.mxu0 0.0
    %958 = vmatprep.subr.mxu0 0.0
    %959 = vmatpush1.msra.mxu0 0.0
    %960 = vmatprep.subr.mxu0 0.0
    %961 = vmatpush1.msra.mxu0 0.0
    %962 = vmatprep.subr.mxu0 0.0
    %963 = vmatpush1.msra.mxu0 0.0
    %964 = vmatprep.subr.mxu0 0.0
    %965 = vmatpush1.msra.mxu0 0.0
    %966 = vmatprep.subr.mxu0 0.0
    %967 = vmatpush1.msra.mxu0 0.0
    %968 = vmatprep.subr.mxu0 0.0
    %969 = vmatpush1.msra.mxu0 0.0
    %970 = vmatprep.subr.mxu0 0.0
    %971 = vmatpush1.msra.mxu0 0.0
    %972 = vmatprep.subr.mxu0 0.0
    %973 = vmatpush1.msra.mxu0 0.0
    %974 = vmatprep.mubr.f32.mxu0 0.0
    %975 = vmatmul.mubr.f32.gmra.mrb[0].mxu0 %v897
    %v976 = vpop.f32.mrb[0].mxu0
    %v977 = vadd.f32 0.0, %v976
    %v978 = vpop.f32.mrb[0].mxu0
    %979 = vmatprep.mubr.f32.mxu0 0.0
    %980 = vmatmul.mubr.f32.gmra.mrb[0].mxu0 %v900
    %v981 = vpop.f32.mrb[0].mxu0
    %v982 = vadd.f32 0.0, %v981
    %v983 = vpop.f32.mrb[0].mxu0
    %984 = vmatprep.mubr.f32.mxu0 0.0
    %985 = vmatmul.mubr.f32.gmra.mrb[0].mxu0 %v903
    %v986 = vpop.f32.mrb[0].mxu0
    %v987 = vadd.f32 0.0, %v986
    %v988 = vpop.f32.mrb[0].mxu0
    %989 = vmatprep.mubr.f32.mxu0 0.0
    %990 = vmatmul.mubr.f32.gmra.mrb[0].mxu0 %v906
    %v991 = vpop.f32.mrb[0].mxu0
    %v992 = vadd.f32 0.0, %v991
    %v993 = vpop.f32.mrb[0].mxu0
    %994 = vdwg.mxu0
    %995 = vrot.lane.b32.xlu0 %v150, 104
    %v996 = vpop.permute.xlu0 %995
    %997 = vrot.lane.b32.xlu0 %v155, 104
    %v998 = vpop.permute.xlu0 %997
    %999 = vrot.lane.b32.xlu0 %v160, 104
    %v1000 = vpop.permute.xlu0 %999
    %1001 = vrot.lane.b32.xlu0 %v165, 104
    %v1002 = vpop.permute.xlu0 %1001
    %1003 = vrot.lane.b32.xlu0 %v150, 72
    %v1004 = vpop.permute.xlu0 %1003
    %1005 = vrot.lane.b32.xlu0 %v155, 72
    %v1006 = vpop.permute.xlu0 %1005
    %1007 = vrot.lane.b32.xlu0 %v160, 72
    %v1008 = vpop.permute.xlu0 %1007
    %1009 = vrot.lane.b32.xlu0 %v165, 72
    %v1010 = vpop.permute.xlu0 %1009
    %v1011 = vsel %vm180, %v996, 0
    %v1013 = vsel %vm180, %v998, 0
    %v1015 = vsel %vm180, %v1000, 0
    %v1017 = vsel %vm180, %v1002, 0
    %v1019 = vsel %vm180, %v1004, 0
    %v1021 = vsel %vm180, %v1006, 0
    %v1023 = vsel %vm180, %v1008, 0
    %v1025 = vsel %vm180, %v1010, 0
    %1027 = vmatprep.subr.mxu0 0.0
    %1028 = vmatpush1.xpose.msra.mxu0 %v1019
    %1029 = vmatprep.subr.mxu0 0.0
    %1030 = vmatpush1.xpose.msra.mxu0 %v1021
    %1031 = vmatprep.subr.mxu0 0.0
    %1032 = vmatpush1.xpose.msra.mxu0 %v1023
    %1033 = vmatprep.subr.mxu0 0.0
    %1034 = vmatpush1.xpose.msra.mxu0 %v1025
    %1035 = vmatprep.subr.mxu0 0.0
    %1036 = vmatpush1.xpose.msra.mxu0 0.0
    %1037 = vmatprep.subr.mxu0 0.0
    %1038 = vmatpush1.xpose.msra.mxu0 0.0
    %1039 = vmatprep.subr.mxu0 0.0
    %1040 = vmatpush1.xpose.msra.mxu0 0.0
    %1041 = vmatprep.subr.mxu0 0.0
    %1042 = vmatpush1.xpose.msra.mxu0 0.0
    %1043 = vmatprep.subr.mxu0 0.0
    %1044 = vmatpush1.xpose.msra.mxu0 0.0
    %1045 = vmatprep.subr.mxu0 0.0
    %1046 = vmatpush1.xpose.msra.mxu0 0.0
    %1047 = vmatprep.subr.mxu0 0.0
    %1048 = vmatpush1.xpose.msra.mxu0 0.0
    %1049 = vmatprep.subr.mxu0 0.0
    %1050 = vmatpush1.xpose.msra.mxu0 0.0
    %1051 = vmatprep.subr.mxu0 0.0
    %1052 = vmatpush1.xpose.msra.mxu0 0.0
    %1053 = vmatprep.subr.mxu0 0.0
    %1054 = vmatpush1.xpose.msra.mxu0 0.0
    %1055 = vmatprep.subr.mxu0 0.0
    %1056 = vmatpush1.xpose.msra.mxu0 0.0
    %1057 = vmatprep.subr.mxu0 0.0
    %1058 = vmatpush1.xpose.msra.mxu0 0.0
    %1059 = vmatprep.subr.mxu0 0.0
    %1060 = vmatpush1.xpose.msra.mxu0 0.0
    %1061 = vmatprep.subr.mxu0 0.0
    %1062 = vmatpush1.xpose.msra.mxu0 0.0
    %1063 = vmatprep.subr.mxu0 0.0
    %1064 = vmatpush1.xpose.msra.mxu0 0.0
    %1065 = vmatprep.subr.mxu0 0.0
    %1066 = vmatpush1.xpose.msra.mxu0 0.0
    %1067 = vmatprep.subr.mxu0 0.0
    %1068 = vmatpush1.xpose.msra.mxu0 0.0
    %1069 = vmatprep.subr.mxu0 0.0
    %1070 = vmatpush1.xpose.msra.mxu0 0.0
    %1071 = vmatprep.subr.mxu0 0.0
    %1072 = vmatpush1.xpose.msra.mxu0 0.0
    %1073 = vmatprep.subr.mxu0 0.0
    %1074 = vmatpush1.xpose.msra.mxu0 0.0
    %1075 = vmatprep.subr.mxu0 0.0
    %1076 = vmatpush1.xpose.msra.mxu0 0.0
    %1077 = vmatprep.subr.mxu0 0.0
    %1078 = vmatpush1.xpose.msra.mxu0 0.0
    %1079 = vmatprep.subr.mxu0 0.0
    %1080 = vmatpush1.xpose.msra.mxu0 0.0
    %1081 = vmatprep.subr.mxu0 0.0
    %1082 = vmatpush1.xpose.msra.mxu0 0.0
    %1083 = vmatprep.subr.mxu0 0.0
    %1084 = vmatpush1.xpose.msra.mxu0 0.0
    %1085 = vmatprep.subr.mxu0 0.0
    %1086 = vmatpush1.xpose.msra.mxu0 0.0
    %1087 = vmatprep.subr.mxu0 0.0
    %1088 = vmatpush1.xpose.msra.mxu0 0.0
    %1089 = vmatprep.subr.mxu0 0.0
    %1090 = vmatpush1.xpose.msra.mxu0 0.0
    %1091 = vmatprep.mubr.f32.mxu0 0.0
    %1092 = vmatmul.mubr.f32.gmra.mrb[0].mxu0 %v1011
    %v1093 = vpop.f32.mrb[0].mxu0
    %v1094 = vadd.f32 0.0, %v1093
    %v1095 = vpop.f32.mrb[0].mxu0
    %1096 = vmatprep.mubr.f32.mxu0 0.0
    %1097 = vmatmul.mubr.f32.gmra.mrb[0].mxu0 %v1013
    %v1098 = vpop.f32.mrb[0].mxu0
    %v1099 = vadd.f32 0.0, %v1098
    %v1100 = vpop.f32.mrb[0].mxu0
    %1101 = vmatprep.mubr.f32.mxu0 0.0
    %1102 = vmatmul.mubr.f32.gmra.mrb[0].mxu0 %v1015
    %v1103 = vpop.f32.mrb[0].mxu0
    %v1104 = vadd.f32 0.0, %v1103
    %v1105 = vpop.f32.mrb[0].mxu0
    %1106 = vmatprep.mubr.f32.mxu0 0.0
    %1107 = vmatmul.mubr.f32.gmra.mrb[0].mxu0 %v1017
    %v1108 = vpop.f32.mrb[0].mxu0
    %v1109 = vadd.f32 0.0, %v1108
    %v1110 = vpop.f32.mrb[0].mxu0
    %1111 = vdwg.mxu0
    %v1112 = vsel %vm282, %v1094, -inf
    %1113 = vmax.xlane.f32.xlu0 %v1112
    %v1114 = vpop.xlane.xlu0 %1113
    %v1115 = vsel %vm282, %v1099, -inf
    %1116 = vmax.xlane.f32.xlu0 %v1115
    %v1117 = vpop.xlane.xlu0 %1116
    %v1118 = vsel %vm282, %v1104, -inf
    %1119 = vmax.xlane.f32.xlu0 %v1118
    %v1120 = vpop.xlane.xlu0 %1119
    %v1121 = vsel %vm292, %v1109, -inf
    %1122 = vmax.xlane.f32.xlu0 %v1121
    %v1123 = vpop.xlane.xlu0 %1122
    %v1124 = vsub.f32 %v1094, %v1114
    %v1125 = vsub.f32 %v1099, %v1117
    %v1126 = vsub.f32 %v1104, %v1120
    %v1127 = vsub.f32 %v1109, %v1123
    %v1128 = vmul.f32 %v1124, 1.442695
    %v1129 = vpow.pop %v1128
    %v1130 = vmul.f32 %v1125, 1.442695
    %v1131 = vpow.pop %v1130
    %v1132 = vmul.f32 %v1126, 1.442695
    %v1133 = vpow.pop %v1132
    %v1134 = vmul.f32 %v1127, 1.442695
    %v1135 = vpow.pop %v1134
    %v1136 = vsel %vm282, %v1129, 0.0
    %1137 = vadd.xlane.f32.xlu0 %v1136
    %v1138 = vpop.xlane.xlu0 %1137
    %v1139 = vsel %vm282, %v1131, 0.0
    %1140 = vadd.xlane.f32.xlu0 %v1139
    %v1141 = vpop.xlane.xlu0 %1140
    %v1142 = vsel %vm282, %v1133, 0.0
    %1143 = vadd.xlane.f32.xlu0 %v1142
    %v1144 = vpop.xlane.xlu0 %1143
    %v1145 = vsel %vm292, %v1135, 0.0
    %1146 = vadd.xlane.f32.xlu0 %v1145
    %v1147 = vpop.xlane.xlu0 %1146
    %v1148 = vrcp.pop %v1138
    %v1149 = vrcp.pop %v1141
    %v1150 = vrcp.pop %v1144
    %v1151 = vrcp.pop %v1147
    %v1152 = vmul.f32 %v1129, %v1148
    %v1153 = vmul.f32 %v1131, %v1149
    %v1154 = vmul.f32 %v1133, %v1150
    %v1155 = vmul.f32 %v1135, %v1151
    %s1156 = scalar_lea.vmem %s7, 96
    %1157 = vst.msk [vmem:[%s1156] sm:$0xff] %vm282, %v1152
    %1158 = vst.msk [vmem:[%s1156 + $0x8] sm:$0xff] %vm282, %v1153
    %1159 = vst.msk [vmem:[%s1156 + $0x10] sm:$0xff] %vm282, %v1154
    %1160 = vst.msk [vmem:[%s1156 + $0x18] sm:$0x1] %vm292, %v1155
    %1161 = vrot.lane.b32.xlu0 %v150, 40
    %v1162 = vpop.permute.xlu0 %1161
    %1163 = vrot.lane.b32.xlu0 %v155, 40
    %v1164 = vpop.permute.xlu0 %1163
    %1165 = vrot.lane.b32.xlu0 %v160, 40
    %v1166 = vpop.permute.xlu0 %1165
    %1167 = vrot.lane.b32.xlu0 %v165, 40
    %v1168 = vpop.permute.xlu0 %1167
    %v1173 = vsel %vm282, %v1152, 0
    %v1176 = vsel %vm282, %v1153, 0
    %v1179 = vsel %vm282, %v1154, 0
    %v1182 = vsel %vm282, %v1155, 0
    %v1184 = vsel %vm355, %v1168, 0
    %1186 = vmatprep.subr.mxu0 0.0
    %1187 = vmatpush1.msra.mxu0 %v1162
    %1188 = vmatprep.subr.mxu0 0.0
    %1189 = vmatpush1.msra.mxu0 %v1164
    %1190 = vmatprep.subr.mxu0 0.0
    %1191 = vmatpush1.msra.mxu0 %v1166
    %1192 = vmatprep.subr.mxu0 0.0
    %1193 = vmatpush1.msra.mxu0 %v1184
    %1194 = vmatprep.subr.mxu0 0.0
    %1195 = vmatpush1.msra.mxu0 0.0
    %1196 = vmatprep.subr.mxu0 0.0
    %1197 = vmatpush1.msra.mxu0 0.0
    %1198 = vmatprep.subr.mxu0 0.0
    %1199 = vmatpush1.msra.mxu0 0.0
    %1200 = vmatprep.subr.mxu0 0.0
    %1201 = vmatpush1.msra.mxu0 0.0
    %1202 = vmatprep.subr.mxu0 0.0
    %1203 = vmatpush1.msra.mxu0 0.0
    %1204 = vmatprep.subr.mxu0 0.0
    %1205 = vmatpush1.msra.mxu0 0.0
    %1206 = vmatprep.subr.mxu0 0.0
    %1207 = vmatpush1.msra.mxu0 0.0
    %1208 = vmatprep.subr.mxu0 0.0
    %1209 = vmatpush1.msra.mxu0 0.0
    %1210 = vmatprep.subr.mxu0 0.0
    %1211 = vmatpush1.msra.mxu0 0.0
    %1212 = vmatprep.subr.mxu0 0.0
    %1213 = vmatpush1.msra.mxu0 0.0
    %1214 = vmatprep.subr.mxu0 0.0
    %1215 = vmatpush1.msra.mxu0 0.0
    %1216 = vmatprep.subr.mxu0 0.0
    %1217 = vmatpush1.msra.mxu0 0.0
    %1218 = vmatprep.subr.mxu0 0.0
    %1219 = vmatpush1.msra.mxu0 0.0
    %1220 = vmatprep.subr.mxu0 0.0
    %1221 = vmatpush1.msra.mxu0 0.0
    %1222 = vmatprep.subr.mxu0 0.0
    %1223 = vmatpush1.msra.mxu0 0.0
    %1224 = vmatprep.subr.mxu0 0.0
    %1225 = vmatpush1.msra.mxu0 0.0
    %1226 = vmatprep.subr.mxu0 0.0
    %1227 = vmatpush1.msra.mxu0 0.0
    %1228 = vmatprep.subr.mxu0 0.0
    %1229 = vmatpush1.msra.mxu0 0.0
    %1230 = vmatprep.subr.mxu0 0.0
    %1231 = vmatpush1.msra.mxu0 0.0
    %1232 = vmatprep.subr.mxu0 0.0
    %1233 = vmatpush1.msra.mxu0 0.0
    %1234 = vmatprep.subr.mxu0 0.0
    %1235 = vmatpush1.msra.mxu0 0.0
    %1236 = vmatprep.subr.mxu0 0.0
    %1237 = vmatpush1.msra.mxu0 0.0
    %1238 = vmatprep.subr.mxu0 0.0
    %1239 = vmatpush1.msra.mxu0 0.0
    %1240 = vmatprep.subr.mxu0 0.0
    %1241 = vmatpush1.msra.mxu0 0.0
    %1242 = vmatprep.subr.mxu0 0.0
    %1243 = vmatpush1.msra.mxu0 0.0
    %1244 = vmatprep.subr.mxu0 0.0
    %1245 = vmatpush1.msra.mxu0 0.0
    %1246 = vmatprep.subr.mxu0 0.0
    %1247 = vmatpush1.msra.mxu0 0.0
    %1248 = vmatprep.subr.mxu0 0.0
    %1249 = vmatpush1.msra.mxu0 0.0
    %1250 = vmatprep.mubr.f32.mxu0 0.0
    %1251 = vmatmul.mubr.f32.gmra.mrb[0].mxu0 %v1173
    %v1252 = vpop.f32.mrb[0].mxu0
    %v1253 = vadd.f32 0.0, %v1252
    %v1254 = vpop.f32.mrb[0].mxu0
    %1255 = vmatprep.mubr.f32.mxu0 0.0
    %1256 = vmatmul.mubr.f32.gmra.mrb[0].mxu0 %v1176
    %v1257 = vpop.f32.mrb[0].mxu0
    %v1258 = vadd.f32 0.0, %v1257
    %v1259 = vpop.f32.mrb[0].mxu0
    %1260 = vmatprep.mubr.f32.mxu0 0.0
    %1261 = vmatmul.mubr.f32.gmra.mrb[0].mxu0 %v1179
    %v1262 = vpop.f32.mrb[0].mxu0
    %v1263 = vadd.f32 0.0, %v1262
    %v1264 = vpop.f32.mrb[0].mxu0
    %1265 = vmatprep.mubr.f32.mxu0 0.0
    %1266 = vmatmul.mubr.f32.gmra.mrb[0].mxu0 %v1182
    %v1267 = vpop.f32.mrb[0].mxu0
    %v1268 = vadd.f32 0.0, %v1267
    %v1269 = vpop.f32.mrb[0].mxu0
    %1270 = vdwg.mxu0
    %1275 = vrot.lane.b32.xlu0 %v701, 8
    %v1276 = vpop.permute.xlu0 %1275
    %1277 = vrot.lane.b32.xlu0 %v706, 8
    %v1278 = vpop.permute.xlu0 %1277
    %1279 = vrot.lane.b32.xlu0 %v711, 8
    %v1280 = vpop.permute.xlu0 %1279
    %1281 = vrot.lane.b32.xlu0 %v716, 8
    %v1282 = vpop.permute.xlu0 %1281
    %1291 = vrot.lane.b32.xlu0 %v977, 16
    %v1292 = vpop.permute.xlu0 %1291
    %1293 = vrot.lane.b32.xlu0 %v982, 16
    %v1294 = vpop.permute.xlu0 %1293
    %1295 = vrot.lane.b32.xlu0 %v987, 16
    %v1296 = vpop.permute.xlu0 %1295
    %1297 = vrot.lane.b32.xlu0 %v992, 16
    %v1298 = vpop.permute.xlu0 %1297
    %1307 = vrot.lane.b32.xlu0 %v1253, 24
    %v1308 = vpop.permute.xlu0 %1307
    %1309 = vrot.lane.b32.xlu0 %v1258, 24
    %v1310 = vpop.permute.xlu0 %1309
    %1311 = vrot.lane.b32.xlu0 %v1263, 24
    %v1312 = vpop.permute.xlu0 %1311
    %1313 = vrot.lane.b32.xlu0 %v1268, 24
    %v1314 = vpop.permute.xlu0 %1313
    %v1319 = vsel %vm180, %v425, %v1276
    %v1320 = vsel %vm180, %v430, %v1278
    %v1321 = vsel %vm180, %v435, %v1280
    %v1322 = vsel %vm180, %v440, %v1282
    %vm1323 = vcmask 130048
    %v1324 = vsel %vm1323, %v1319, %v1292
    %v1325 = vsel %vm1323, %v1320, %v1294
    %v1326 = vsel %vm1323, %v1321, %v1296
    %v1327 = vsel %vm1323, %v1322, %v1298
    %vm1328 = vcmask 195584
    %v1329 = vsel %vm1328, %v1324, %v1308
    %v1330 = vsel %vm1328, %v1325, %v1310
    %v1331 = vsel %vm1328, %v1326, %v1312
    %v1332 = vsel %vm1328, %v1327, %v1314
    %v1333 = vlaneseq
    %v1334 = vshrl.u32 %v1333, 7
    %v1335 = vsub.s32 1, %v1334
    %v1336 = vrot.slane %v65, %v1335
    %v1338 = vsel %vm70, %v1329, 0
    %v1341 = vsel %vm70, %v1330, 0
    %v1344 = vsel %vm70, %v1331, 0
    %v1347 = vsel %vm70, %v1332, 0
    %1349 = vmatprep.subr.mxu0 0.0
    %1350 = vmatpush1.msra.mxu0 %v49
    %1351 = vmatprep.subr.mxu0 0.0
    %1352 = vmatpush1.msra.mxu0 %v50
    %1353 = vmatprep.subr.mxu0 0.0
    %1354 = vmatpush1.msra.mxu0 %v51
    %1355 = vmatprep.subr.mxu0 0.0
    %1356 = vmatpush1.msra.mxu0 %v52
    %1357 = vmatprep.subr.mxu0 0.0
    %1358 = vmatpush1.msra.mxu0 0.0
    %1359 = vmatprep.subr.mxu0 0.0
    %1360 = vmatpush1.msra.mxu0 0.0
    %1361 = vmatprep.subr.mxu0 0.0
    %1362 = vmatpush1.msra.mxu0 0.0
    %1363 = vmatprep.subr.mxu0 0.0
    %1364 = vmatpush1.msra.mxu0 0.0
    %1365 = vmatprep.subr.mxu0 0.0
    %1366 = vmatpush1.msra.mxu0 0.0
    %1367 = vmatprep.subr.mxu0 0.0
    %1368 = vmatpush1.msra.mxu0 0.0
    %1369 = vmatprep.subr.mxu0 0.0
    %1370 = vmatpush1.msra.mxu0 0.0
    %1371 = vmatprep.subr.mxu0 0.0
    %1372 = vmatpush1.msra.mxu0 0.0
    %1373 = vmatprep.subr.mxu0 0.0
    %1374 = vmatpush1.msra.mxu0 0.0
    %1375 = vmatprep.subr.mxu0 0.0
    %1376 = vmatpush1.msra.mxu0 0.0
    %1377 = vmatprep.subr.mxu0 0.0
    %1378 = vmatpush1.msra.mxu0 0.0
    %1379 = vmatprep.subr.mxu0 0.0
    %1380 = vmatpush1.msra.mxu0 0.0
    %1381 = vmatprep.subr.mxu0 0.0
    %1382 = vmatpush1.msra.mxu0 0.0
    %1383 = vmatprep.subr.mxu0 0.0
    %1384 = vmatpush1.msra.mxu0 0.0
    %1385 = vmatprep.subr.mxu0 0.0
    %1386 = vmatpush1.msra.mxu0 0.0
    %1387 = vmatprep.subr.mxu0 0.0
    %1388 = vmatpush1.msra.mxu0 0.0
    %1389 = vmatprep.subr.mxu0 0.0
    %1390 = vmatpush1.msra.mxu0 0.0
    %1391 = vmatprep.subr.mxu0 0.0
    %1392 = vmatpush1.msra.mxu0 0.0
    %1393 = vmatprep.subr.mxu0 0.0
    %1394 = vmatpush1.msra.mxu0 0.0
    %1395 = vmatprep.subr.mxu0 0.0
    %1396 = vmatpush1.msra.mxu0 0.0
    %1397 = vmatprep.subr.mxu0 0.0
    %1398 = vmatpush1.msra.mxu0 0.0
    %1399 = vmatprep.subr.mxu0 0.0
    %1400 = vmatpush1.msra.mxu0 0.0
    %1401 = vmatprep.subr.mxu0 0.0
    %1402 = vmatpush1.msra.mxu0 0.0
    %1403 = vmatprep.subr.mxu0 0.0
    %1404 = vmatpush1.msra.mxu0 0.0
    %1405 = vmatprep.subr.mxu0 0.0
    %1406 = vmatpush1.msra.mxu0 0.0
    %1407 = vmatprep.subr.mxu0 0.0
    %1408 = vmatpush1.msra.mxu0 0.0
    %1409 = vmatprep.subr.mxu0 0.0
    %1410 = vmatpush1.msra.mxu0 0.0
    %1411 = vmatprep.subr.mxu0 0.0
    %1412 = vmatpush1.msra.mxu0 0.0
    %1413 = vmatprep.mubr.f32.mxu0 0.0
    %1414 = vmatmul.mubr.f32.gmra.mrb[0].mxu0 %v1338
    %v1415 = vpop.f32.mrb[0].mxu0
    %v1416 = vadd.f32 %v1336, %v1415
    %v1417 = vpop.f32.mrb[0].mxu0
    %1418 = vmatprep.mubr.f32.mxu0 0.0
    %1419 = vmatmul.mubr.f32.gmra.mrb[0].mxu0 %v1341
    %v1420 = vpop.f32.mrb[0].mxu0
    %v1421 = vadd.f32 %v1336, %v1420
    %v1422 = vpop.f32.mrb[0].mxu0
    %1423 = vmatprep.mubr.f32.mxu0 0.0
    %1424 = vmatmul.mubr.f32.gmra.mrb[0].mxu0 %v1344
    %v1425 = vpop.f32.mrb[0].mxu0
    %v1426 = vadd.f32 %v1336, %v1425
    %v1427 = vpop.f32.mrb[0].mxu0
    %1428 = vmatprep.mubr.f32.mxu0 0.0
    %1429 = vmatmul.mubr.f32.gmra.mrb[0].mxu0 %v1347
    %v1430 = vpop.f32.mrb[0].mxu0
    %v1431 = vadd.f32 %v1336, %v1430
    %v1432 = vpop.f32.mrb[0].mxu0
    %1433 = vdwg.mxu0
    %v1434 = vadd.f32 %v41, %v1416
    %v1435 = vadd.f32 %v42, %v1421
    %v1436 = vadd.f32 %v43, %v1426
    %v1437 = vadd.f32 %v44, %v1431
    %v1438 = vsel %vm70, %v1434, 0.0
    %1439 = vadd.xlane.f32.xlu0 %v1438
    %v1440 = vpop.xlane.xlu0 %1439
    %v1441 = vsel %vm70, %v1435, 0.0
    %1442 = vadd.xlane.f32.xlu0 %v1441
    %v1443 = vpop.xlane.xlu0 %1442
    %v1444 = vsel %vm70, %v1436, 0.0
    %1445 = vadd.xlane.f32.xlu0 %v1444
    %v1446 = vpop.xlane.xlu0 %1445
    %vm1447 = vcmask 253952
    %v1448 = vsel %vm1447, %v1437, 0.0
    %1449 = vadd.xlane.f32.xlu0 %v1448
    %v1450 = vpop.xlane.xlu0 %1449
    %v1451 = vrcp.pop 32.0
    %v1452 = vmul.f32 %v1440, %v1451
    %v1453 = vmul.f32 %v1443, %v1451
    %v1454 = vmul.f32 %v1446, %v1451
    %v1455 = vmul.f32 %v1450, %v1451
    %v1456 = vsub.f32 %v1434, %v1452
    %v1457 = vsub.f32 %v1435, %v1453
    %v1458 = vsub.f32 %v1436, %v1454
    %v1459 = vsub.f32 %v1437, %v1455
    %v1460 = vmul.f32 %v1456, %v1456
    %v1461 = vmul.f32 %v1457, %v1457
    %v1462 = vmul.f32 %v1458, %v1458
    %v1463 = vmul.f32 %v1459, %v1459
    %v1464 = vsel %vm70, %v1460, 0.0
    %1465 = vadd.xlane.f32.xlu0 %v1464
    %v1466 = vpop.xlane.xlu0 %1465
    %v1467 = vsel %vm70, %v1461, 0.0
    %1468 = vadd.xlane.f32.xlu0 %v1467
    %v1469 = vpop.xlane.xlu0 %1468
    %v1470 = vsel %vm70, %v1462, 0.0
    %1471 = vadd.xlane.f32.xlu0 %v1470
    %v1472 = vpop.xlane.xlu0 %1471
    %v1473 = vsel %vm1447, %v1463, 0.0
    %1474 = vadd.xlane.f32.xlu0 %v1473
    %v1475 = vpop.xlane.xlu0 %1474
    %v1476 = vmul.f32 %v1466, %v1451
    %v1477 = vmul.f32 %v1469, %v1451
    %v1478 = vmul.f32 %v1472, %v1451
    %v1479 = vmul.f32 %v1475, %v1451
    %v1480 = vadd.f32 %v1476, 1e-05
    %v1481 = vadd.f32 %v1477, 1e-05
    %v1482 = vadd.f32 %v1478, 1e-05
    %v1483 = vadd.f32 %v1479, 1e-05
    %v1484 = vrsqrt.pop %v1480
    %v1485 = vrsqrt.pop %v1481
    %v1486 = vrsqrt.pop %v1482
    %v1487 = vrsqrt.pop %v1483
    %v1488 = vmul.f32 %v1456, %v1484
    %v1489 = vmul.f32 %v1457, %v1485
    %v1490 = vmul.f32 %v1458, %v1486
    %v1491 = vmul.f32 %v1459, %v1487
    %v1492 = vlaneseq
    %v1493 = vshrl.u32 %v1492, 7
    %v1494 = vsub.s32 2, %v1493
    %v1495 = vrot.slane %v65, %v1494
    %v1496 = vmul.f32 %v1488, %v1495
    %v1497 = vmul.f32 %v1489, %v1495
    %v1498 = vmul.f32 %v1490, %v1495
    %v1499 = vmul.f32 %v1491, %v1495
    %v1500 = vlaneseq
    %v1501 = vshrl.u32 %v1500, 7
    %v1502 = vsub.s32 3, %v1501
    %v1503 = vrot.slane %v65, %v1502
    %v1504 = vadd.f32 %v1496, %v1503
    %v1505 = vadd.f32 %v1497, %v1503
    %v1506 = vadd.f32 %v1498, %v1503
    %v1507 = vadd.f32 %v1499, %v1503
    %v1508 = vlaneseq
    %v1509 = vshrl.u32 %v1508, 7
    %v1510 = vsub.s32 4, %v1509
    %v1511 = vrot.slane %v65, %v1510
    %v1513 = vsel %vm70, %v1504, 0
    %v1516 = vsel %vm70, %v1505, 0
    %v1519 = vsel %vm70, %v1506, 0
    %v1522 = vsel %vm70, %v1507, 0
    %1524 = vmatprep.subr.mxu0 0.0
    %1525 = vmatpush1.msra.mxu0 %v53
    %1526 = vmatprep.subr.mxu0 0.0
    %1527 = vmatpush1.msra.mxu0 %v54
    %1528 = vmatprep.subr.mxu0 0.0
    %1529 = vmatpush1.msra.mxu0 %v55
    %1530 = vmatprep.subr.mxu0 0.0
    %1531 = vmatpush1.msra.mxu0 %v56
    %1532 = vmatprep.subr.mxu0 0.0
    %1533 = vmatpush1.msra.mxu0 0.0
    %1534 = vmatprep.subr.mxu0 0.0
    %1535 = vmatpush1.msra.mxu0 0.0
    %1536 = vmatprep.subr.mxu0 0.0
    %1537 = vmatpush1.msra.mxu0 0.0
    %1538 = vmatprep.subr.mxu0 0.0
    %1539 = vmatpush1.msra.mxu0 0.0
    %1540 = vmatprep.subr.mxu0 0.0
    %1541 = vmatpush1.msra.mxu0 0.0
    %1542 = vmatprep.subr.mxu0 0.0
    %1543 = vmatpush1.msra.mxu0 0.0
    %1544 = vmatprep.subr.mxu0 0.0
    %1545 = vmatpush1.msra.mxu0 0.0
    %1546 = vmatprep.subr.mxu0 0.0
    %1547 = vmatpush1.msra.mxu0 0.0
    %1548 = vmatprep.subr.mxu0 0.0
    %1549 = vmatpush1.msra.mxu0 0.0
    %1550 = vmatprep.subr.mxu0 0.0
    %1551 = vmatpush1.msra.mxu0 0.0
    %1552 = vmatprep.subr.mxu0 0.0
    %1553 = vmatpush1.msra.mxu0 0.0
    %1554 = vmatprep.subr.mxu0 0.0
    %1555 = vmatpush1.msra.mxu0 0.0
    %1556 = vmatprep.subr.mxu0 0.0
    %1557 = vmatpush1.msra.mxu0 0.0
    %1558 = vmatprep.subr.mxu0 0.0
    %1559 = vmatpush1.msra.mxu0 0.0
    %1560 = vmatprep.subr.mxu0 0.0
    %1561 = vmatpush1.msra.mxu0 0.0
    %1562 = vmatprep.subr.mxu0 0.0
    %1563 = vmatpush1.msra.mxu0 0.0
    %1564 = vmatprep.subr.mxu0 0.0
    %1565 = vmatpush1.msra.mxu0 0.0
    %1566 = vmatprep.subr.mxu0 0.0
    %1567 = vmatpush1.msra.mxu0 0.0
    %1568 = vmatprep.subr.mxu0 0.0
    %1569 = vmatpush1.msra.mxu0 0.0
    %1570 = vmatprep.subr.mxu0 0.0
    %1571 = vmatpush1.msra.mxu0 0.0
    %1572 = vmatprep.subr.mxu0 0.0
    %1573 = vmatpush1.msra.mxu0 0.0
    %1574 = vmatprep.subr.mxu0 0.0
    %1575 = vmatpush1.msra.mxu0 0.0
    %1576 = vmatprep.subr.mxu0 0.0
    %1577 = vmatpush1.msra.mxu0 0.0
    %1578 = vmatprep.subr.mxu0 0.0
    %1579 = vmatpush1.msra.mxu0 0.0
    %1580 = vmatprep.subr.mxu0 0.0
    %1581 = vmatpush1.msra.mxu0 0.0
    %1582 = vmatprep.subr.mxu0 0.0
    %1583 = vmatpush1.msra.mxu0 0.0
    %1584 = vmatprep.subr.mxu0 0.0
    %1585 = vmatpush1.msra.mxu0 0.0
    %1586 = vmatprep.subr.mxu0 0.0
    %1587 = vmatpush1.msra.mxu0 0.0
    %1588 = vmatprep.mubr.f32.mxu0 0.0
    %1589 = vmatmul.mubr.f32.gmra.mrb[0].mxu0 %v1513
    %v1590 = vpop.f32.mrb[0].mxu0
    %v1591 = vadd.f32 %v1511, %v1590
    %v1592 = vpop.f32.mrb[0].mxu0
    %1593 = vmatprep.mubr.f32.mxu0 0.0
    %1594 = vmatmul.mubr.f32.gmra.mrb[0].mxu0 %v1516
    %v1595 = vpop.f32.mrb[0].mxu0
    %v1596 = vadd.f32 %v1511, %v1595
    %v1597 = vpop.f32.mrb[0].mxu0
    %1598 = vmatprep.mubr.f32.mxu0 0.0
    %1599 = vmatmul.mubr.f32.gmra.mrb[0].mxu0 %v1519
    %v1600 = vpop.f32.mrb[0].mxu0
    %v1601 = vadd.f32 %v1511, %v1600
    %v1602 = vpop.f32.mrb[0].mxu0
    %1603 = vmatprep.mubr.f32.mxu0 0.0
    %1604 = vmatmul.mubr.f32.gmra.mrb[0].mxu0 %v1522
    %v1605 = vpop.f32.mrb[0].mxu0
    %v1606 = vadd.f32 %v1511, %v1605
    %v1607 = vpop.f32.mrb[0].mxu0
    %1608 = vdwg.mxu0
    %v1609 = vmax.f32 %v1591, 0.0
    %v1610 = vmax.f32 %v1596, 0.0
    %v1611 = vmax.f32 %v1601, 0.0
    %v1612 = vmax.f32 %v1606, 0.0
    %v1613 = vlaneseq
    %v1614 = vshrl.u32 %v1613, 7
    %v1615 = vsub.s32 5, %v1614
    %v1616 = vrot.slane %v65, %v1615
    %vm1617 = vcmask 523264
    %v1619 = vsel %vm1617, %v1609, 0
    %v1622 = vsel %vm1617, %v1610, 0
    %v1625 = vsel %vm1617, %v1611, 0
    %v1628 = vsel %vm1617, %v1612, 0
    %1630 = vmatprep.subr.mxu0 0.0
    %1631 = vmatpush1.msra.mxu0 %v57
    %1632 = vmatprep.subr.mxu0 0.0
    %1633 = vmatpush1.msra.mxu0 %v58
    %1634 = vmatprep.subr.mxu0 0.0
    %1635 = vmatpush1.msra.mxu0 %v59
    %1636 = vmatprep.subr.mxu0 0.0
    %1637 = vmatpush1.msra.mxu0 %v60
    %1638 = vmatprep.subr.mxu0 0.0
    %1639 = vmatpush1.msra.mxu0 %v61
    %1640 = vmatprep.subr.mxu0 0.0
    %1641 = vmatpush1.msra.mxu0 %v62
    %1642 = vmatprep.subr.mxu0 0.0
    %1643 = vmatpush1.msra.mxu0 %v63
    %1644 = vmatprep.subr.mxu0 0.0
    %1645 = vmatpush1.msra.mxu0 %v64
    %1646 = vmatprep.subr.mxu0 0.0
    %1647 = vmatpush1.msra.mxu0 0.0
    %1648 = vmatprep.subr.mxu0 0.0
    %1649 = vmatpush1.msra.mxu0 0.0
    %1650 = vmatprep.subr.mxu0 0.0
    %1651 = vmatpush1.msra.mxu0 0.0
    %1652 = vmatprep.subr.mxu0 0.0
    %1653 = vmatpush1.msra.mxu0 0.0
    %1654 = vmatprep.subr.mxu0 0.0
    %1655 = vmatpush1.msra.mxu0 0.0
    %1656 = vmatprep.subr.mxu0 0.0
    %1657 = vmatpush1.msra.mxu0 0.0
    %1658 = vmatprep.subr.mxu0 0.0
    %1659 = vmatpush1.msra.mxu0 0.0
    %1660 = vmatprep.subr.mxu0 0.0
    %1661 = vmatpush1.msra.mxu0 0.0
    %1662 = vmatprep.subr.mxu0 0.0
    %1663 = vmatpush1.msra.mxu0 0.0
    %1664 = vmatprep.subr.mxu0 0.0
    %1665 = vmatpush1.msra.mxu0 0.0
    %1666 = vmatprep.subr.mxu0 0.0
    %1667 = vmatpush1.msra.mxu0 0.0
    %1668 = vmatprep.subr.mxu0 0.0
    %1669 = vmatpush1.msra.mxu0 0.0
    %1670 = vmatprep.subr.mxu0 0.0
    %1671 = vmatpush1.msra.mxu0 0.0
    %1672 = vmatprep.subr.mxu0 0.0
    %1673 = vmatpush1.msra.mxu0 0.0
    %1674 = vmatprep.subr.mxu0 0.0
    %1675 = vmatpush1.msra.mxu0 0.0
    %1676 = vmatprep.subr.mxu0 0.0
    %1677 = vmatpush1.msra.mxu0 0.0
    %1678 = vmatprep.subr.mxu0 0.0
    %1679 = vmatpush1.msra.mxu0 0.0
    %1680 = vmatprep.subr.mxu0 0.0
    %1681 = vmatpush1.msra.mxu0 0.0
    %1682 = vmatprep.subr.mxu0 0.0
    %1683 = vmatpush1.msra.mxu0 0.0
    %1684 = vmatprep.subr.mxu0 0.0
    %1685 = vmatpush1.msra.mxu0 0.0
    %1686 = vmatprep.subr.mxu0 0.0
    %1687 = vmatpush1.msra.mxu0 0.0
    %1688 = vmatprep.subr.mxu0 0.0
    %1689 = vmatpush1.msra.mxu0 0.0
    %1690 = vmatprep.subr.mxu0 0.0
    %1691 = vmatpush1.msra.mxu0 0.0
    %1692 = vmatprep.subr.mxu0 0.0
    %1693 = vmatpush1.msra.mxu0 0.0
    %1694 = vmatprep.mubr.f32.mxu0 0.0
    %1695 = vmatmul.mubr.f32.gmra.mrb[0].mxu0 %v1619
    %v1696 = vpop.f32.mrb[0].mxu0
    %v1697 = vadd.f32 %v1616, %v1696
    %v1698 = vpop.f32.mrb[0].mxu0
    %1699 = vmatprep.mubr.f32.mxu0 0.0
    %1700 = vmatmul.mubr.f32.gmra.mrb[0].mxu0 %v1622
    %v1701 = vpop.f32.mrb[0].mxu0
    %v1702 = vadd.f32 %v1616, %v1701
    %v1703 = vpop.f32.mrb[0].mxu0
    %1704 = vmatprep.mubr.f32.mxu0 0.0
    %1705 = vmatmul.mubr.f32.gmra.mrb[0].mxu0 %v1625
    %v1706 = vpop.f32.mrb[0].mxu0
    %v1707 = vadd.f32 %v1616, %v1706
    %v1708 = vpop.f32.mrb[0].mxu0
    %1709 = vmatprep.mubr.f32.mxu0 0.0
    %1710 = vmatmul.mubr.f32.gmra.mrb[0].mxu0 %v1628
    %v1711 = vpop.f32.mrb[0].mxu0
    %v1712 = vadd.f32 %v1616, %v1711
    %v1713 = vpop.f32.mrb[0].mxu0
    %1714 = vdwg.mxu0
    %v1715 = vadd.f32 %v1504, %v1697
    %v1716 = vadd.f32 %v1505, %v1702
    %v1717 = vadd.f32 %v1506, %v1707
    %v1718 = vadd.f32 %v1507, %v1712
    %v1719 = vsel %vm70, %v1715, 0.0
    %1720 = vadd.xlane.f32.xlu0 %v1719
    %v1721 = vpop.xlane.xlu0 %1720
    %v1722 = vsel %vm70, %v1716, 0.0
    %1723 = vadd.xlane.f32.xlu0 %v1722
    %v1724 = vpop.xlane.xlu0 %1723
    %v1725 = vsel %vm70, %v1717, 0.0
    %1726 = vadd.xlane.f32.xlu0 %v1725
    %v1727 = vpop.xlane.xlu0 %1726
    %v1728 = vsel %vm1447, %v1718, 0.0
    %1729 = vadd.xlane.f32.xlu0 %v1728
    %v1730 = vpop.xlane.xlu0 %1729
    %v1731 = vmul.f32 %v1721, %v1451
    %v1732 = vmul.f32 %v1724, %v1451
    %v1733 = vmul.f32 %v1727, %v1451
    %v1734 = vmul.f32 %v1730, %v1451
    %v1735 = vsub.f32 %v1715, %v1731
    %v1736 = vsub.f32 %v1716, %v1732
    %v1737 = vsub.f32 %v1717, %v1733
    %v1738 = vsub.f32 %v1718, %v1734
    %v1739 = vmul.f32 %v1735, %v1735
    %v1740 = vmul.f32 %v1736, %v1736
    %v1741 = vmul.f32 %v1737, %v1737
    %v1742 = vmul.f32 %v1738, %v1738
    %v1743 = vsel %vm70, %v1739, 0.0
    %1744 = vadd.xlane.f32.xlu0 %v1743
    %v1745 = vpop.xlane.xlu0 %1744
    %v1746 = vsel %vm70, %v1740, 0.0
    %1747 = vadd.xlane.f32.xlu0 %v1746
    %v1748 = vpop.xlane.xlu0 %1747
    %v1749 = vsel %vm70, %v1741, 0.0
    %1750 = vadd.xlane.f32.xlu0 %v1749
    %v1751 = vpop.xlane.xlu0 %1750
    %v1752 = vsel %vm1447, %v1742, 0.0
    %1753 = vadd.xlane.f32.xlu0 %v1752
    %v1754 = vpop.xlane.xlu0 %1753
    %v1755 = vmul.f32 %v1745, %v1451
    %v1756 = vmul.f32 %v1748, %v1451
    %v1757 = vmul.f32 %v1751, %v1451
    %v1758 = vmul.f32 %v1754, %v1451
    %v1759 = vadd.f32 %v1755, 1e-05
    %v1760 = vadd.f32 %v1756, 1e-05
    %v1761 = vadd.f32 %v1757, 1e-05
    %v1762 = vadd.f32 %v1758, 1e-05
    %v1763 = vrsqrt.pop %v1759
    %v1764 = vrsqrt.pop %v1760
    %v1765 = vrsqrt.pop %v1761
    %v1766 = vrsqrt.pop %v1762
    %v1767 = vmul.f32 %v1735, %v1763
    %v1768 = vmul.f32 %v1736, %v1764
    %v1769 = vmul.f32 %v1737, %v1765
    %v1770 = vmul.f32 %v1738, %v1766
    %v1771 = vlaneseq
    %v1772 = vshrl.u32 %v1771, 7
    %v1773 = vsub.s32 6, %v1772
    %v1774 = vrot.slane %v65, %v1773
    %v1775 = vmul.f32 %v1767, %v1774
    %v1776 = vmul.f32 %v1768, %v1774
    %v1777 = vmul.f32 %v1769, %v1774
    %v1778 = vmul.f32 %v1770, %v1774
    %v1779 = vlaneseq
    %v1780 = vshrl.u32 %v1779, 7
    %v1781 = vsub.s32 7, %v1780
    %v1782 = vrot.slane %v65, %v1781
    %v1783 = vadd.f32 %v1775, %v1782
    %v1784 = vadd.f32 %v1776, %v1782
    %v1785 = vadd.f32 %v1777, %v1782
    %v1786 = vadd.f32 %v1778, %v1782
    %s1787 = scalar_lea.vmem %s1, 32
    %v1788 = vld [vmem:[%s1787] sm:$0xff]
    %v1789 = vld [vmem:[%s1787 + $0x8] sm:$0xff]
    %v1790 = vld [vmem:[%s1787 + $0x10] sm:$0xff]
    %v1791 = vld [vmem:[%s1787 + $0x18] sm:$0xff]
    %s1792 = scalar_lea.vmem %s2, 32
    %v1793 = vld [vmem:[%s1792] sm:$0xff]
    %v1794 = vld [vmem:[%s1792 + $0x8] sm:$0xff]
    %v1795 = vld [vmem:[%s1792 + $0x10] sm:$0xff]
    %v1796 = vld [vmem:[%s1792 + $0x18] sm:$0xff]
    %s1797 = scalar_lea.vmem %s3, 32
    %v1798 = vld [vmem:[%s1797] sm:$0xff]
    %v1799 = vld [vmem:[%s1797 + $0x8] sm:$0xff]
    %v1800 = vld [vmem:[%s1797 + $0x10] sm:$0xff]
    %v1801 = vld [vmem:[%s1797 + $0x18] sm:$0xff]
    %s1802 = scalar_lea.vmem %s4, 64
    %v1803 = vld [vmem:[%s1802] sm:$0xff]
    %v1804 = vld [vmem:[%s1802 + $0x8] sm:$0xff]
    %v1805 = vld [vmem:[%s1802 + $0x10] sm:$0xff]
    %v1806 = vld [vmem:[%s1802 + $0x18] sm:$0xff]
    %v1807 = vld [vmem:[%s1802 + $0x20] sm:$0xff]
    %v1808 = vld [vmem:[%s1802 + $0x28] sm:$0xff]
    %v1809 = vld [vmem:[%s1802 + $0x30] sm:$0xff]
    %v1810 = vld [vmem:[%s1802 + $0x38] sm:$0xff]
    %s1811 = scalar_lea.vmem %s5, 8
    %v1812 = vld [vmem:[%s1811] sm:$0xff]
    %v1813 = vlaneseq
    %v1814 = vshrl.u32 %v1813, 7
    %v1815 = vsub.s32 0, %v1814
    %v1816 = vrot.slane %v1812, %v1815
    %v1818 = vsel %vm70, %v1783, 0
    %v1821 = vsel %vm70, %v1784, 0
    %v1824 = vsel %vm70, %v1785, 0
    %v1827 = vsel %vm70, %v1786, 0
    %1829 = vmatprep.subr.mxu0 0.0
    %1830 = vmatpush1.msra.mxu0 %v1788
    %1831 = vmatprep.subr.mxu0 0.0
    %1832 = vmatpush1.msra.mxu0 %v1789
    %1833 = vmatprep.subr.mxu0 0.0
    %1834 = vmatpush1.msra.mxu0 %v1790
    %1835 = vmatprep.subr.mxu0 0.0
    %1836 = vmatpush1.msra.mxu0 %v1791
    %1837 = vmatprep.subr.mxu0 0.0
    %1838 = vmatpush1.msra.mxu0 0.0
    %1839 = vmatprep.subr.mxu0 0.0
    %1840 = vmatpush1.msra.mxu0 0.0
    %1841 = vmatprep.subr.mxu0 0.0
    %1842 = vmatpush1.msra.mxu0 0.0
    %1843 = vmatprep.subr.mxu0 0.0
    %1844 = vmatpush1.msra.mxu0 0.0
    %1845 = vmatprep.subr.mxu0 0.0
    %1846 = vmatpush1.msra.mxu0 0.0
    %1847 = vmatprep.subr.mxu0 0.0
    %1848 = vmatpush1.msra.mxu0 0.0
    %1849 = vmatprep.subr.mxu0 0.0
    %1850 = vmatpush1.msra.mxu0 0.0
    %1851 = vmatprep.subr.mxu0 0.0
    %1852 = vmatpush1.msra.mxu0 0.0
    %1853 = vmatprep.subr.mxu0 0.0
    %1854 = vmatpush1.msra.mxu0 0.0
    %1855 = vmatprep.subr.mxu0 0.0
    %1856 = vmatpush1.msra.mxu0 0.0
    %1857 = vmatprep.subr.mxu0 0.0
    %1858 = vmatpush1.msra.mxu0 0.0
    %1859 = vmatprep.subr.mxu0 0.0
    %1860 = vmatpush1.msra.mxu0 0.0
    %1861 = vmatprep.subr.mxu0 0.0
    %1862 = vmatpush1.msra.mxu0 0.0
    %1863 = vmatprep.subr.mxu0 0.0
    %1864 = vmatpush1.msra.mxu0 0.0
    %1865 = vmatprep.subr.mxu0 0.0
    %1866 = vmatpush1.msra.mxu0 0.0
    %1867 = vmatprep.subr.mxu0 0.0
    %1868 = vmatpush1.msra.mxu0 0.0
    %1869 = vmatprep.subr.mxu0 0.0
    %1870 = vmatpush1.msra.mxu0 0.0
    %1871 = vmatprep.subr.mxu0 0.0
    %1872 = vmatpush1.msra.mxu0 0.0
    %1873 = vmatprep.subr.mxu0 0.0
    %1874 = vmatpush1.msra.mxu0 0.0
    %1875 = vmatprep.subr.mxu0 0.0
    %1876 = vmatpush1.msra.mxu0 0.0
    %1877 = vmatprep.subr.mxu0 0.0
    %1878 = vmatpush1.msra.mxu0 0.0
    %1879 = vmatprep.subr.mxu0 0.0
    %1880 = vmatpush1.msra.mxu0 0.0
    %1881 = vmatprep.subr.mxu0 0.0
    %1882 = vmatpush1.msra.mxu0 0.0
    %1883 = vmatprep.subr.mxu0 0.0
    %1884 = vmatpush1.msra.mxu0 0.0
    %1885 = vmatprep.subr.mxu0 0.0
    %1886 = vmatpush1.msra.mxu0 0.0
    %1887 = vmatprep.subr.mxu0 0.0
    %1888 = vmatpush1.msra.mxu0 0.0
    %1889 = vmatprep.subr.mxu0 0.0
    %1890 = vmatpush1.msra.mxu0 0.0
    %1891 = vmatprep.subr.mxu0 0.0
    %1892 = vmatpush1.msra.mxu0 0.0
    %1893 = vmatprep.mubr.f32.mxu0 0.0
    %1894 = vmatmul.mubr.f32.gmra.mrb[0].mxu0 %v1818
    %v1895 = vpop.f32.mrb[0].mxu0
    %v1896 = vadd.f32 %v1816, %v1895
    %v1897 = vpop.f32.mrb[0].mxu0
    %1898 = vmatprep.mubr.f32.mxu0 0.0
    %1899 = vmatmul.mubr.f32.gmra.mrb[0].mxu0 %v1821
    %v1900 = vpop.f32.mrb[0].mxu0
    %v1901 = vadd.f32 %v1816, %v1900
    %v1902 = vpop.f32.mrb[0].mxu0
    %1903 = vmatprep.mubr.f32.mxu0 0.0
    %1904 = vmatmul.mubr.f32.gmra.mrb[0].mxu0 %v1824
    %v1905 = vpop.f32.mrb[0].mxu0
    %v1906 = vadd.f32 %v1816, %v1905
    %v1907 = vpop.f32.mrb[0].mxu0
    %1908 = vmatprep.mubr.f32.mxu0 0.0
    %1909 = vmatmul.mubr.f32.gmra.mrb[0].mxu0 %v1827
    %v1910 = vpop.f32.mrb[0].mxu0
    %v1911 = vadd.f32 %v1816, %v1910
    %v1912 = vpop.f32.mrb[0].mxu0
    %1913 = vdwg.mxu0
    %1918 = vrot.lane.b32.xlu0 %v1896, 96
    %v1919 = vpop.permute.xlu0 %1918
    %1920 = vrot.lane.b32.xlu0 %v1901, 96
    %v1921 = vpop.permute.xlu0 %1920
    %1922 = vrot.lane.b32.xlu0 %v1906, 96
    %v1923 = vpop.permute.xlu0 %1922
    %1924 = vrot.lane.b32.xlu0 %v1911, 96
    %v1925 = vpop.permute.xlu0 %1924
    %v1926 = vsel %vm180, %v1896, 0
    %v1928 = vsel %vm180, %v1901, 0
    %v1930 = vsel %vm180, %v1906, 0
    %v1932 = vsel %vm180, %v1911, 0
    %v1934 = vsel %vm180, %v1919, 0
    %v1936 = vsel %vm180, %v1921, 0
    %v1938 = vsel %vm180, %v1923, 0
    %v1940 = vsel %vm180, %v1925, 0
    %1942 = vmatprep.subr.mxu0 0.0
    %1943 = vmatpush1.xpose.msra.mxu0 %v1934
    %1944 = vmatprep.subr.mxu0 0.0
    %1945 = vmatpush1.xpose.msra.mxu0 %v1936
    %1946 = vmatprep.subr.mxu0 0.0
    %1947 = vmatpush1.xpose.msra.mxu0 %v1938
    %1948 = vmatprep.subr.mxu0 0.0
    %1949 = vmatpush1.xpose.msra.mxu0 %v1940
    %1950 = vmatprep.subr.mxu0 0.0
    %1951 = vmatpush1.xpose.msra.mxu0 0.0
    %1952 = vmatprep.subr.mxu0 0.0
    %1953 = vmatpush1.xpose.msra.mxu0 0.0
    %1954 = vmatprep.subr.mxu0 0.0
    %1955 = vmatpush1.xpose.msra.mxu0 0.0
    %1956 = vmatprep.subr.mxu0 0.0
    %1957 = vmatpush1.xpose.msra.mxu0 0.0
    %1958 = vmatprep.subr.mxu0 0.0
    %1959 = vmatpush1.xpose.msra.mxu0 0.0
    %1960 = vmatprep.subr.mxu0 0.0
    %1961 = vmatpush1.xpose.msra.mxu0 0.0
    %1962 = vmatprep.subr.mxu0 0.0
    %1963 = vmatpush1.xpose.msra.mxu0 0.0
    %1964 = vmatprep.subr.mxu0 0.0
    %1965 = vmatpush1.xpose.msra.mxu0 0.0
    %1966 = vmatprep.subr.mxu0 0.0
    %1967 = vmatpush1.xpose.msra.mxu0 0.0
    %1968 = vmatprep.subr.mxu0 0.0
    %1969 = vmatpush1.xpose.msra.mxu0 0.0
    %1970 = vmatprep.subr.mxu0 0.0
    %1971 = vmatpush1.xpose.msra.mxu0 0.0
    %1972 = vmatprep.subr.mxu0 0.0
    %1973 = vmatpush1.xpose.msra.mxu0 0.0
    %1974 = vmatprep.subr.mxu0 0.0
    %1975 = vmatpush1.xpose.msra.mxu0 0.0
    %1976 = vmatprep.subr.mxu0 0.0
    %1977 = vmatpush1.xpose.msra.mxu0 0.0
    %1978 = vmatprep.subr.mxu0 0.0
    %1979 = vmatpush1.xpose.msra.mxu0 0.0
    %1980 = vmatprep.subr.mxu0 0.0
    %1981 = vmatpush1.xpose.msra.mxu0 0.0
    %1982 = vmatprep.subr.mxu0 0.0
    %1983 = vmatpush1.xpose.msra.mxu0 0.0
    %1984 = vmatprep.subr.mxu0 0.0
    %1985 = vmatpush1.xpose.msra.mxu0 0.0
    %1986 = vmatprep.subr.mxu0 0.0
    %1987 = vmatpush1.xpose.msra.mxu0 0.0
    %1988 = vmatprep.subr.mxu0 0.0
    %1989 = vmatpush1.xpose.msra.mxu0 0.0
    %1990 = vmatprep.subr.mxu0 0.0
    %1991 = vmatpush1.xpose.msra.mxu0 0.0
    %1992 = vmatprep.subr.mxu0 0.0
    %1993 = vmatpush1.xpose.msra.mxu0 0.0
    %1994 = vmatprep.subr.mxu0 0.0
    %1995 = vmatpush1.xpose.msra.mxu0 0.0
    %1996 = vmatprep.subr.mxu0 0.0
    %1997 = vmatpush1.xpose.msra.mxu0 0.0
    %1998 = vmatprep.subr.mxu0 0.0
    %1999 = vmatpush1.xpose.msra.mxu0 0.0
    %2000 = vmatprep.subr.mxu0 0.0
    %2001 = vmatpush1.xpose.msra.mxu0 0.0
    %2002 = vmatprep.subr.mxu0 0.0
    %2003 = vmatpush1.xpose.msra.mxu0 0.0
    %2004 = vmatprep.subr.mxu0 0.0
    %2005 = vmatpush1.xpose.msra.mxu0 0.0
    %2006 = vmatprep.mubr.f32.mxu0 0.0
    %2007 = vmatmul.mubr.f32.gmra.mrb[0].mxu0 %v1926
    %v2008 = vpop.f32.mrb[0].mxu0
    %v2009 = vadd.f32 0.0, %v2008
    %v2010 = vpop.f32.mrb[0].mxu0
    %2011 = vmatprep.mubr.f32.mxu0 0.0
    %2012 = vmatmul.mubr.f32.gmra.mrb[0].mxu0 %v1928
    %v2013 = vpop.f32.mrb[0].mxu0
    %v2014 = vadd.f32 0.0, %v2013
    %v2015 = vpop.f32.mrb[0].mxu0
    %2016 = vmatprep.mubr.f32.mxu0 0.0
    %2017 = vmatmul.mubr.f32.gmra.mrb[0].mxu0 %v1930
    %v2018 = vpop.f32.mrb[0].mxu0
    %v2019 = vadd.f32 0.0, %v2018
    %v2020 = vpop.f32.mrb[0].mxu0
    %2021 = vmatprep.mubr.f32.mxu0 0.0
    %2022 = vmatmul.mubr.f32.gmra.mrb[0].mxu0 %v1932
    %v2023 = vpop.f32.mrb[0].mxu0
    %v2024 = vadd.f32 0.0, %v2023
    %v2025 = vpop.f32.mrb[0].mxu0
    %2026 = vdwg.mxu0
    %v2027 = vsel %vm282, %v2009, -inf
    %2028 = vmax.xlane.f32.xlu0 %v2027
    %v2029 = vpop.xlane.xlu0 %2028
    %v2030 = vsel %vm282, %v2014, -inf
    %2031 = vmax.xlane.f32.xlu0 %v2030
    %v2032 = vpop.xlane.xlu0 %2031
    %v2033 = vsel %vm282, %v2019, -inf
    %2034 = vmax.xlane.f32.xlu0 %v2033
    %v2035 = vpop.xlane.xlu0 %2034
    %v2036 = vsel %vm292, %v2024, -inf
    %2037 = vmax.xlane.f32.xlu0 %v2036
    %v2038 = vpop.xlane.xlu0 %2037
    %v2039 = vsub.f32 %v2009, %v2029
    %v2040 = vsub.f32 %v2014, %v2032
    %v2041 = vsub.f32 %v2019, %v2035
    %v2042 = vsub.f32 %v2024, %v2038
    %v2043 = vmul.f32 %v2039, 1.442695
    %v2044 = vpow.pop %v2043
    %v2045 = vmul.f32 %v2040, 1.442695
    %v2046 = vpow.pop %v2045
    %v2047 = vmul.f32 %v2041, 1.442695
    %v2048 = vpow.pop %v2047
    %v2049 = vmul.f32 %v2042, 1.442695
    %v2050 = vpow.pop %v2049
    %v2051 = vsel %vm282, %v2044, 0.0
    %2052 = vadd.xlane.f32.xlu0 %v2051
    %v2053 = vpop.xlane.xlu0 %2052
    %v2054 = vsel %vm282, %v2046, 0.0
    %2055 = vadd.xlane.f32.xlu0 %v2054
    %v2056 = vpop.xlane.xlu0 %2055
    %v2057 = vsel %vm282, %v2048, 0.0
    %2058 = vadd.xlane.f32.xlu0 %v2057
    %v2059 = vpop.xlane.xlu0 %2058
    %v2060 = vsel %vm292, %v2050, 0.0
    %2061 = vadd.xlane.f32.xlu0 %v2060
    %v2062 = vpop.xlane.xlu0 %2061
    %v2063 = vrcp.pop %v2053
    %v2064 = vrcp.pop %v2056
    %v2065 = vrcp.pop %v2059
    %v2066 = vrcp.pop %v2062
    %v2067 = vmul.f32 %v2044, %v2063
    %v2068 = vmul.f32 %v2046, %v2064
    %v2069 = vmul.f32 %v2048, %v2065
    %v2070 = vmul.f32 %v2050, %v2066
    %s2071 = scalar_lea.vmem %s7, 128
    %2072 = vst.msk [vmem:[%s2071] sm:$0xff] %vm282, %v2067
    %2073 = vst.msk [vmem:[%s2071 + $0x8] sm:$0xff] %vm282, %v2068
    %2074 = vst.msk [vmem:[%s2071 + $0x10] sm:$0xff] %vm282, %v2069
    %2075 = vst.msk [vmem:[%s2071 + $0x18] sm:$0x1] %vm292, %v2070
    %2076 = vrot.lane.b32.xlu0 %v1896, 64
    %v2077 = vpop.permute.xlu0 %2076
    %2078 = vrot.lane.b32.xlu0 %v1901, 64
    %v2079 = vpop.permute.xlu0 %2078
    %2080 = vrot.lane.b32.xlu0 %v1906, 64
    %v2081 = vpop.permute.xlu0 %2080
    %2082 = vrot.lane.b32.xlu0 %v1911, 64
    %v2083 = vpop.permute.xlu0 %2082
    %v2088 = vsel %vm282, %v2067, 0
    %v2091 = vsel %vm282, %v2068, 0
    %v2094 = vsel %vm282, %v2069, 0
    %v2097 = vsel %vm282, %v2070, 0
    %v2099 = vsel %vm355, %v2083, 0
    %2101 = vmatprep.subr.mxu0 0.0
    %2102 = vmatpush1.msra.mxu0 %v2077
    %2103 = vmatprep.subr.mxu0 0.0
    %2104 = vmatpush1.msra.mxu0 %v2079
    %2105 = vmatprep.subr.mxu0 0.0
    %2106 = vmatpush1.msra.mxu0 %v2081
    %2107 = vmatprep.subr.mxu0 0.0
    %2108 = vmatpush1.msra.mxu0 %v2099
    %2109 = vmatprep.subr.mxu0 0.0
    %2110 = vmatpush1.msra.mxu0 0.0
    %2111 = vmatprep.subr.mxu0 0.0
    %2112 = vmatpush1.msra.mxu0 0.0
    %2113 = vmatprep.subr.mxu0 0.0
    %2114 = vmatpush1.msra.mxu0 0.0
    %2115 = vmatprep.subr.mxu0 0.0
    %2116 = vmatpush1.msra.mxu0 0.0
    %2117 = vmatprep.subr.mxu0 0.0
    %2118 = vmatpush1.msra.mxu0 0.0
    %2119 = vmatprep.subr.mxu0 0.0
    %2120 = vmatpush1.msra.mxu0 0.0
    %2121 = vmatprep.subr.mxu0 0.0
    %2122 = vmatpush1.msra.mxu0 0.0
    %2123 = vmatprep.subr.mxu0 0.0
    %2124 = vmatpush1.msra.mxu0 0.0
    %2125 = vmatprep.subr.mxu0 0.0
    %2126 = vmatpush1.msra.mxu0 0.0
    %2127 = vmatprep.subr.mxu0 0.0
    %2128 = vmatpush1.msra.mxu0 0.0
    %2129 = vmatprep.subr.mxu0 0.0
    %2130 = vmatpush1.msra.mxu0 0.0
    %2131 = vmatprep.subr.mxu0 0.0
    %2132 = vmatpush1.msra.mxu0 0.0
    %2133 = vmatprep.subr.mxu0 0.0
    %2134 = vmatpush1.msra.mxu0 0.0
    %2135 = vmatprep.subr.mxu0 0.0
    %2136 = vmatpush1.msra.mxu0 0.0
    %2137 = vmatprep.subr.mxu0 0.0
    %2138 = vmatpush1.msra.mxu0 0.0
    %2139 = vmatprep.subr.mxu0 0.0
    %2140 = vmatpush1.msra.mxu0 0.0
    %2141 = vmatprep.subr.mxu0 0.0
    %2142 = vmatpush1.msra.mxu0 0.0
    %2143 = vmatprep.subr.mxu0 0.0
    %2144 = vmatpush1.msra.mxu0 0.0
    %2145 = vmatprep.subr.mxu0 0.0
    %2146 = vmatpush1.msra.mxu0 0.0
    %2147 = vmatprep.subr.mxu0 0.0
    %2148 = vmatpush1.msra.mxu0 0.0
    %2149 = vmatprep.subr.mxu0 0.0
    %2150 = vmatpush1.msra.mxu0 0.0
    %2151 = vmatprep.subr.mxu0 0.0
    %2152 = vmatpush1.msra.mxu0 0.0
    %2153 = vmatprep.subr.mxu0 0.0
    %2154 = vmatpush1.msra.mxu0 0.0
    %2155 = vmatprep.subr.mxu0 0.0
    %2156 = vmatpush1.msra.mxu0 0.0
    %2157 = vmatprep.subr.mxu0 0.0
    %2158 = vmatpush1.msra.mxu0 0.0
    %2159 = vmatprep.subr.mxu0 0.0
    %2160 = vmatpush1.msra.mxu0 0.0
    %2161 = vmatprep.subr.mxu0 0.0
    %2162 = vmatpush1.msra.mxu0 0.0
    %2163 = vmatprep.subr.mxu0 0.0
    %2164 = vmatpush1.msra.mxu0 0.0
    %2165 = vmatprep.mubr.f32.mxu0 0.0
    %2166 = vmatmul.mubr.f32.gmra.mrb[0].mxu0 %v2088
    %v2167 = vpop.f32.mrb[0].mxu0
    %v2168 = vadd.f32 0.0, %v2167
    %v2169 = vpop.f32.mrb[0].mxu0
    %2170 = vmatprep.mubr.f32.mxu0 0.0
    %2171 = vmatmul.mubr.f32.gmra.mrb[0].mxu0 %v2091
    %v2172 = vpop.f32.mrb[0].mxu0
    %v2173 = vadd.f32 0.0, %v2172
    %v2174 = vpop.f32.mrb[0].mxu0
    %2175 = vmatprep.mubr.f32.mxu0 0.0
    %2176 = vmatmul.mubr.f32.gmra.mrb[0].mxu0 %v2094
    %v2177 = vpop.f32.mrb[0].mxu0
    %v2178 = vadd.f32 0.0, %v2177
    %v2179 = vpop.f32.mrb[0].mxu0
    %2180 = vmatprep.mubr.f32.mxu0 0.0
    %2181 = vmatmul.mubr.f32.gmra.mrb[0].mxu0 %v2097
    %v2182 = vpop.f32.mrb[0].mxu0
    %v2183 = vadd.f32 0.0, %v2182
    %v2184 = vpop.f32.mrb[0].mxu0
    %2185 = vdwg.mxu0
    %2186 = vrot.lane.b32.xlu0 %v1896, 120
    %v2187 = vpop.permute.xlu0 %2186
    %2188 = vrot.lane.b32.xlu0 %v1901, 120
    %v2189 = vpop.permute.xlu0 %2188
    %2190 = vrot.lane.b32.xlu0 %v1906, 120
    %v2191 = vpop.permute.xlu0 %2190
    %2192 = vrot.lane.b32.xlu0 %v1911, 120
    %v2193 = vpop.permute.xlu0 %2192
    %2194 = vrot.lane.b32.xlu0 %v1896, 88
    %v2195 = vpop.permute.xlu0 %2194
    %2196 = vrot.lane.b32.xlu0 %v1901, 88
    %v2197 = vpop.permute.xlu0 %2196
    %2198 = vrot.lane.b32.xlu0 %v1906, 88
    %v2199 = vpop.permute.xlu0 %2198
    %2200 = vrot.lane.b32.xlu0 %v1911, 88
    %v2201 = vpop.permute.xlu0 %2200
    %v2202 = vsel %vm180, %v2187, 0
    %v2204 = vsel %vm180, %v2189, 0
    %v2206 = vsel %vm180, %v2191, 0
    %v2208 = vsel %vm180, %v2193, 0
    %v2210 = vsel %vm180, %v2195, 0
    %v2212 = vsel %vm180, %v2197, 0
    %v2214 = vsel %vm180, %v2199, 0
    %v2216 = vsel %vm180, %v2201, 0
    %2218 = vmatprep.subr.mxu0 0.0
    %2219 = vmatpush1.xpose.msra.mxu0 %v2210
    %2220 = vmatprep.subr.mxu0 0.0
    %2221 = vmatpush1.xpose.msra.mxu0 %v2212
    %2222 = vmatprep.subr.mxu0 0.0
    %2223 = vmatpush1.xpose.msra.mxu0 %v2214
    %2224 = vmatprep.subr.mxu0 0.0
    %2225 = vmatpush1.xpose.msra.mxu0 %v2216
    %2226 = vmatprep.subr.mxu0 0.0
    %2227 = vmatpush1.xpose.msra.mxu0 0.0
    %2228 = vmatprep.subr.mxu0 0.0
    %2229 = vmatpush1.xpose.msra.mxu0 0.0
    %2230 = vmatprep.subr.mxu0 0.0
    %2231 = vmatpush1.xpose.msra.mxu0 0.0
    %2232 = vmatprep.subr.mxu0 0.0
    %2233 = vmatpush1.xpose.msra.mxu0 0.0
    %2234 = vmatprep.subr.mxu0 0.0
    %2235 = vmatpush1.xpose.msra.mxu0 0.0
    %2236 = vmatprep.subr.mxu0 0.0
    %2237 = vmatpush1.xpose.msra.mxu0 0.0
    %2238 = vmatprep.subr.mxu0 0.0
    %2239 = vmatpush1.xpose.msra.mxu0 0.0
    %2240 = vmatprep.subr.mxu0 0.0
    %2241 = vmatpush1.xpose.msra.mxu0 0.0
    %2242 = vmatprep.subr.mxu0 0.0
    %2243 = vmatpush1.xpose.msra.mxu0 0.0
    %2244 = vmatprep.subr.mxu0 0.0
    %2245 = vmatpush1.xpose.msra.mxu0 0.0
    %2246 = vmatprep.subr.mxu0 0.0
    %2247 = vmatpush1.xpose.msra.mxu0 0.0
    %2248 = vmatprep.subr.mxu0 0.0
    %2249 = vmatpush1.xpose.msra.mxu0 0.0
    %2250 = vmatprep.subr.mxu0 0.0
    %2251 = vmatpush1.xpose.msra.mxu0 0.0
    %2252 = vmatprep.subr.mxu0 0.0
    %2253 = vmatpush1.xpose.msra.mxu0 0.0
    %2254 = vmatprep.subr.mxu0 0.0
    %2255 = vmatpush1.xpose.msra.mxu0 0.0
    %2256 = vmatprep.subr.mxu0 0.0
    %2257 = vmatpush1.xpose.msra.mxu0 0.0
    %2258 = vmatprep.subr.mxu0 0.0
    %2259 = vmatpush1.xpose.msra.mxu0 0.0
    %2260 = vmatprep.subr.mxu0 0.0
    %2261 = vmatpush1.xpose.msra.mxu0 0.0
    %2262 = vmatprep.subr.mxu0 0.0
    %2263 = vmatpush1.xpose.msra.mxu0 0.0
    %2264 = vmatprep.subr.mxu0 0.0
    %2265 = vmatpush1.xpose.msra.mxu0 0.0
    %2266 = vmatprep.subr.mxu0 0.0
    %2267 = vmatpush1.xpose.msra.mxu0 0.0
    %2268 = vmatprep.subr.mxu0 0.0
    %2269 = vmatpush1.xpose.msra.mxu0 0.0
    %2270 = vmatprep.subr.mxu0 0.0
    %2271 = vmatpush1.xpose.msra.mxu0 0.0
    %2272 = vmatprep.subr.mxu0 0.0
    %2273 = vmatpush1.xpose.msra.mxu0 0.0
    %2274 = vmatprep.subr.mxu0 0.0
    %2275 = vmatpush1.xpose.msra.mxu0 0.0
    %2276 = vmatprep.subr.mxu0 0.0
    %2277 = vmatpush1.xpose.msra.mxu0 0.0
    %2278 = vmatprep.subr.mxu0 0.0
    %2279 = vmatpush1.xpose.msra.mxu0 0.0
    %2280 = vmatprep.subr.mxu0 0.0
    %2281 = vmatpush1.xpose.msra.mxu0 0.0
    %2282 = vmatprep.mubr.f32.mxu0 0.0
    %2283 = vmatmul.mubr.f32.gmra.mrb[0].mxu0 %v2202
    %v2284 = vpop.f32.mrb[0].mxu0
    %v2285 = vadd.f32 0.0, %v2284
    %v2286 = vpop.f32.mrb[0].mxu0
    %2287 = vmatprep.mubr.f32.mxu0 0.0
    %2288 = vmatmul.mubr.f32.gmra.mrb[0].mxu0 %v2204
    %v2289 = vpop.f32.mrb[0].mxu0
    %v2290 = vadd.f32 0.0, %v2289
    %v2291 = vpop.f32.mrb[0].mxu0
    %2292 = vmatprep.mubr.f32.mxu0 0.0
    %2293 = vmatmul.mubr.f32.gmra.mrb[0].mxu0 %v2206
    %v2294 = vpop.f32.mrb[0].mxu0
    %v2295 = vadd.f32 0.0, %v2294
    %v2296 = vpop.f32.mrb[0].mxu0
    %2297 = vmatprep.mubr.f32.mxu0 0.0
    %2298 = vmatmul.mubr.f32.gmra.mrb[0].mxu0 %v2208
    %v2299 = vpop.f32.mrb[0].mxu0
    %v2300 = vadd.f32 0.0, %v2299
    %v2301 = vpop.f32.mrb[0].mxu0
    %2302 = vdwg.mxu0
    %v2303 = vsel %vm282, %v2285, -inf
    %2304 = vmax.xlane.f32.xlu0 %v2303
    %v2305 = vpop.xlane.xlu0 %2304
    %v2306 = vsel %vm282, %v2290, -inf
    %2307 = vmax.xlane.f32.xlu0 %v2306
    %v2308 = vpop.xlane.xlu0 %2307
    %v2309 = vsel %vm282, %v2295, -inf
    %2310 = vmax.xlane.f32.xlu0 %v2309
    %v2311 = vpop.xlane.xlu0 %2310
    %v2312 = vsel %vm292, %v2300, -inf
    %2313 = vmax.xlane.f32.xlu0 %v2312
    %v2314 = vpop.xlane.xlu0 %2313
    %v2315 = vsub.f32 %v2285, %v2305
    %v2316 = vsub.f32 %v2290, %v2308
    %v2317 = vsub.f32 %v2295, %v2311
    %v2318 = vsub.f32 %v2300, %v2314
    %v2319 = vmul.f32 %v2315, 1.442695
    %v2320 = vpow.pop %v2319
    %v2321 = vmul.f32 %v2316, 1.442695
    %v2322 = vpow.pop %v2321
    %v2323 = vmul.f32 %v2317, 1.442695
    %v2324 = vpow.pop %v2323
    %v2325 = vmul.f32 %v2318, 1.442695
    %v2326 = vpow.pop %v2325
    %v2327 = vsel %vm282, %v2320, 0.0
    %2328 = vadd.xlane.f32.xlu0 %v2327
    %v2329 = vpop.xlane.xlu0 %2328
    %v2330 = vsel %vm282, %v2322, 0.0
    %2331 = vadd.xlane.f32.xlu0 %v2330
    %v2332 = vpop.xlane.xlu0 %2331
    %v2333 = vsel %vm282, %v2324, 0.0
    %2334 = vadd.xlane.f32.xlu0 %v2333
    %v2335 = vpop.xlane.xlu0 %2334
    %v2336 = vsel %vm292, %v2326, 0.0
    %2337 = vadd.xlane.f32.xlu0 %v2336
    %v2338 = vpop.xlane.xlu0 %2337
    %v2339 = vrcp.pop %v2329
    %v2340 = vrcp.pop %v2332
    %v2341 = vrcp.pop %v2335
    %v2342 = vrcp.pop %v2338
    %v2343 = vmul.f32 %v2320, %v2339
    %v2344 = vmul.f32 %v2322, %v2340
    %v2345 = vmul.f32 %v2324, %v2341
    %v2346 = vmul.f32 %v2326, %v2342
    %s2347 = scalar_lea.vmem %s7, 160
    %2348 = vst.msk [vmem:[%s2347] sm:$0xff] %vm282, %v2343
    %2349 = vst.msk [vmem:[%s2347 + $0x8] sm:$0xff] %vm282, %v2344
    %2350 = vst.msk [vmem:[%s2347 + $0x10] sm:$0xff] %vm282, %v2345
    %2351 = vst.msk [vmem:[%s2347 + $0x18] sm:$0x1] %vm292, %v2346
    %2352 = vrot.lane.b32.xlu0 %v1896, 56
    %v2353 = vpop.permute.xlu0 %2352
    %2354 = vrot.lane.b32.xlu0 %v1901, 56
    %v2355 = vpop.permute.xlu0 %2354
    %2356 = vrot.lane.b32.xlu0 %v1906, 56
    %v2357 = vpop.permute.xlu0 %2356
    %2358 = vrot.lane.b32.xlu0 %v1911, 56
    %v2359 = vpop.permute.xlu0 %2358
    %v2364 = vsel %vm282, %v2343, 0
    %v2367 = vsel %vm282, %v2344, 0
    %v2370 = vsel %vm282, %v2345, 0
    %v2373 = vsel %vm282, %v2346, 0
    %v2375 = vsel %vm355, %v2359, 0
    %2377 = vmatprep.subr.mxu0 0.0
    %2378 = vmatpush1.msra.mxu0 %v2353
    %2379 = vmatprep.subr.mxu0 0.0
    %2380 = vmatpush1.msra.mxu0 %v2355
    %2381 = vmatprep.subr.mxu0 0.0
    %2382 = vmatpush1.msra.mxu0 %v2357
    %2383 = vmatprep.subr.mxu0 0.0
    %2384 = vmatpush1.msra.mxu0 %v2375
    %2385 = vmatprep.subr.mxu0 0.0
    %2386 = vmatpush1.msra.mxu0 0.0
    %2387 = vmatprep.subr.mxu0 0.0
    %2388 = vmatpush1.msra.mxu0 0.0
    %2389 = vmatprep.subr.mxu0 0.0
    %2390 = vmatpush1.msra.mxu0 0.0
    %2391 = vmatprep.subr.mxu0 0.0
    %2392 = vmatpush1.msra.mxu0 0.0
    %2393 = vmatprep.subr.mxu0 0.0
    %2394 = vmatpush1.msra.mxu0 0.0
    %2395 = vmatprep.subr.mxu0 0.0
    %2396 = vmatpush1.msra.mxu0 0.0
    %2397 = vmatprep.subr.mxu0 0.0
    %2398 = vmatpush1.msra.mxu0 0.0
    %2399 = vmatprep.subr.mxu0 0.0
    %2400 = vmatpush1.msra.mxu0 0.0
    %2401 = vmatprep.subr.mxu0 0.0
    %2402 = vmatpush1.msra.mxu0 0.0
    %2403 = vmatprep.subr.mxu0 0.0
    %2404 = vmatpush1.msra.mxu0 0.0
    %2405 = vmatprep.subr.mxu0 0.0
    %2406 = vmatpush1.msra.mxu0 0.0
    %2407 = vmatprep.subr.mxu0 0.0
    %2408 = vmatpush1.msra.mxu0 0.0
    %2409 = vmatprep.subr.mxu0 0.0
    %2410 = vmatpush1.msra.mxu0 0.0
    %2411 = vmatprep.subr.mxu0 0.0
    %2412 = vmatpush1.msra.mxu0 0.0
    %2413 = vmatprep.subr.mxu0 0.0
    %2414 = vmatpush1.msra.mxu0 0.0
    %2415 = vmatprep.subr.mxu0 0.0
    %2416 = vmatpush1.msra.mxu0 0.0
    %2417 = vmatprep.subr.mxu0 0.0
    %2418 = vmatpush1.msra.mxu0 0.0
    %2419 = vmatprep.subr.mxu0 0.0
    %2420 = vmatpush1.msra.mxu0 0.0
    %2421 = vmatprep.subr.mxu0 0.0
    %2422 = vmatpush1.msra.mxu0 0.0
    %2423 = vmatprep.subr.mxu0 0.0
    %2424 = vmatpush1.msra.mxu0 0.0
    %2425 = vmatprep.subr.mxu0 0.0
    %2426 = vmatpush1.msra.mxu0 0.0
    %2427 = vmatprep.subr.mxu0 0.0
    %2428 = vmatpush1.msra.mxu0 0.0
    %2429 = vmatprep.subr.mxu0 0.0
    %2430 = vmatpush1.msra.mxu0 0.0
    %2431 = vmatprep.subr.mxu0 0.0
    %2432 = vmatpush1.msra.mxu0 0.0
    %2433 = vmatprep.subr.mxu0 0.0
    %2434 = vmatpush1.msra.mxu0 0.0
    %2435 = vmatprep.subr.mxu0 0.0
    %2436 = vmatpush1.msra.mxu0 0.0
    %2437 = vmatprep.subr.mxu0 0.0
    %2438 = vmatpush1.msra.mxu0 0.0
    %2439 = vmatprep.subr.mxu0 0.0
    %2440 = vmatpush1.msra.mxu0 0.0
    %2441 = vmatprep.mubr.f32.mxu0 0.0
    %2442 = vmatmul.mubr.f32.gmra.mrb[0].mxu0 %v2364
    %v2443 = vpop.f32.mrb[0].mxu0
    %v2444 = vadd.f32 0.0, %v2443
    %v2445 = vpop.f32.mrb[0].mxu0
    %2446 = vmatprep.mubr.f32.mxu0 0.0
    %2447 = vmatmul.mubr.f32.gmra.mrb[0].mxu0 %v2367
    %v2448 = vpop.f32.mrb[0].mxu0
    %v2449 = vadd.f32 0.0, %v2448
    %v2450 = vpop.f32.mrb[0].mxu0
    %2451 = vmatprep.mubr.f32.mxu0 0.0
    %2452 = vmatmul.mubr.f32.gmra.mrb[0].mxu0 %v2370
    %v2453 = vpop.f32.mrb[0].mxu0
    %v2454 = vadd.f32 0.0, %v2453
    %v2455 = vpop.f32.mrb[0].mxu0
    %2456 = vmatprep.mubr.f32.mxu0 0.0
    %2457 = vmatmul.mubr.f32.gmra.mrb[0].mxu0 %v2373
    %v2458 = vpop.f32.mrb[0].mxu0
    %v2459 = vadd.f32 0.0, %v2458
    %v2460 = vpop.f32.mrb[0].mxu0
    %2461 = vdwg.mxu0
    %2462 = vrot.lane.b32.xlu0 %v1896, 112
    %v2463 = vpop.permute.xlu0 %2462
    %2464 = vrot.lane.b32.xlu0 %v1901, 112
    %v2465 = vpop.permute.xlu0 %2464
    %2466 = vrot.lane.b32.xlu0 %v1906, 112
    %v2467 = vpop.permute.xlu0 %2466
    %2468 = vrot.lane.b32.xlu0 %v1911, 112
    %v2469 = vpop.permute.xlu0 %2468
    %2470 = vrot.lane.b32.xlu0 %v1896, 80
    %v2471 = vpop.permute.xlu0 %2470
    %2472 = vrot.lane.b32.xlu0 %v1901, 80
    %v2473 = vpop.permute.xlu0 %2472
    %2474 = vrot.lane.b32.xlu0 %v1906, 80
    %v2475 = vpop.permute.xlu0 %2474
    %2476 = vrot.lane.b32.xlu0 %v1911, 80
    %v2477 = vpop.permute.xlu0 %2476
    %v2478 = vsel %vm180, %v2463, 0
    %v2480 = vsel %vm180, %v2465, 0
    %v2482 = vsel %vm180, %v2467, 0
    %v2484 = vsel %vm180, %v2469, 0
    %v2486 = vsel %vm180, %v2471, 0
    %v2488 = vsel %vm180, %v2473, 0
    %v2490 = vsel %vm180, %v2475, 0
    %v2492 = vsel %vm180, %v2477, 0
    %2494 = vmatprep.subr.mxu0 0.0
    %2495 = vmatpush1.xpose.msra.mxu0 %v2486
    %2496 = vmatprep.subr.mxu0 0.0
    %2497 = vmatpush1.xpose.msra.mxu0 %v2488
    %2498 = vmatprep.subr.mxu0 0.0
    %2499 = vmatpush1.xpose.msra.mxu0 %v2490
    %2500 = vmatprep.subr.mxu0 0.0
    %2501 = vmatpush1.xpose.msra.mxu0 %v2492
    %2502 = vmatprep.subr.mxu0 0.0
    %2503 = vmatpush1.xpose.msra.mxu0 0.0
    %2504 = vmatprep.subr.mxu0 0.0
    %2505 = vmatpush1.xpose.msra.mxu0 0.0
    %2506 = vmatprep.subr.mxu0 0.0
    %2507 = vmatpush1.xpose.msra.mxu0 0.0
    %2508 = vmatprep.subr.mxu0 0.0
    %2509 = vmatpush1.xpose.msra.mxu0 0.0
    %2510 = vmatprep.subr.mxu0 0.0
    %2511 = vmatpush1.xpose.msra.mxu0 0.0
    %2512 = vmatprep.subr.mxu0 0.0
    %2513 = vmatpush1.xpose.msra.mxu0 0.0
    %2514 = vmatprep.subr.mxu0 0.0
    %2515 = vmatpush1.xpose.msra.mxu0 0.0
    %2516 = vmatprep.subr.mxu0 0.0
    %2517 = vmatpush1.xpose.msra.mxu0 0.0
    %2518 = vmatprep.subr.mxu0 0.0
    %2519 = vmatpush1.xpose.msra.mxu0 0.0
    %2520 = vmatprep.subr.mxu0 0.0
    %2521 = vmatpush1.xpose.msra.mxu0 0.0
    %2522 = vmatprep.subr.mxu0 0.0
    %2523 = vmatpush1.xpose.msra.mxu0 0.0
    %2524 = vmatprep.subr.mxu0 0.0
    %2525 = vmatpush1.xpose.msra.mxu0 0.0
    %2526 = vmatprep.subr.mxu0 0.0
    %2527 = vmatpush1.xpose.msra.mxu0 0.0
    %2528 = vmatprep.subr.mxu0 0.0
    %2529 = vmatpush1.xpose.msra.mxu0 0.0
    %2530 = vmatprep.subr.mxu0 0.0
    %2531 = vmatpush1.xpose.msra.mxu0 0.0
    %2532 = vmatprep.subr.mxu0 0.0
    %2533 = vmatpush1.xpose.msra.mxu0 0.0
    %2534 = vmatprep.subr.mxu0 0.0
    %2535 = vmatpush1.xpose.msra.mxu0 0.0
    %2536 = vmatprep.subr.mxu0 0.0
    %2537 = vmatpush1.xpose.msra.mxu0 0.0
    %2538 = vmatprep.subr.mxu0 0.0
    %2539 = vmatpush1.xpose.msra.mxu0 0.0
    %2540 = vmatprep.subr.mxu0 0.0
    %2541 = vmatpush1.xpose.msra.mxu0 0.0
    %2542 = vmatprep.subr.mxu0 0.0
    %2543 = vmatpush1.xpose.msra.mxu0 0.0
    %2544 = vmatprep.subr.mxu0 0.0
    %2545 = vmatpush1.xpose.msra.mxu0 0.0
    %2546 = vmatprep.subr.mxu0 0.0
    %2547 = vmatpush1.xpose.msra.mxu0 0.0
    %2548 = vmatprep.subr.mxu0 0.0
    %2549 = vmatpush1.xpose.msra.mxu0 0.0
    %2550 = vmatprep.subr.mxu0 0.0
    %2551 = vmatpush1.xpose.msra.mxu0 0.0
    %2552 = vmatprep.subr.mxu0 0.0
    %2553 = vmatpush1.xpose.msra.mxu0 0.0
    %2554 = vmatprep.subr.mxu0 0.0
    %2555 = vmatpush1.xpose.msra.mxu0 0.0
    %2556 = vmatprep.subr.mxu0 0.0
    %2557 = vmatpush1.xpose.msra.mxu0 0.0
    %2558 = vmatprep.mubr.f32.mxu0 0.0
    %2559 = vmatmul.mubr.f32.gmra.mrb[0].mxu0 %v2478
    %v2560 = vpop.f32.mrb[0].mxu0
    %v2561 = vadd.f32 0.0, %v2560
    %v2562 = vpop.f32.mrb[0].mxu0
    %2563 = vmatprep.mubr.f32.mxu0 0.0
    %2564 = vmatmul.mubr.f32.gmra.mrb[0].mxu0 %v2480
    %v2565 = vpop.f32.mrb[0].mxu0
    %v2566 = vadd.f32 0.0, %v2565
    %v2567 = vpop.f32.mrb[0].mxu0
    %2568 = vmatprep.mubr.f32.mxu0 0.0
    %2569 = vmatmul.mubr.f32.gmra.mrb[0].mxu0 %v2482
    %v2570 = vpop.f32.mrb[0].mxu0
    %v2571 = vadd.f32 0.0, %v2570
    %v2572 = vpop.f32.mrb[0].mxu0
    %2573 = vmatprep.mubr.f32.mxu0 0.0
    %2574 = vmatmul.mubr.f32.gmra.mrb[0].mxu0 %v2484
    %v2575 = vpop.f32.mrb[0].mxu0
    %v2576 = vadd.f32 0.0, %v2575
    %v2577 = vpop.f32.mrb[0].mxu0
    %2578 = vdwg.mxu0
    %v2579 = vsel %vm282, %v2561, -inf
    %2580 = vmax.xlane.f32.xlu0 %v2579
    %v2581 = vpop.xlane.xlu0 %2580
    %v2582 = vsel %vm282, %v2566, -inf
    %2583 = vmax.xlane.f32.xlu0 %v2582
    %v2584 = vpop.xlane.xlu0 %2583
    %v2585 = vsel %vm282, %v2571, -inf
    %2586 = vmax.xlane.f32.xlu0 %v2585
    %v2587 = vpop.xlane.xlu0 %2586
    %v2588 = vsel %vm292, %v2576, -inf
    %2589 = vmax.xlane.f32.xlu0 %v2588
    %v2590 = vpop.xlane.xlu0 %2589
    %v2591 = vsub.f32 %v2561, %v2581
    %v2592 = vsub.f32 %v2566, %v2584
    %v2593 = vsub.f32 %v2571, %v2587
    %v2594 = vsub.f32 %v2576, %v2590
    %v2595 = vmul.f32 %v2591, 1.442695
    %v2596 = vpow.pop %v2595
    %v2597 = vmul.f32 %v2592, 1.442695
    %v2598 = vpow.pop %v2597
    %v2599 = vmul.f32 %v2593, 1.442695
    %v2600 = vpow.pop %v2599
    %v2601 = vmul.f32 %v2594, 1.442695
    %v2602 = vpow.pop %v2601
    %v2603 = vsel %vm282, %v2596, 0.0
    %2604 = vadd.xlane.f32.xlu0 %v2603
    %v2605 = vpop.xlane.xlu0 %2604
    %v2606 = vsel %vm282, %v2598, 0.0
    %2607 = vadd.xlane.f32.xlu0 %v2606
    %v2608 = vpop.xlane.xlu0 %2607
    %v2609 = vsel %vm282, %v2600, 0.0
    %2610 = vadd.xlane.f32.xlu0 %v2609
    %v2611 = vpop.xlane.xlu0 %2610
    %v2612 = vsel %vm292, %v2602, 0.0
    %2613 = vadd.xlane.f32.xlu0 %v2612
    %v2614 = vpop.xlane.xlu0 %2613
    %v2615 = vrcp.pop %v2605
    %v2616 = vrcp.pop %v2608
    %v2617 = vrcp.pop %v2611
    %v2618 = vrcp.pop %v2614
    %v2619 = vmul.f32 %v2596, %v2615
    %v2620 = vmul.f32 %v2598, %v2616
    %v2621 = vmul.f32 %v2600, %v2617
    %v2622 = vmul.f32 %v2602, %v2618
    %s2623 = scalar_lea.vmem %s7, 192
    %2624 = vst.msk [vmem:[%s2623] sm:$0xff] %vm282, %v2619
    %2625 = vst.msk [vmem:[%s2623 + $0x8] sm:$0xff] %vm282, %v2620
    %2626 = vst.msk [vmem:[%s2623 + $0x10] sm:$0xff] %vm282, %v2621
    %2627 = vst.msk [vmem:[%s2623 + $0x18] sm:$0x1] %vm292, %v2622
    %2628 = vrot.lane.b32.xlu0 %v1896, 48
    %v2629 = vpop.permute.xlu0 %2628
    %2630 = vrot.lane.b32.xlu0 %v1901, 48
    %v2631 = vpop.permute.xlu0 %2630
    %2632 = vrot.lane.b32.xlu0 %v1906, 48
    %v2633 = vpop.permute.xlu0 %2632
    %2634 = vrot.lane.b32.xlu0 %v1911, 48
    %v2635 = vpop.permute.xlu0 %2634
    %v2640 = vsel %vm282, %v2619, 0
    %v2643 = vsel %vm282, %v2620, 0
    %v2646 = vsel %vm282, %v2621, 0
    %v2649 = vsel %vm282, %v2622, 0
    %v2651 = vsel %vm355, %v2635, 0
    %2653 = vmatprep.subr.mxu0 0.0
    %2654 = vmatpush1.msra.mxu0 %v2629
    %2655 = vmatprep.subr.mxu0 0.0
    %2656 = vmatpush1.msra.mxu0 %v2631
    %2657 = vmatprep.subr.mxu0 0.0
    %2658 = vmatpush1.msra.mxu0 %v2633
    %2659 = vmatprep.subr.mxu0 0.0
    %2660 = vmatpush1.msra.mxu0 %v2651
    %2661 = vmatprep.subr.mxu0 0.0
    %2662 = vmatpush1.msra.mxu0 0.0
    %2663 = vmatprep.subr.mxu0 0.0
    %2664 = vmatpush1.msra.mxu0 0.0
    %2665 = vmatprep.subr.mxu0 0.0
    %2666 = vmatpush1.msra.mxu0 0.0
    %2667 = vmatprep.subr.mxu0 0.0
    %2668 = vmatpush1.msra.mxu0 0.0
    %2669 = vmatprep.subr.mxu0 0.0
    %2670 = vmatpush1.msra.mxu0 0.0
    %2671 = vmatprep.subr.mxu0 0.0
    %2672 = vmatpush1.msra.mxu0 0.0
    %2673 = vmatprep.subr.mxu0 0.0
    %2674 = vmatpush1.msra.mxu0 0.0
    %2675 = vmatprep.subr.mxu0 0.0
    %2676 = vmatpush1.msra.mxu0 0.0
    %2677 = vmatprep.subr.mxu0 0.0
    %2678 = vmatpush1.msra.mxu0 0.0
    %2679 = vmatprep.subr.mxu0 0.0
    %2680 = vmatpush1.msra.mxu0 0.0
    %2681 = vmatprep.subr.mxu0 0.0
    %2682 = vmatpush1.msra.mxu0 0.0
    %2683 = vmatprep.subr.mxu0 0.0
    %2684 = vmatpush1.msra.mxu0 0.0
    %2685 = vmatprep.subr.mxu0 0.0
    %2686 = vmatpush1.msra.mxu0 0.0
    %2687 = vmatprep.subr.mxu0 0.0
    %2688 = vmatpush1.msra.mxu0 0.0
    %2689 = vmatprep.subr.mxu0 0.0
    %2690 = vmatpush1.msra.mxu0 0.0
    %2691 = vmatprep.subr.mxu0 0.0
    %2692 = vmatpush1.msra.mxu0 0.0
    %2693 = vmatprep.subr.mxu0 0.0
    %2694 = vmatpush1.msra.mxu0 0.0
    %2695 = vmatprep.subr.mxu0 0.0
    %2696 = vmatpush1.msra.mxu0 0.0
    %2697 = vmatprep.subr.mxu0 0.0
    %2698 = vmatpush1.msra.mxu0 0.0
    %2699 = vmatprep.subr.mxu0 0.0
    %2700 = vmatpush1.msra.mxu0 0.0
    %2701 = vmatprep.subr.mxu0 0.0
    %2702 = vmatpush1.msra.mxu0 0.0
    %2703 = vmatprep.subr.mxu0 0.0
    %2704 = vmatpush1.msra.mxu0 0.0
    %2705 = vmatprep.subr.mxu0 0.0
    %2706 = vmatpush1.msra.mxu0 0.0
    %2707 = vmatprep.subr.mxu0 0.0
    %2708 = vmatpush1.msra.mxu0 0.0
    %2709 = vmatprep.subr.mxu0 0.0
    %2710 = vmatpush1.msra.mxu0 0.0
    %2711 = vmatprep.subr.mxu0 0.0
    %2712 = vmatpush1.msra.mxu0 0.0
    %2713 = vmatprep.subr.mxu0 0.0
    %2714 = vmatpush1.msra.mxu0 0.0
    %2715 = vmatprep.subr.mxu0 0.0
    %2716 = vmatpush1.msra.mxu0 0.0
    %2717 = vmatprep.mubr.f32.mxu0 0.0
    %2718 = vmatmul.mubr.f32.gmra.mrb[0].mxu0 %v2640
    %v2719 = vpop.f32.mrb[0].mxu0
    %v2720 = vadd.f32 0.0, %v2719
    %v2721 = vpop.f32.mrb[0].mxu0
    %2722 = vmatprep.mubr.f32.mxu0 0.0
    %2723 = vmatmul.mubr.f32.gmra.mrb[0].mxu0 %v2643
    %v2724 = vpop.f32.mrb[0].mxu0
    %v2725 = vadd.f32 0.0, %v2724
    %v2726 = vpop.f32.mrb[0].mxu0
    %2727 = vmatprep.mubr.f32.mxu0 0.0
    %2728 = vmatmul.mubr.f32.gmra.mrb[0].mxu0 %v2646
    %v2729 = vpop.f32.mrb[0].mxu0
    %v2730 = vadd.f32 0.0, %v2729
    %v2731 = vpop.f32.mrb[0].mxu0
    %2732 = vmatprep.mubr.f32.mxu0 0.0
    %2733 = vmatmul.mubr.f32.gmra.mrb[0].mxu0 %v2649
    %v2734 = vpop.f32.mrb[0].mxu0
    %v2735 = vadd.f32 0.0, %v2734
    %v2736 = vpop.f32.mrb[0].mxu0
    %2737 = vdwg.mxu0
    %2738 = vrot.lane.b32.xlu0 %v1896, 104
    %v2739 = vpop.permute.xlu0 %2738
    %2740 = vrot.lane.b32.xlu0 %v1901, 104
    %v2741 = vpop.permute.xlu0 %2740
    %2742 = vrot.lane.b32.xlu0 %v1906, 104
    %v2743 = vpop.permute.xlu0 %2742
    %2744 = vrot.lane.b32.xlu0 %v1911, 104
    %v2745 = vpop.permute.xlu0 %2744
    %2746 = vrot.lane.b32.xlu0 %v1896, 72
    %v2747 = vpop.permute.xlu0 %2746
    %2748 = vrot.lane.b32.xlu0 %v1901, 72
    %v2749 = vpop.permute.xlu0 %2748
    %2750 = vrot.lane.b32.xlu0 %v1906, 72
    %v2751 = vpop.permute.xlu0 %2750
    %2752 = vrot.lane.b32.xlu0 %v1911, 72
    %v2753 = vpop.permute.xlu0 %2752
    %v2754 = vsel %vm180, %v2739, 0
    %v2756 = vsel %vm180, %v2741, 0
    %v2758 = vsel %vm180, %v2743, 0
    %v2760 = vsel %vm180, %v2745, 0
    %v2762 = vsel %vm180, %v2747, 0
    %v2764 = vsel %vm180, %v2749, 0
    %v2766 = vsel %vm180, %v2751, 0
    %v2768 = vsel %vm180, %v2753, 0
    %2770 = vmatprep.subr.mxu0 0.0
    %2771 = vmatpush1.xpose.msra.mxu0 %v2762
    %2772 = vmatprep.subr.mxu0 0.0
    %2773 = vmatpush1.xpose.msra.mxu0 %v2764
    %2774 = vmatprep.subr.mxu0 0.0
    %2775 = vmatpush1.xpose.msra.mxu0 %v2766
    %2776 = vmatprep.subr.mxu0 0.0
    %2777 = vmatpush1.xpose.msra.mxu0 %v2768
    %2778 = vmatprep.subr.mxu0 0.0
    %2779 = vmatpush1.xpose.msra.mxu0 0.0
    %2780 = vmatprep.subr.mxu0 0.0
    %2781 = vmatpush1.xpose.msra.mxu0 0.0
    %2782 = vmatprep.subr.mxu0 0.0
    %2783 = vmatpush1.xpose.msra.mxu0 0.0
    %2784 = vmatprep.subr.mxu0 0.0
    %2785 = vmatpush1.xpose.msra.mxu0 0.0
    %2786 = vmatprep.subr.mxu0 0.0
    %2787 = vmatpush1.xpose.msra.mxu0 0.0
    %2788 = vmatprep.subr.mxu0 0.0
    %2789 = vmatpush1.xpose.msra.mxu0 0.0
    %2790 = vmatprep.subr.mxu0 0.0
    %2791 = vmatpush1.xpose.msra.mxu0 0.0
    %2792 = vmatprep.subr.mxu0 0.0
    %2793 = vmatpush1.xpose.msra.mxu0 0.0
    %2794 = vmatprep.subr.mxu0 0.0
    %2795 = vmatpush1.xpose.msra.mxu0 0.0
    %2796 = vmatprep.subr.mxu0 0.0
    %2797 = vmatpush1.xpose.msra.mxu0 0.0
    %2798 = vmatprep.subr.mxu0 0.0
    %2799 = vmatpush1.xpose.msra.mxu0 0.0
    %2800 = vmatprep.subr.mxu0 0.0
    %2801 = vmatpush1.xpose.msra.mxu0 0.0
    %2802 = vmatprep.subr.mxu0 0.0
    %2803 = vmatpush1.xpose.msra.mxu0 0.0
    %2804 = vmatprep.subr.mxu0 0.0
    %2805 = vmatpush1.xpose.msra.mxu0 0.0
    %2806 = vmatprep.subr.mxu0 0.0
    %2807 = vmatpush1.xpose.msra.mxu0 0.0
    %2808 = vmatprep.subr.mxu0 0.0
    %2809 = vmatpush1.xpose.msra.mxu0 0.0
    %2810 = vmatprep.subr.mxu0 0.0
    %2811 = vmatpush1.xpose.msra.mxu0 0.0
    %2812 = vmatprep.subr.mxu0 0.0
    %2813 = vmatpush1.xpose.msra.mxu0 0.0
    %2814 = vmatprep.subr.mxu0 0.0
    %2815 = vmatpush1.xpose.msra.mxu0 0.0
    %2816 = vmatprep.subr.mxu0 0.0
    %2817 = vmatpush1.xpose.msra.mxu0 0.0
    %2818 = vmatprep.subr.mxu0 0.0
    %2819 = vmatpush1.xpose.msra.mxu0 0.0
    %2820 = vmatprep.subr.mxu0 0.0
    %2821 = vmatpush1.xpose.msra.mxu0 0.0
    %2822 = vmatprep.subr.mxu0 0.0
    %2823 = vmatpush1.xpose.msra.mxu0 0.0
    %2824 = vmatprep.subr.mxu0 0.0
    %2825 = vmatpush1.xpose.msra.mxu0 0.0
    %2826 = vmatprep.subr.mxu0 0.0
    %2827 = vmatpush1.xpose.msra.mxu0 0.0
    %2828 = vmatprep.subr.mxu0 0.0
    %2829 = vmatpush1.xpose.msra.mxu0 0.0
    %2830 = vmatprep.subr.mxu0 0.0
    %2831 = vmatpush1.xpose.msra.mxu0 0.0
    %2832 = vmatprep.subr.mxu0 0.0
    %2833 = vmatpush1.xpose.msra.mxu0 0.0
    %2834 = vmatprep.mubr.f32.mxu0 0.0
    %2835 = vmatmul.mubr.f32.gmra.mrb[0].mxu0 %v2754
    %v2836 = vpop.f32.mrb[0].mxu0
    %v2837 = vadd.f32 0.0, %v2836
    %v2838 = vpop.f32.mrb[0].mxu0
    %2839 = vmatprep.mubr.f32.mxu0 0.0
    %2840 = vmatmul.mubr.f32.gmra.mrb[0].mxu0 %v2756
    %v2841 = vpop.f32.mrb[0].mxu0
    %v2842 = vadd.f32 0.0, %v2841
    %v2843 = vpop.f32.mrb[0].mxu0
    %2844 = vmatprep.mubr.f32.mxu0 0.0
    %2845 = vmatmul.mubr.f32.gmra.mrb[0].mxu0 %v2758
    %v2846 = vpop.f32.mrb[0].mxu0
    %v2847 = vadd.f32 0.0, %v2846
    %v2848 = vpop.f32.mrb[0].mxu0
    %2849 = vmatprep.mubr.f32.mxu0 0.0
    %2850 = vmatmul.mubr.f32.gmra.mrb[0].mxu0 %v2760
    %v2851 = vpop.f32.mrb[0].mxu0
    %v2852 = vadd.f32 0.0, %v2851
    %v2853 = vpop.f32.mrb[0].mxu0
    %2854 = vdwg.mxu0
    %v2855 = vsel %vm282, %v2837, -inf
    %2856 = vmax.xlane.f32.xlu0 %v2855
    %v2857 = vpop.xlane.xlu0 %2856
    %v2858 = vsel %vm282, %v2842, -inf
    %2859 = vmax.xlane.f32.xlu0 %v2858
    %v2860 = vpop.xlane.xlu0 %2859
    %v2861 = vsel %vm282, %v2847, -inf
    %2862 = vmax.xlane.f32.xlu0 %v2861
    %v2863 = vpop.xlane.xlu0 %2862
    %v2864 = vsel %vm292, %v2852, -inf
    %2865 = vmax.xlane.f32.xlu0 %v2864
    %v2866 = vpop.xlane.xlu0 %2865
    %v2867 = vsub.f32 %v2837, %v2857
    %v2868 = vsub.f32 %v2842, %v2860
    %v2869 = vsub.f32 %v2847, %v2863
    %v2870 = vsub.f32 %v2852, %v2866
    %v2871 = vmul.f32 %v2867, 1.442695
    %v2872 = vpow.pop %v2871
    %v2873 = vmul.f32 %v2868, 1.442695
    %v2874 = vpow.pop %v2873
    %v2875 = vmul.f32 %v2869, 1.442695
    %v2876 = vpow.pop %v2875
    %v2877 = vmul.f32 %v2870, 1.442695
    %v2878 = vpow.pop %v2877
    %v2879 = vsel %vm282, %v2872, 0.0
    %2880 = vadd.xlane.f32.xlu0 %v2879
    %v2881 = vpop.xlane.xlu0 %2880
    %v2882 = vsel %vm282, %v2874, 0.0
    %2883 = vadd.xlane.f32.xlu0 %v2882
    %v2884 = vpop.xlane.xlu0 %2883
    %v2885 = vsel %vm282, %v2876, 0.0
    %2886 = vadd.xlane.f32.xlu0 %v2885
    %v2887 = vpop.xlane.xlu0 %2886
    %v2888 = vsel %vm292, %v2878, 0.0
    %2889 = vadd.xlane.f32.xlu0 %v2888
    %v2890 = vpop.xlane.xlu0 %2889
    %v2891 = vrcp.pop %v2881
    %v2892 = vrcp.pop %v2884
    %v2893 = vrcp.pop %v2887
    %v2894 = vrcp.pop %v2890
    %v2895 = vmul.f32 %v2872, %v2891
    %v2896 = vmul.f32 %v2874, %v2892
    %v2897 = vmul.f32 %v2876, %v2893
    %v2898 = vmul.f32 %v2878, %v2894
    %s2899 = scalar_lea.vmem %s7, 224
    %2900 = vst.msk [vmem:[%s2899] sm:$0xff] %vm282, %v2895
    %2901 = vst.msk [vmem:[%s2899 + $0x8] sm:$0xff] %vm282, %v2896
    %2902 = vst.msk [vmem:[%s2899 + $0x10] sm:$0xff] %vm282, %v2897
    %2903 = vst.msk [vmem:[%s2899 + $0x18] sm:$0x1] %vm292, %v2898
    %2904 = vrot.lane.b32.xlu0 %v1896, 40
    %v2905 = vpop.permute.xlu0 %2904
    %2906 = vrot.lane.b32.xlu0 %v1901, 40
    %v2907 = vpop.permute.xlu0 %2906
    %2908 = vrot.lane.b32.xlu0 %v1906, 40
    %v2909 = vpop.permute.xlu0 %2908
    %2910 = vrot.lane.b32.xlu0 %v1911, 40
    %v2911 = vpop.permute.xlu0 %2910
    %v2916 = vsel %vm282, %v2895, 0
    %v2919 = vsel %vm282, %v2896, 0
    %v2922 = vsel %vm282, %v2897, 0
    %v2925 = vsel %vm282, %v2898, 0
    %v2927 = vsel %vm355, %v2911, 0
    %2929 = vmatprep.subr.mxu0 0.0
    %2930 = vmatpush1.msra.mxu0 %v2905
    %2931 = vmatprep.subr.mxu0 0.0
    %2932 = vmatpush1.msra.mxu0 %v2907
    %2933 = vmatprep.subr.mxu0 0.0
    %2934 = vmatpush1.msra.mxu0 %v2909
    %2935 = vmatprep.subr.mxu0 0.0
    %2936 = vmatpush1.msra.mxu0 %v2927
    %2937 = vmatprep.subr.mxu0 0.0
    %2938 = vmatpush1.msra.mxu0 0.0
    %2939 = vmatprep.subr.mxu0 0.0
    %2940 = vmatpush1.msra.mxu0 0.0
    %2941 = vmatprep.subr.mxu0 0.0
    %2942 = vmatpush1.msra.mxu0 0.0
    %2943 = vmatprep.subr.mxu0 0.0
    %2944 = vmatpush1.msra.mxu0 0.0
    %2945 = vmatprep.subr.mxu0 0.0
    %2946 = vmatpush1.msra.mxu0 0.0
    %2947 = vmatprep.subr.mxu0 0.0
    %2948 = vmatpush1.msra.mxu0 0.0
    %2949 = vmatprep.subr.mxu0 0.0
    %2950 = vmatpush1.msra.mxu0 0.0
    %2951 = vmatprep.subr.mxu0 0.0
    %2952 = vmatpush1.msra.mxu0 0.0
    %2953 = vmatprep.subr.mxu0 0.0
    %2954 = vmatpush1.msra.mxu0 0.0
    %2955 = vmatprep.subr.mxu0 0.0
    %2956 = vmatpush1.msra.mxu0 0.0
    %2957 = vmatprep.subr.mxu0 0.0
    %2958 = vmatpush1.msra.mxu0 0.0
    %2959 = vmatprep.subr.mxu0 0.0
    %2960 = vmatpush1.msra.mxu0 0.0
    %2961 = vmatprep.subr.mxu0 0.0
    %2962 = vmatpush1.msra.mxu0 0.0
    %2963 = vmatprep.subr.mxu0 0.0
    %2964 = vmatpush1.msra.mxu0 0.0
    %2965 = vmatprep.subr.mxu0 0.0
    %2966 = vmatpush1.msra.mxu0 0.0
    %2967 = vmatprep.subr.mxu0 0.0
    %2968 = vmatpush1.msra.mxu0 0.0
    %2969 = vmatprep.subr.mxu0 0.0
    %2970 = vmatpush1.msra.mxu0 0.0
    %2971 = vmatprep.subr.mxu0 0.0
    %2972 = vmatpush1.msra.mxu0 0.0
    %2973 = vmatprep.subr.mxu0 0.0
    %2974 = vmatpush1.msra.mxu0 0.0
    %2975 = vmatprep.subr.mxu0 0.0
    %2976 = vmatpush1.msra.mxu0 0.0
    %2977 = vmatprep.subr.mxu0 0.0
    %2978 = vmatpush1.msra.mxu0 0.0
    %2979 = vmatprep.subr.mxu0 0.0
    %2980 = vmatpush1.msra.mxu0 0.0
    %2981 = vmatprep.subr.mxu0 0.0
    %2982 = vmatpush1.msra.mxu0 0.0
    %2983 = vmatprep.subr.mxu0 0.0
    %2984 = vmatpush1.msra.mxu0 0.0
    %2985 = vmatprep.subr.mxu0 0.0
    %2986 = vmatpush1.msra.mxu0 0.0
    %2987 = vmatprep.subr.mxu0 0.0
    %2988 = vmatpush1.msra.mxu0 0.0
    %2989 = vmatprep.subr.mxu0 0.0
    %2990 = vmatpush1.msra.mxu0 0.0
    %2991 = vmatprep.subr.mxu0 0.0
    %2992 = vmatpush1.msra.mxu0 0.0
    %2993 = vmatprep.mubr.f32.mxu0 0.0
    %2994 = vmatmul.mubr.f32.gmra.mrb[0].mxu0 %v2916
    %v2995 = vpop.f32.mrb[0].mxu0
    %v2996 = vadd.f32 0.0, %v2995
    %v2997 = vpop.f32.mrb[0].mxu0
    %2998 = vmatprep.mubr.f32.mxu0 0.0
    %2999 = vmatmul.mubr.f32.gmra.mrb[0].mxu0 %v2919
    %v3000 = vpop.f32.mrb[0].mxu0
    %v3001 = vadd.f32 0.0, %v3000
    %v3002 = vpop.f32.mrb[0].mxu0
    %3003 = vmatprep.mubr.f32.mxu0 0.0
    %3004 = vmatmul.mubr.f32.gmra.mrb[0].mxu0 %v2922
    %v3005 = vpop.f32.mrb[0].mxu0
    %v3006 = vadd.f32 0.0, %v3005
    %v3007 = vpop.f32.mrb[0].mxu0
    %3008 = vmatprep.mubr.f32.mxu0 0.0
    %3009 = vmatmul.mubr.f32.gmra.mrb[0].mxu0 %v2925
    %v3010 = vpop.f32.mrb[0].mxu0
    %v3011 = vadd.f32 0.0, %v3010
    %v3012 = vpop.f32.mrb[0].mxu0
    %3013 = vdwg.mxu0
    %3018 = vrot.lane.b32.xlu0 %v2444, 8
    %v3019 = vpop.permute.xlu0 %3018
    %3020 = vrot.lane.b32.xlu0 %v2449, 8
    %v3021 = vpop.permute.xlu0 %3020
    %3022 = vrot.lane.b32.xlu0 %v2454, 8
    %v3023 = vpop.permute.xlu0 %3022
    %3024 = vrot.lane.b32.xlu0 %v2459, 8
    %v3025 = vpop.permute.xlu0 %3024
    %3034 = vrot.lane.b32.xlu0 %v2720, 16
    %v3035 = vpop.permute.xlu0 %3034
    %3036 = vrot.lane.b32.xlu0 %v2725, 16
    %v3037 = vpop.permute.xlu0 %3036
    %3038 = vrot.lane.b32.xlu0 %v2730, 16
    %v3039 = vpop.permute.xlu0 %3038
    %3040 = vrot.lane.b32.xlu0 %v2735, 16
    %v3041 = vpop.permute.xlu0 %3040
    %3050 = vrot.lane.b32.xlu0 %v2996, 24
    %v3051 = vpop.permute.xlu0 %3050
    %3052 = vrot.lane.b32.xlu0 %v3001, 24
    %v3053 = vpop.permute.xlu0 %3052
    %3054 = vrot.lane.b32.xlu0 %v3006, 24
    %v3055 = vpop.permute.xlu0 %3054
    %3056 = vrot.lane.b32.xlu0 %v3011, 24
    %v3057 = vpop.permute.xlu0 %3056
    %v3062 = vsel %vm180, %v2168, %v3019
    %v3063 = vsel %vm180, %v2173, %v3021
    %v3064 = vsel %vm180, %v2178, %v3023
    %v3065 = vsel %vm180, %v2183, %v3025
    %v3066 = vsel %vm1323, %v3062, %v3035
    %v3067 = vsel %vm1323, %v3063, %v3037
    %v3068 = vsel %vm1323, %v3064, %v3039
    %v3069 = vsel %vm1323, %v3065, %v3041
    %v3070 = vsel %vm1328, %v3066, %v3051
    %v3071 = vsel %vm1328, %v3067, %v3053
    %v3072 = vsel %vm1328, %v3068, %v3055
    %v3073 = vsel %vm1328, %v3069, %v3057
    %v3074 = vlaneseq
    %v3075 = vshrl.u32 %v3074, 7
    %v3076 = vsub.s32 1, %v3075
    %v3077 = vrot.slane %v1812, %v3076
    %v3079 = vsel %vm70, %v3070, 0
    %v3082 = vsel %vm70, %v3071, 0
    %v3085 = vsel %vm70, %v3072, 0
    %v3088 = vsel %vm70, %v3073, 0
    %3090 = vmatprep.subr.mxu0 0.0
    %3091 = vmatpush1.msra.mxu0 %v1793
    %3092 = vmatprep.subr.mxu0 0.0
    %3093 = vmatpush1.msra.mxu0 %v1794
    %3094 = vmatprep.subr.mxu0 0.0
    %3095 = vmatpush1.msra.mxu0 %v1795
    %3096 = vmatprep.subr.mxu0 0.0
    %3097 = vmatpush1.msra.mxu0 %v1796
    %3098 = vmatprep.subr.mxu0 0.0
    %3099 = vmatpush1.msra.mxu0 0.0
    %3100 = vmatprep.subr.mxu0 0.0
    %3101 = vmatpush1.msra.mxu0 0.0
    %3102 = vmatprep.subr.mxu0 0.0
    %3103 = vmatpush1.msra.mxu0 0.0
    %3104 = vmatprep.subr.mxu0 0.0
    %3105 = vmatpush1.msra.mxu0 0.0
    %3106 = vmatprep.subr.mxu0 0.0
    %3107 = vmatpush1.msra.mxu0 0.0
    %3108 = vmatprep.subr.mxu0 0.0
    %3109 = vmatpush1.msra.mxu0 0.0
    %3110 = vmatprep.subr.mxu0 0.0
    %3111 = vmatpush1.msra.mxu0 0.0
    %3112 = vmatprep.subr.mxu0 0.0
    %3113 = vmatpush1.msra.mxu0 0.0
    %3114 = vmatprep.subr.mxu0 0.0
    %3115 = vmatpush1.msra.mxu0 0.0
    %3116 = vmatprep.subr.mxu0 0.0
    %3117 = vmatpush1.msra.mxu0 0.0
    %3118 = vmatprep.subr.mxu0 0.0
    %3119 = vmatpush1.msra.mxu0 0.0
    %3120 = vmatprep.subr.mxu0 0.0
    %3121 = vmatpush1.msra.mxu0 0.0
    %3122 = vmatprep.subr.mxu0 0.0
    %3123 = vmatpush1.msra.mxu0 0.0
    %3124 = vmatprep.subr.mxu0 0.0
    %3125 = vmatpush1.msra.mxu0 0.0
    %3126 = vmatprep.subr.mxu0 0.0
    %3127 = vmatpush1.msra.mxu0 0.0
    %3128 = vmatprep.subr.mxu0 0.0
    %3129 = vmatpush1.msra.mxu0 0.0
    %3130 = vmatprep.subr.mxu0 0.0
    %3131 = vmatpush1.msra.mxu0 0.0
    %3132 = vmatprep.subr.mxu0 0.0
    %3133 = vmatpush1.msra.mxu0 0.0
    %3134 = vmatprep.subr.mxu0 0.0
    %3135 = vmatpush1.msra.mxu0 0.0
    %3136 = vmatprep.subr.mxu0 0.0
    %3137 = vmatpush1.msra.mxu0 0.0
    %3138 = vmatprep.subr.mxu0 0.0
    %3139 = vmatpush1.msra.mxu0 0.0
    %3140 = vmatprep.subr.mxu0 0.0
    %3141 = vmatpush1.msra.mxu0 0.0
    %3142 = vmatprep.subr.mxu0 0.0
    %3143 = vmatpush1.msra.mxu0 0.0
    %3144 = vmatprep.subr.mxu0 0.0
    %3145 = vmatpush1.msra.mxu0 0.0
    %3146 = vmatprep.subr.mxu0 0.0
    %3147 = vmatpush1.msra.mxu0 0.0
    %3148 = vmatprep.subr.mxu0 0.0
    %3149 = vmatpush1.msra.mxu0 0.0
    %3150 = vmatprep.subr.mxu0 0.0
    %3151 = vmatpush1.msra.mxu0 0.0
    %3152 = vmatprep.subr.mxu0 0.0
    %3153 = vmatpush1.msra.mxu0 0.0
    %3154 = vmatprep.mubr.f32.mxu0 0.0
    %3155 = vmatmul.mubr.f32.gmra.mrb[0].mxu0 %v3079
    %v3156 = vpop.f32.mrb[0].mxu0
    %v3157 = vadd.f32 %v3077, %v3156
    %v3158 = vpop.f32.mrb[0].mxu0
    %3159 = vmatprep.mubr.f32.mxu0 0.0
    %3160 = vmatmul.mubr.f32.gmra.mrb[0].mxu0 %v3082
    %v3161 = vpop.f32.mrb[0].mxu0
    %v3162 = vadd.f32 %v3077, %v3161
    %v3163 = vpop.f32.mrb[0].mxu0
    %3164 = vmatprep.mubr.f32.mxu0 0.0
    %3165 = vmatmul.mubr.f32.gmra.mrb[0].mxu0 %v3085
    %v3166 = vpop.f32.mrb[0].mxu0
    %v3167 = vadd.f32 %v3077, %v3166
    %v3168 = vpop.f32.mrb[0].mxu0
    %3169 = vmatprep.mubr.f32.mxu0 0.0
    %3170 = vmatmul.mubr.f32.gmra.mrb[0].mxu0 %v3088
    %v3171 = vpop.f32.mrb[0].mxu0
    %v3172 = vadd.f32 %v3077, %v3171
    %v3173 = vpop.f32.mrb[0].mxu0
    %3174 = vdwg.mxu0
    %v3175 = vadd.f32 %v1783, %v3157
    %v3176 = vadd.f32 %v1784, %v3162
    %v3177 = vadd.f32 %v1785, %v3167
    %v3178 = vadd.f32 %v1786, %v3172
    %v3179 = vsel %vm70, %v3175, 0.0
    %3180 = vadd.xlane.f32.xlu0 %v3179
    %v3181 = vpop.xlane.xlu0 %3180
    %v3182 = vsel %vm70, %v3176, 0.0
    %3183 = vadd.xlane.f32.xlu0 %v3182
    %v3184 = vpop.xlane.xlu0 %3183
    %v3185 = vsel %vm70, %v3177, 0.0
    %3186 = vadd.xlane.f32.xlu0 %v3185
    %v3187 = vpop.xlane.xlu0 %3186
    %v3188 = vsel %vm1447, %v3178, 0.0
    %3189 = vadd.xlane.f32.xlu0 %v3188
    %v3190 = vpop.xlane.xlu0 %3189
    %v3191 = vmul.f32 %v3181, %v1451
    %v3192 = vmul.f32 %v3184, %v1451
    %v3193 = vmul.f32 %v3187, %v1451
    %v3194 = vmul.f32 %v3190, %v1451
    %v3195 = vsub.f32 %v3175, %v3191
    %v3196 = vsub.f32 %v3176, %v3192
    %v3197 = vsub.f32 %v3177, %v3193
    %v3198 = vsub.f32 %v3178, %v3194
    %v3199 = vmul.f32 %v3195, %v3195
    %v3200 = vmul.f32 %v3196, %v3196
    %v3201 = vmul.f32 %v3197, %v3197
    %v3202 = vmul.f32 %v3198, %v3198
    %v3203 = vsel %vm70, %v3199, 0.0
    %3204 = vadd.xlane.f32.xlu0 %v3203
    %v3205 = vpop.xlane.xlu0 %3204
    %v3206 = vsel %vm70, %v3200, 0.0
    %3207 = vadd.xlane.f32.xlu0 %v3206
    %v3208 = vpop.xlane.xlu0 %3207
    %v3209 = vsel %vm70, %v3201, 0.0
    %3210 = vadd.xlane.f32.xlu0 %v3209
    %v3211 = vpop.xlane.xlu0 %3210
    %v3212 = vsel %vm1447, %v3202, 0.0
    %3213 = vadd.xlane.f32.xlu0 %v3212
    %v3214 = vpop.xlane.xlu0 %3213
    %v3215 = vmul.f32 %v3205, %v1451
    %v3216 = vmul.f32 %v3208, %v1451
    %v3217 = vmul.f32 %v3211, %v1451
    %v3218 = vmul.f32 %v3214, %v1451
    %v3219 = vadd.f32 %v3215, 1e-05
    %v3220 = vadd.f32 %v3216, 1e-05
    %v3221 = vadd.f32 %v3217, 1e-05
    %v3222 = vadd.f32 %v3218, 1e-05
    %v3223 = vrsqrt.pop %v3219
    %v3224 = vrsqrt.pop %v3220
    %v3225 = vrsqrt.pop %v3221
    %v3226 = vrsqrt.pop %v3222
    %v3227 = vmul.f32 %v3195, %v3223
    %v3228 = vmul.f32 %v3196, %v3224
    %v3229 = vmul.f32 %v3197, %v3225
    %v3230 = vmul.f32 %v3198, %v3226
    %v3231 = vlaneseq
    %v3232 = vshrl.u32 %v3231, 7
    %v3233 = vsub.s32 2, %v3232
    %v3234 = vrot.slane %v1812, %v3233
    %v3235 = vmul.f32 %v3227, %v3234
    %v3236 = vmul.f32 %v3228, %v3234
    %v3237 = vmul.f32 %v3229, %v3234
    %v3238 = vmul.f32 %v3230, %v3234
    %v3239 = vlaneseq
    %v3240 = vshrl.u32 %v3239, 7
    %v3241 = vsub.s32 3, %v3240
    %v3242 = vrot.slane %v1812, %v3241
    %v3243 = vadd.f32 %v3235, %v3242
    %v3244 = vadd.f32 %v3236, %v3242
    %v3245 = vadd.f32 %v3237, %v3242
    %v3246 = vadd.f32 %v3238, %v3242
    %v3247 = vlaneseq
    %v3248 = vshrl.u32 %v3247, 7
    %v3249 = vsub.s32 4, %v3248
    %v3250 = vrot.slane %v1812, %v3249
    %v3252 = vsel %vm70, %v3243, 0
    %v3255 = vsel %vm70, %v3244, 0
    %v3258 = vsel %vm70, %v3245, 0
    %v3261 = vsel %vm70, %v3246, 0
    %3263 = vmatprep.subr.mxu0 0.0
    %3264 = vmatpush1.msra.mxu0 %v1798
    %3265 = vmatprep.subr.mxu0 0.0
    %3266 = vmatpush1.msra.mxu0 %v1799
    %3267 = vmatprep.subr.mxu0 0.0
    %3268 = vmatpush1.msra.mxu0 %v1800
    %3269 = vmatprep.subr.mxu0 0.0
    %3270 = vmatpush1.msra.mxu0 %v1801
    %3271 = vmatprep.subr.mxu0 0.0
    %3272 = vmatpush1.msra.mxu0 0.0
    %3273 = vmatprep.subr.mxu0 0.0
    %3274 = vmatpush1.msra.mxu0 0.0
    %3275 = vmatprep.subr.mxu0 0.0
    %3276 = vmatpush1.msra.mxu0 0.0
    %3277 = vmatprep.subr.mxu0 0.0
    %3278 = vmatpush1.msra.mxu0 0.0
    %3279 = vmatprep.subr.mxu0 0.0
    %3280 = vmatpush1.msra.mxu0 0.0
    %3281 = vmatprep.subr.mxu0 0.0
    %3282 = vmatpush1.msra.mxu0 0.0
    %3283 = vmatprep.subr.mxu0 0.0
    %3284 = vmatpush1.msra.mxu0 0.0
    %3285 = vmatprep.subr.mxu0 0.0
    %3286 = vmatpush1.msra.mxu0 0.0
    %3287 = vmatprep.subr.mxu0 0.0
    %3288 = vmatpush1.msra.mxu0 0.0
    %3289 = vmatprep.subr.mxu0 0.0
    %3290 = vmatpush1.msra.mxu0 0.0
    %3291 = vmatprep.subr.mxu0 0.0
    %3292 = vmatpush1.msra.mxu0 0.0
    %3293 = vmatprep.subr.mxu0 0.0
    %3294 = vmatpush1.msra.mxu0 0.0
    %3295 = vmatprep.subr.mxu0 0.0
    %3296 = vmatpush1.msra.mxu0 0.0
    %3297 = vmatprep.subr.mxu0 0.0
    %3298 = vmatpush1.msra.mxu0 0.0
    %3299 = vmatprep.subr.mxu0 0.0
    %3300 = vmatpush1.msra.mxu0 0.0
    %3301 = vmatprep.subr.mxu0 0.0
    %3302 = vmatpush1.msra.mxu0 0.0
    %3303 = vmatprep.subr.mxu0 0.0
    %3304 = vmatpush1.msra.mxu0 0.0
    %3305 = vmatprep.subr.mxu0 0.0
    %3306 = vmatpush1.msra.mxu0 0.0
    %3307 = vmatprep.subr.mxu0 0.0
    %3308 = vmatpush1.msra.mxu0 0.0
    %3309 = vmatprep.subr.mxu0 0.0
    %3310 = vmatpush1.msra.mxu0 0.0
    %3311 = vmatprep.subr.mxu0 0.0
    %3312 = vmatpush1.msra.mxu0 0.0
    %3313 = vmatprep.subr.mxu0 0.0
    %3314 = vmatpush1.msra.mxu0 0.0
    %3315 = vmatprep.subr.mxu0 0.0
    %3316 = vmatpush1.msra.mxu0 0.0
    %3317 = vmatprep.subr.mxu0 0.0
    %3318 = vmatpush1.msra.mxu0 0.0
    %3319 = vmatprep.subr.mxu0 0.0
    %3320 = vmatpush1.msra.mxu0 0.0
    %3321 = vmatprep.subr.mxu0 0.0
    %3322 = vmatpush1.msra.mxu0 0.0
    %3323 = vmatprep.subr.mxu0 0.0
    %3324 = vmatpush1.msra.mxu0 0.0
    %3325 = vmatprep.subr.mxu0 0.0
    %3326 = vmatpush1.msra.mxu0 0.0
    %3327 = vmatprep.mubr.f32.mxu0 0.0
    %3328 = vmatmul.mubr.f32.gmra.mrb[0].mxu0 %v3252
    %v3329 = vpop.f32.mrb[0].mxu0
    %v3330 = vadd.f32 %v3250, %v3329
    %v3331 = vpop.f32.mrb[0].mxu0
    %3332 = vmatprep.mubr.f32.mxu0 0.0
    %3333 = vmatmul.mubr.f32.gmra.mrb[0].mxu0 %v3255
    %v3334 = vpop.f32.mrb[0].mxu0
    %v3335 = vadd.f32 %v3250, %v3334
    %v3336 = vpop.f32.mrb[0].mxu0
    %3337 = vmatprep.mubr.f32.mxu0 0.0
    %3338 = vmatmul.mubr.f32.gmra.mrb[0].mxu0 %v3258
    %v3339 = vpop.f32.mrb[0].mxu0
    %v3340 = vadd.f32 %v3250, %v3339
    %v3341 = vpop.f32.mrb[0].mxu0
    %3342 = vmatprep.mubr.f32.mxu0 0.0
    %3343 = vmatmul.mubr.f32.gmra.mrb[0].mxu0 %v3261
    %v3344 = vpop.f32.mrb[0].mxu0
    %v3345 = vadd.f32 %v3250, %v3344
    %v3346 = vpop.f32.mrb[0].mxu0
    %3347 = vdwg.mxu0
    %v3348 = vmax.f32 %v3330, 0.0
    %v3349 = vmax.f32 %v3335, 0.0
    %v3350 = vmax.f32 %v3340, 0.0
    %v3351 = vmax.f32 %v3345, 0.0
    %v3352 = vlaneseq
    %v3353 = vshrl.u32 %v3352, 7
    %v3354 = vsub.s32 5, %v3353
    %v3355 = vrot.slane %v1812, %v3354
    %v3357 = vsel %vm1617, %v3348, 0
    %v3360 = vsel %vm1617, %v3349, 0
    %v3363 = vsel %vm1617, %v3350, 0
    %v3366 = vsel %vm1617, %v3351, 0
    %3368 = vmatprep.subr.mxu0 0.0
    %3369 = vmatpush1.msra.mxu0 %v1803
    %3370 = vmatprep.subr.mxu0 0.0
    %3371 = vmatpush1.msra.mxu0 %v1804
    %3372 = vmatprep.subr.mxu0 0.0
    %3373 = vmatpush1.msra.mxu0 %v1805
    %3374 = vmatprep.subr.mxu0 0.0
    %3375 = vmatpush1.msra.mxu0 %v1806
    %3376 = vmatprep.subr.mxu0 0.0
    %3377 = vmatpush1.msra.mxu0 %v1807
    %3378 = vmatprep.subr.mxu0 0.0
    %3379 = vmatpush1.msra.mxu0 %v1808
    %3380 = vmatprep.subr.mxu0 0.0
    %3381 = vmatpush1.msra.mxu0 %v1809
    %3382 = vmatprep.subr.mxu0 0.0
    %3383 = vmatpush1.msra.mxu0 %v1810
    %3384 = vmatprep.subr.mxu0 0.0
    %3385 = vmatpush1.msra.mxu0 0.0
    %3386 = vmatprep.subr.mxu0 0.0
    %3387 = vmatpush1.msra.mxu0 0.0
    %3388 = vmatprep.subr.mxu0 0.0
    %3389 = vmatpush1.msra.mxu0 0.0
    %3390 = vmatprep.subr.mxu0 0.0
    %3391 = vmatpush1.msra.mxu0 0.0
    %3392 = vmatprep.subr.mxu0 0.0
    %3393 = vmatpush1.msra.mxu0 0.0
    %3394 = vmatprep.subr.mxu0 0.0
    %3395 = vmatpush1.msra.mxu0 0.0
    %3396 = vmatprep.subr.mxu0 0.0
    %3397 = vmatpush1.msra.mxu0 0.0
    %3398 = vmatprep.subr.mxu0 0.0
    %3399 = vmatpush1.msra.mxu0 0.0
    %3400 = vmatprep.subr.mxu0 0.0
    %3401 = vmatpush1.msra.mxu0 0.0
    %3402 = vmatprep.subr.mxu0 0.0
    %3403 = vmatpush1.msra.mxu0 0.0
    %3404 = vmatprep.subr.mxu0 0.0
    %3405 = vmatpush1.msra.mxu0 0.0
    %3406 = vmatprep.subr.mxu0 0.0
    %3407 = vmatpush1.msra.mxu0 0.0
    %3408 = vmatprep.subr.mxu0 0.0
    %3409 = vmatpush1.msra.mxu0 0.0
    %3410 = vmatprep.subr.mxu0 0.0
    %3411 = vmatpush1.msra.mxu0 0.0
    %3412 = vmatprep.subr.mxu0 0.0
    %3413 = vmatpush1.msra.mxu0 0.0
    %3414 = vmatprep.subr.mxu0 0.0
    %3415 = vmatpush1.msra.mxu0 0.0
    %3416 = vmatprep.subr.mxu0 0.0
    %3417 = vmatpush1.msra.mxu0 0.0
    %3418 = vmatprep.subr.mxu0 0.0
    %3419 = vmatpush1.msra.mxu0 0.0
    %3420 = vmatprep.subr.mxu0 0.0
    %3421 = vmatpush1.msra.mxu0 0.0
    %3422 = vmatprep.subr.mxu0 0.0
    %3423 = vmatpush1.msra.mxu0 0.0
    %3424 = vmatprep.subr.mxu0 0.0
    %3425 = vmatpush1.msra.mxu0 0.0
    %3426 = vmatprep.subr.mxu0 0.0
    %3427 = vmatpush1.msra.mxu0 0.0
    %3428 = vmatprep.subr.mxu0 0.0
    %3429 = vmatpush1.msra.mxu0 0.0
    %3430 = vmatprep.subr.mxu0 0.0
    %3431 = vmatpush1.msra.mxu0 0.0
    %3432 = vmatprep.mubr.f32.mxu0 0.0
    %3433 = vmatmul.mubr.f32.gmra.mrb[0].mxu0 %v3357
    %v3434 = vpop.f32.mrb[0].mxu0
    %v3435 = vadd.f32 %v3355, %v3434
    %v3436 = vpop.f32.mrb[0].mxu0
    %3437 = vmatprep.mubr.f32.mxu0 0.0
    %3438 = vmatmul.mubr.f32.gmra.mrb[0].mxu0 %v3360
    %v3439 = vpop.f32.mrb[0].mxu0
    %v3440 = vpop.f32.mrb[0].mxu0
    %3441 = vmatprep.mubr.f32.mxu0 0.0
    %3442 = vmatmul.mubr.f32.gmra.mrb[0].mxu0 %v3363
    %v3443 = vpop.f32.mrb[0].mxu0
    %v3444 = vpop.f32.mrb[0].mxu0
    %3445 = vmatprep.mubr.f32.mxu0 0.0
    %3446 = vmatmul.mubr.f32.gmra.mrb[0].mxu0 %v3366
    %v3447 = vpop.f32.mrb[0].mxu0
    %v3448 = vpop.f32.mrb[0].mxu0
    %3449 = vdwg.mxu0
    %v3450 = vadd.f32 %v3243, %v3435
    %v3451 = vsel %vm70, %v3450, 0.0
    %3452 = vadd.xlane.f32.xlu0 %v3451
    %v3453 = vpop.xlane.xlu0 %3452
    %v3454 = vmul.f32 %v3453, %v1451
    %v3455 = vsub.f32 %v3450, %v3454
    %v3456 = vmul.f32 %v3455, %v3455
    %v3457 = vsel %vm70, %v3456, 0.0
    %3458 = vadd.xlane.f32.xlu0 %v3457
    %v3459 = vpop.xlane.xlu0 %3458
    %v3460 = vmul.f32 %v3459, %v1451
    %v3461 = vadd.f32 %v3460, 1e-05
    %v3462 = vrsqrt.pop %v3461
    %v3463 = vmul.f32 %v3455, %v3462
    %v3464 = vlaneseq
    %v3465 = vshrl.u32 %v3464, 7
    %v3466 = vsub.s32 6, %v3465
    %v3467 = vrot.slane %v1812, %v3466
    %v3468 = vmul.f32 %v3463, %v3467
    %v3469 = vlaneseq
    %v3470 = vshrl.u32 %v3469, 7
    %v3471 = vsub.s32 7, %v3470
    %v3472 = vrot.slane %v1812, %v3471
    %v3473 = vadd.f32 %v3468, %v3472
    %v3474 = vld [vmem:[#allocation2] sm:$0x1]
    %v3475 = vmul.f32 %v3473, %v3474
    %v3476 = vsel %vm1447, %v3475, 0.0
    %3477 = vadd.xlane.f32.xlu0 %v3476
    %v3478 = vpop.xlane.xlu0 %3477
    %vm3479 = vcmask 0
    %3480 = vst.msk [vmem:[#allocation5] sm:$0x1] %vm3479, %v3478
    // Predicated region
    $region34: #{transformer_forward.1} parent=1 // pred_check
      _
    $region35: #{transformer_forward.1} parent=1 // pred_check_branch
      %3482 = sbr.rel (0) target = $region37
    $region36: #{transformer_forward.1} parent=1 // pred_region
      _
    $region37: #{transformer_forward.1} parent=1 // pred_fallthru
      _
    // Predicated region
    $region38: #{transformer_forward.1} parent=1 // pred_check
      _
    $region39: #{transformer_forward.1} parent=1 // pred_check_branch
      %3484 = sbr.rel (0) target = $region41
    $region40: #{transformer_forward.1} parent=1 // pred_region
      %s3486 = ssub.s32 16, 16
      %3487 = vsyncadd [#allocation4], %s3486
      %s3489 = sshll.u32 [#allocation5], 4
      %s3490 = int_to_ptr.vmem [resolvable:$true] %s3489
      %3492 = dma.vmem_to_hbm [thread:$0]  %s3490, 16, %s8, [#allocation4]
    $region41: #{transformer_forward.1} parent=1 // pred_fallthru
      _
    // Predicated region
    $region42: #{transformer_forward.1} parent=1 // pred_check
      _
    $region43: #{transformer_forward.1} parent=1 // pred_check_branch
      %3494 = sbr.rel (0) target = $region45
    $region44: #{transformer_forward.1} parent=1 // pred_region
      _
    $region45: #{transformer_forward.1} parent=1 // pred_fallthru
      _
    // Predicated region
    $region46: #{transformer_forward.1} parent=1 // pred_check
      _
    $region47: #{transformer_forward.1} parent=1 // pred_check_branch
      %3496 = sbr.rel (0) target = $region49
    $region48: #{transformer_forward.1} parent=1 // pred_region
      %3497 = dma.done [#allocation4], 16
    $region49: #{transformer_forward.1} parent=1 // pred_fallthru
      _
    %3498 = vsyncpa [#allocation3], 1
    %3499 = vsyncpa [#allocation4], 1

</llo_original>
